<compile_context>
chip_gen: v6e
topology: v6e:2x2x1
jax: 0.10.0
libtpu: 0.0.40
codegen_flags: <defaults>
</compile_context>

<pallas_src>
import numpy as np
import jax
import jax.numpy as jnp
from jax.experimental import pallas as pl
from jax.experimental.pallas import tpu as pltpu

EPS = 1e-5
CO_PAD = 128                      # lane-dense output width for conv layers
VMEM_LIMIT = 16 * 1024 * 1024


def _round_up(x, m):
    return ((x + m - 1) // m) * m


def _pick_tile(n):
    """Largest row tile that divides n, preferring >=2 grid steps (v7x 2 TCs)."""
    for t in (256, 128):
        if n % t == 0 and n // t >= 2:
            return t
    for t in (256, 128, 64, 32, 16, 8):
        if n % t == 0:
            return t
    return n


def _bytes(*arrays):
    return int(sum(a.size * a.dtype.itemsize for a in arrays))


# --------------------------------------------------------------------------
# Pallas kernels
# --------------------------------------------------------------------------
def _conv_bn_tanh_kernel(x_ref, w_ref, s_ref, b_ref, o_ref):
    # x: (tile_n, K) bf16, w: (K, 128) bf16, s/b: (1, 128) f32 folded BN
    acc = jnp.dot(x_ref[...], w_ref[...], preferred_element_type=jnp.float32)
    o_ref[...] = jnp.tanh(acc * s_ref[...] + b_ref[...]).astype(o_ref.dtype)


def _conv_bn_tanh_pool_kernel(x_ref, w_ref, s_ref, b_ref, o_ref):
    # x: (4, tile_n, K) -- the 4 max-pool partners of each pooled output row.
    w = w_ref[...]
    s = s_ref[...]
    b = b_ref[...]

    def tap(t):
        acc = jnp.dot(x_ref[t], w, preferred_element_type=jnp.float32)
        return jnp.tanh(acc * s + b)

    y = jnp.maximum(jnp.maximum(tap(0), tap(1)), jnp.maximum(tap(2), tap(3)))
    o_ref[...] = y.astype(o_ref.dtype)


def _head_kernel(x_ref, w1_ref, s1_ref, b1_ref, w2_ref, b2_ref, o_ref):
    # x: (2B, S, 128) pooled conv4 features of both branches (bf16).
    x = x_ref[...].astype(jnp.float32)
    b = x.shape[0] // 2
    xsum = x[:b] + x[b:]                          # (B, S, 128)
    pooled = jnp.sum(xsum, axis=1)                # (B, 128); 1/S folded into s1
    h = jnp.dot(pooled, w1_ref[...], preferred_element_type=jnp.float32)
    h = jnp.tanh(h * s1_ref[...] + b1_ref[...])   # fc1 + BN1d + tanh
    o_ref[...] = jnp.dot(h, w2_ref[...],
                         preferred_element_type=jnp.float32) + b2_ref[...]


# --------------------------------------------------------------------------
# pallas_call wrappers
# --------------------------------------------------------------------------
def matmul_bn_tanh(patches, w2d, scale, bias):
    N, K = patches.shape
    Co = w2d.shape[1]
    tile_n = _pick_tile(N)
    return pl.pallas_call(
        _conv_bn_tanh_kernel,
        out_shape=jax.ShapeDtypeStruct((N, Co), jnp.bfloat16),
        grid=(N // tile_n,),
        in_specs=[
            pl.BlockSpec((tile_n, K), lambda i: (i, 0)),
            pl.BlockSpec((K, Co), lambda i: (0, 0)),
            pl.BlockSpec((1, Co), lambda i: (0, 0)),
            pl.BlockSpec((1, Co), lambda i: (0, 0)),
        ],
        out_specs=pl.BlockSpec((tile_n, Co), lambda i: (i, 0)),
        compiler_params=pltpu.CompilerParams(
            dimension_semantics=("parallel",),
            vmem_limit_bytes=VMEM_LIMIT),
        cost_estimate=pl.CostEstimate(
            flops=2 * N * K * Co,
            transcendentals=N * Co,
            bytes_accessed=_bytes(patches, w2d, scale, bias) + N * Co * 2),
    )(patches, w2d, scale, bias)


def matmul_bn_tanh_pool(patches4, w2d, scale, bias):
    _, Np, K = patches4.shape
    Co = w2d.shape[1]
    tile_n = _pick_tile(Np)
    return pl.pallas_call(
        _conv_bn_tanh_pool_kernel,
        out_shape=jax.ShapeDtypeStruct((Np, Co), jnp.bfloat16),
        grid=(Np // tile_n,),
        in_specs=[
            pl.BlockSpec((4, tile_n, K), lambda i: (0, i, 0)),
            pl.BlockSpec((K, Co), lambda i: (0, 0)),
            pl.BlockSpec((1, Co), lambda i: (0, 0)),
            pl.BlockSpec((1, Co), lambda i: (0, 0)),
        ],
        out_specs=pl.BlockSpec((tile_n, Co), lambda i: (i, 0)),
        compiler_params=pltpu.CompilerParams(
            dimension_semantics=("parallel",),
            vmem_limit_bytes=VMEM_LIMIT),
        cost_estimate=pl.CostEstimate(
            flops=2 * 4 * Np * K * Co,
            transcendentals=4 * Np * Co,
            bytes_accessed=_bytes(patches4, w2d, scale, bias) + Np * Co * 2),
    )(patches4, w2d, scale, bias)


def head_call(xh, w1, s1, b1, w2, b2, batch, nc_pad):
    vmem = pl.BlockSpec(memory_space=pltpu.MemorySpace.VMEM)
    return pl.pallas_call(
        _head_kernel,
        out_shape=jax.ShapeDtypeStruct((batch, nc_pad), jnp.float32),
        in_specs=[vmem] * 6,
        out_specs=vmem,
        compiler_params=pltpu.CompilerParams(vmem_limit_bytes=VMEM_LIMIT),
        cost_estimate=pl.CostEstimate(
            flops=2 * batch * (w1.shape[0] * w1.shape[1]
                               + w2.shape[0] * w2.shape[1]),
            transcendentals=batch * w1.shape[1],
            bytes_accessed=_bytes(xh, w1, s1, b1, w2, b2) + batch * nc_pad * 4),
    )(xh, w1, s1, b1, w2, b2)


# --------------------------------------------------------------------------
# JAX glue (layout plumbing: padding, im2col, pool-partner grouping, BN fold)
# --------------------------------------------------------------------------
# TODO(synk): im2col still materializes a kh*kw-duplicated patch array in HBM;
# an in-kernel tap-accumulation over the un-duplicated padded input would
# remove that traffic but needs element-offset windows / manual DMA.
def _im2col_nhwk(x, kh, kw, pad, cin):
    Bt, H, W, _ = x.shape
    xp = jnp.pad(x[..., :cin], ((0, 0), (pad, pad), (pad, pad), (0, 0)))
    cols = [xp[:, i:i + H, j:j + W, :] for i in range(kh) for j in range(kw)]
    return jnp.concatenate(cols, axis=-1)            # (Bt, H, W, kh*kw*cin)


def conv_bn_tanh(x, w2d, scale, bias, kh, kw, pad, cin):
    Bt, H, W, _ = x.shape
    k = kh * kw * cin
    patches = _im2col_nhwk(x, kh, kw, pad, cin).reshape(Bt * H * W, k)
    out = matmul_bn_tanh(patches, w2d, scale, bias)
    return out.reshape(Bt, H, W, w2d.shape[1])


def conv_bn_tanh_pool(x, w2d, scale, bias, kh, kw, pad, cin):
    Bt, H, W, _ = x.shape
    k = kh * kw * cin
    p = _im2col_nhwk(x, kh, kw, pad, cin)            # (Bt, H, W, K)
    p = p.reshape(Bt, H // 2, 2, W // 2, 2, k).transpose(2, 4, 0, 1, 3, 5)
    p = p.reshape(4, Bt * (H // 2) * (W // 2), k)    # pool partners on axis 0
    out = matmul_bn_tanh_pool(p, w2d, scale, bias)
    return out.reshape(Bt, H // 2, W // 2, w2d.shape[1])


def fold_bn(bn, lin_bias):
    scale = bn["gamma"] / jnp.sqrt(bn["var"] + EPS)
    bias = bn["beta"] + (lin_bias - bn["mean"]) * scale
    return (scale.reshape(1, -1).astype(jnp.float32),
            bias.reshape(1, -1).astype(jnp.float32))


def _prep_conv(p):
    w = p["w"]                                       # (kh, kw, cin, co)
    kh, kw, cin, co = w.shape
    co_pad = _round_up(co, CO_PAD)
    w2d = w.reshape(kh * kw * cin, co)
    w2d = jnp.pad(w2d, ((0, 0), (0, co_pad - co))).astype(jnp.bfloat16)
    s, b = fold_bn(p["bn"], p["b"])
    s = jnp.pad(s, ((0, 0), (0, co_pad - co)))       # padded lanes -> tanh(0)=0
    b = jnp.pad(b, ((0, 0), (0, co_pad - co)))
    return w2d, s, b, kh, kw, cin, co


def maxpool2x2(x):
    Bt, H, W, C = x.shape
    return x.reshape(Bt, H // 2, 2, W // 2, 2, C).max(axis=(2, 4))


# --------------------------------------------------------------------------
# Parameters (deterministic synthetic init)
# --------------------------------------------------------------------------
def bn_params(key, c):
    k1, k2, k3, k4 = jax.random.split(key, 4)
    return dict(
        gamma=1.0 + 0.1 * jax.random.normal(k1, (c,), jnp.float32),
        beta=0.1 * jax.random.normal(k2, (c,), jnp.float32),
        mean=0.1 * jax.random.normal(k3, (c,), jnp.float32),
        var=jax.random.uniform(k4, (c,), jnp.float32, minval=0.5, maxval=1.5),
    )


def init_params(key, in_chans, num_classes):
    ks = jax.random.split(key, 12)

    def conv_w(k, kh, kw, cin, cout):
        return jax.random.normal(k, (kh, kw, cin, cout), jnp.float32) / np.sqrt(kh * kw * cin)

    def lin_w(k, cin, cout):
        return jax.random.normal(k, (cin, cout), jnp.float32) / np.sqrt(cin)

    def bias(k, c):
        return 0.1 * jax.random.normal(k, (c,), jnp.float32)

    params = {
        "conv1": dict(w=conv_w(ks[0], 5, 5, in_chans, 32), b=bias(ks[1], 32),
                      bn=bn_params(ks[2], 32)),
        "conv2": dict(w=conv_w(ks[3], 3, 3, 32, 64), b=bias(ks[4], 64),
                      bn=bn_params(ks[5], 64)),
        "conv3": dict(w=conv_w(ks[6], 3, 3, 64, 128), b=bias(ks[7], 128),
                      bn=bn_params(ks[8], 128)),
        "conv4": dict(w=conv_w(ks[9], 1, 1, 128, 96), b=bias(ks[10], 96),
                      bn=bn_params(ks[11], 96)),
    }
    kf = jax.random.split(jax.random.fold_in(key, 123), 6)
    params["fc1"] = dict(w=lin_w(kf[0], 96, 512), b=bias(kf[1], 512),
                         bn=bn_params(kf[2], 512))
    params["fc2"] = dict(w=lin_w(kf[3], 512, num_classes), b=bias(kf[4], num_classes))
    return params


# --------------------------------------------------------------------------
# Forward pass (Pallas) and pure-JAX reference
# --------------------------------------------------------------------------
def getnet_forward(params, x1, x2):
    num_classes = params["fc2"]["w"].shape[1]
    # both branches share all conv weights -> process them as one batch
    x = jnp.concatenate([x1, x2], axis=0).astype(jnp.bfloat16)   # (2B, H, W, Cin)
    b2x = x.shape[0]
    batch = b2x // 2

    w1, s1, bb1, kh1, kw1, c1, _ = _prep_conv(params["conv1"])
    w2, s2, bb2, kh2, kw2, c2, _ = _prep_conv(params["conv2"])
    w3, s3, bb3, kh3, kw3, c3, _ = _prep_conv(params["conv3"])
    w4, s4, bb4, kh4, kw4, c4, _ = _prep_conv(params["conv4"])

    x = conv_bn_tanh(x, w1, s1, bb1, kh1, kw1, 2, c1)        # (2B,16,16,128) [32 real]
    x = conv_bn_tanh_pool(x, w2, s2, bb2, kh2, kw2, 1, c2)   # (2B, 8, 8,128) [64 real]
    x = conv_bn_tanh(x, w3, s3, bb3, kh3, kw3, 1, c3)        # (2B, 8, 8,128) [128 real]
    x = conv_bn_tanh_pool(x, w4, s4, bb4, kh4, kw4, 0, c4)   # (2B, 4, 4,128) [96 real]

    spatial = x.shape[1] * x.shape[2]
    stored_c = x.shape[3]
    xh = x.reshape(b2x, spatial, stored_c)

    s_fc, b_fc = fold_bn(params["fc1"]["bn"], params["fc1"]["b"])
    s_fc = s_fc / float(spatial)                 # fold global-avg-pool 1/S into BN scale
    w_fc1 = jnp.pad(params["fc1"]["w"],
                    ((0, stored_c - params["fc1"]["w"].shape[0]), (0, 0)))
    nc_pad = _round_up(num_classes, 128)
    w_fc2 = jnp.pad(params["fc2"]["w"], ((0, 0), (0, nc_pad - num_classes)))
    b_fc2 = jnp.pad(params["fc2"]["b"], (0, nc_pad - num_classes)).reshape(1, -1)

    out = head_call(xh, w_fc1.astype(jnp.float32), s_fc, b_fc,
                    w_fc2.astype(jnp.float32), b_fc2.astype(jnp.float32),
                    batch, nc_pad)
    return out[:, :num_classes]


def reference_forward(params, x1, x2):
    def layer(x, p, pad):
        s, b = fold_bn(p["bn"], p["b"])
        y = jax.lax.conv_general_dilated(
            x, p["w"], window_strides=(1, 1),
            padding=[(pad, pad), (pad, pad)],
            dimension_numbers=("NHWC", "HWIO", "NHWC"))
        return jnp.tanh(y * s + b)

    x1 = layer(x1, params["conv1"], 2)
    x2 = layer(x2, params["conv1"], 2)
    x1 = maxpool2x2(layer(x1, params["conv2"], 1))
    x2 = maxpool2x2(layer(x2, params["conv2"], 1))
    x1 = layer(x1, params["conv3"], 1)
    x2 = layer(x2, params["conv3"], 1)
    x1 = maxpool2x2(layer(x1, params["conv4"], 0))
    x2 = maxpool2x2(layer(x2, params["conv4"], 0))

    pooled = x1.mean(axis=(1, 2)) + x2.mean(axis=(1, 2))          # (B, 96)
    s1, b1 = fold_bn(params["fc1"]["bn"], params["fc1"]["b"])
    h = jnp.tanh(jnp.dot(pooled, params["fc1"]["w"]) * s1 + b1)
    return jnp.dot(h, params["fc2"]["w"]) + params["fc2"]["b"].reshape(1, -1)


# --------------------------------------------------------------------------
if __name__ == "__main__":
    key = jax.random.PRNGKey(0)
    in_chans, num_classes = 4, 10
    B, H, W = 2, 16, 16

    kp, kx = jax.random.split(key)
    params = init_params(kp, in_chans, num_classes)
    k1, k2 = jax.random.split(kx)
    x1 = jax.random.normal(k1, (B, H, W, in_chans), jnp.float32)
    x2 = jax.random.normal(k2, (B, H, W, in_chans), jnp.float32)

    out = jax.jit(getnet_forward)(params, x1, x2)
    out = jax.block_until_ready(out)

    ref = reference_forward(params, x1, x2)
    assert out.shape == (B, num_classes), out.shape
    assert np.all(np.isfinite(np.asarray(out)))
    err = float(np.abs(np.asarray(out) - np.asarray(ref)).max())
    assert np.allclose(np.asarray(out), np.asarray(ref), rtol=5e-2, atol=5e-2), err

    print("KERNEL_OK")
</pallas_src>

<mosaic_0001>
module attributes {stable_mosaic.version = 11 : i64} {
  func.func @_conv_bn_tanh_kernel(%arg0: i32, %arg1: memref<256x100xbf16, #tpu.memory_space<vmem>>, %arg2: memref<100x128xbf16, #tpu.memory_space<vmem>>, %arg3: memref<1x128xf32, #tpu.memory_space<vmem>>, %arg4: memref<1x128xf32, #tpu.memory_space<vmem>>, %arg5: memref<256x128xbf16, #tpu.memory_space<vmem>>) attributes {dimension_semantics = [#tpu.dimension_semantics<parallel>], iteration_bounds = array<i64: 4>, scalar_prefetch = 0 : i64, scratch_operands = 0 : i64, tpu.core_type = #tpu.core_type<tc>, window_params = [{transform_indices = @transform_0, window_bounds = array<i64: 256, 100>}, {pipeline_mode = #tpu.pipeline_mode<synchronous>, transform_indices = @transform_1, window_bounds = array<i64: 100, 128>}, {pipeline_mode = #tpu.pipeline_mode<synchronous>, transform_indices = @transform_2, window_bounds = array<i64: 1, 128>}, {pipeline_mode = #tpu.pipeline_mode<synchronous>, transform_indices = @transform_3, window_bounds = array<i64: 1, 128>}, {transform_indices = @transform_4, window_bounds = array<i64: 256, 128>}]} {
    %c0 = arith.constant 0 : index
    %c0_0 = arith.constant 0 : index
    %0 = vector.load %arg1[%c0, %c0_0] : memref<256x100xbf16, #tpu.memory_space<vmem>>, vector<256x100xbf16>
    %c0_1 = arith.constant 0 : index
    %c0_2 = arith.constant 0 : index
    %1 = vector.load %arg2[%c0_1, %c0_2] : memref<100x128xbf16, #tpu.memory_space<vmem>>, vector<100x128xbf16>
    %cst = arith.constant dense<0.000000e+00> : vector<256x128xf32>
    %2 = tpu.matmul %0, %1, %cst {dimension_numbers = #tpu.dot_dimension_numbers<[1], [0], [0], [1], [0, 0, 1, 1], [], []>} : vector<256x100xbf16>, vector<100x128xbf16>, vector<256x128xf32> -> vector<256x128xf32>
    %c0_3 = arith.constant 0 : index
    %c0_4 = arith.constant 0 : index
    %3 = vector.load %arg3[%c0_3, %c0_4] : memref<1x128xf32, #tpu.memory_space<vmem>>, vector<1x128xf32>
    %4 = vector.broadcast %3 : vector<1x128xf32> to vector<256x128xf32>
    %5 = arith.mulf %2, %4 : vector<256x128xf32>
    %c0_5 = arith.constant 0 : index
    %c0_6 = arith.constant 0 : index
    %6 = vector.load %arg4[%c0_5, %c0_6] : memref<1x128xf32, #tpu.memory_space<vmem>>, vector<1x128xf32>
    %7 = vector.broadcast %6 : vector<1x128xf32> to vector<256x128xf32>
    %8 = arith.addf %5, %7 : vector<256x128xf32>
    %9 = math.tanh %8 : vector<256x128xf32>
    %10 = arith.truncf %9 : vector<256x128xf32> to vector<256x128xbf16>
    %c0_7 = arith.constant 0 : index
    %c0_8 = arith.constant 0 : index
    %11 = vector.load %arg5[%c0_7, %c0_8] : memref<256x128xbf16, #tpu.memory_space<vmem>>, vector<256x128xbf16>
    tpu.vector_store %arg5[%c0_7, %c0_8], %10 {strides = array<i32>} : memref<256x128xbf16, #tpu.memory_space<vmem>>, vector<256x128xbf16>,
    return
  }
  func.func @transform_0(%arg0: i32) -> (i32, i32) {
    %c0_i32 = arith.constant 0 : i32
    %c0_i32_0 = arith.constant 0 : i32
    return %arg0, %c0_i32 : i32, i32
  }
  func.func @transform_1(%arg0: i32) -> (i32, i32) {
    %c0_i32 = arith.constant 0 : i32
    %c0_i32_0 = arith.constant 0 : i32
    %c0_i32_1 = arith.constant 0 : i32
    return %c0_i32, %c0_i32_0 : i32, i32
  }
  func.func @transform_2(%arg0: i32) -> (i32, i32) {
    %c0_i32 = arith.constant 0 : i32
    %c0_i32_0 = arith.constant 0 : i32
    %c0_i32_1 = arith.constant 0 : i32
    return %c0_i32, %c0_i32_0 : i32, i32
  }
  func.func @transform_3(%arg0: i32) -> (i32, i32) {
    %c0_i32 = arith.constant 0 : i32
    %c0_i32_0 = arith.constant 0 : i32
    %c0_i32_1 = arith.constant 0 : i32
    return %c0_i32, %c0_i32_0 : i32, i32
  }
  func.func @transform_4(%arg0: i32) -> (i32, i32) {
    %c0_i32 = arith.constant 0 : i32
    %c0_i32_0 = arith.constant 0 : i32
    return %arg0, %c0_i32 : i32, i32
  }
}

module attributes {stable_mosaic.version = 11 : i64} {
  func.func @_conv_bn_tanh_pool_kernel(%arg0: i32, %arg1: memref<4x128x288xbf16, #tpu.memory_space<vmem>>, %arg2: memref<288x128xbf16, #tpu.memory_space<vmem>>, %arg3: memref<1x128xf32, #tpu.memory_space<vmem>>, %arg4: memref<1x128xf32, #tpu.memory_space<vmem>>, %arg5: memref<128x128xbf16, #tpu.memory_space<vmem>>) attributes {dimension_semantics = [#tpu.dimension_semantics<parallel>], iteration_bounds = array<i64: 2>, scalar_prefetch = 0 : i64, scratch_operands = 0 : i64, tpu.core_type = #tpu.core_type<tc>, window_params = [{transform_indices = @transform_0, window_bounds = array<i64: 4, 128, 288>}, {pipeline_mode = #tpu.pipeline_mode<synchronous>, transform_indices = @transform_1, window_bounds = array<i64: 288, 128>}, {pipeline_mode = #tpu.pipeline_mode<synchronous>, transform_indices = @transform_2, window_bounds = array<i64: 1, 128>}, {pipeline_mode = #tpu.pipeline_mode<synchronous>, transform_indices = @transform_3, window_bounds = array<i64: 1, 128>}, {transform_indices = @transform_4, window_bounds = array<i64: 128, 128>}]} {
    %c0 = arith.constant 0 : index
    %c0_0 = arith.constant 0 : index
    %0 = vector.load %arg2[%c0, %c0_0] : memref<288x128xbf16, #tpu.memory_space<vmem>>, vector<288x128xbf16>
    %c0_1 = arith.constant 0 : index
    %c0_2 = arith.constant 0 : index
    %1 = vector.load %arg3[%c0_1, %c0_2] : memref<1x128xf32, #tpu.memory_space<vmem>>, vector<1x128xf32>
    %c0_3 = arith.constant 0 : index
    %c0_4 = arith.constant 0 : index
    %2 = vector.load %arg4[%c0_3, %c0_4] : memref<1x128xf32, #tpu.memory_space<vmem>>, vector<1x128xf32>
    %c0_5 = arith.constant 0 : index
    %c0_6 = arith.constant 0 : index
    %c0_7 = arith.constant 0 : index
    %3 = vector.load %arg1[%c0_5, %c0_6, %c0_7] : memref<4x128x288xbf16, #tpu.memory_space<vmem>>, vector<1x128x288xbf16>
    %4 = vector.shape_cast %3 : vector<1x128x288xbf16> to vector<128x288xbf16>
    %cst = arith.constant dense<0.000000e+00> : vector<128x128xf32>
    %5 = tpu.matmul %4, %0, %cst {dimension_numbers = #tpu.dot_dimension_numbers<[1], [0], [0], [1], [0, 0, 1, 1], [], []>} : vector<128x288xbf16>, vector<288x128xbf16>, vector<128x128xf32> -> vector<128x128xf32>
    %6 = vector.broadcast %1 : vector<1x128xf32> to vector<128x128xf32>
    %7 = arith.mulf %5, %6 : vector<128x128xf32>
    %8 = vector.broadcast %2 : vector<1x128xf32> to vector<128x128xf32>
    %9 = arith.addf %7, %8 : vector<128x128xf32>
    %10 = math.tanh %9 : vector<128x128xf32>
    %c1 = arith.constant 1 : index
    %c0_8 = arith.constant 0 : index
    %c0_9 = arith.constant 0 : index
    %11 = vector.load %arg1[%c1, %c0_8, %c0_9] : memref<4x128x288xbf16, #tpu.memory_space<vmem>>, vector<1x128x288xbf16>
    %12 = vector.shape_cast %11 : vector<1x128x288xbf16> to vector<128x288xbf16>
    %cst_10 = arith.constant dense<0.000000e+00> : vector<128x128xf32>
    %13 = tpu.matmul %12, %0, %cst_10 {dimension_numbers = #tpu.dot_dimension_numbers<[1], [0], [0], [1], [0, 0, 1, 1], [], []>} : vector<128x288xbf16>, vector<288x128xbf16>, vector<128x128xf32> -> vector<128x128xf32>
    %14 = vector.broadcast %1 : vector<1x128xf32> to vector<128x128xf32>
    %15 = arith.mulf %13, %14 : vector<128x128xf32>
    %16 = vector.broadcast %2 : vector<1x128xf32> to vector<128x128xf32>
    %17 = arith.addf %15, %16 : vector<128x128xf32>
    %18 = math.tanh %17 : vector<128x128xf32>
    %19 = arith.maximumf %10, %18 : vector<128x128xf32>
    %c2 = arith.constant 2 : index
    %c0_11 = arith.constant 0 : index
    %c0_12 = arith.constant 0 : index
    %20 = vector.load %arg1[%c2, %c0_11, %c0_12] : memref<4x128x288xbf16, #tpu.memory_space<vmem>>, vector<1x128x288xbf16>
    %21 = vector.shape_cast %20 : vector<1x128x288xbf16> to vector<128x288xbf16>
    %cst_13 = arith.constant dense<0.000000e+00> : vector<128x128xf32>
    %22 = tpu.matmul %21, %0, %cst_13 {dimension_numbers = #tpu.dot_dimension_numbers<[1], [0], [0], [1], [0, 0, 1, 1], [], []>} : vector<128x288xbf16>, vector<288x128xbf16>, vector<128x128xf32> -> vector<128x128xf32>
    %23 = vector.broadcast %1 : vector<1x128xf32> to vector<128x128xf32>
    %24 = arith.mulf %22, %23 : vector<128x128xf32>
    %25 = vector.broadcast %2 : vector<1x128xf32> to vector<128x128xf32>
    %26 = arith.addf %24, %25 : vector<128x128xf32>
    %27 = math.tanh %26 : vector<128x128xf32>
    %c3 = arith.constant 3 : index
    %c0_14 = arith.constant 0 : index
    %c0_15 = arith.constant 0 : index
    %28 = vector.load %arg1[%c3, %c0_14, %c0_15] : memref<4x128x288xbf16, #tpu.memory_space<vmem>>, vector<1x128x288xbf16>
    %29 = vector.shape_cast %28 : vector<1x128x288xbf16> to vector<128x288xbf16>
    %cst_16 = arith.constant dense<0.000000e+00> : vector<128x128xf32>
    %30 = tpu.matmul %29, %0, %cst_16 {dimension_numbers = #tpu.dot_dimension_numbers<[1], [0], [0], [1], [0, 0, 1, 1], [], []>} : vector<128x288xbf16>, vector<288x128xbf16>, vector<128x128xf32> -> vector<128x128xf32>
    %31 = vector.broadcast %1 : vector<1x128xf32> to vector<128x128xf32>
    %32 = arith.mulf %30, %31 : vector<128x128xf32>
    %33 = vector.broadcast %2 : vector<1x128xf32> to vector<128x128xf32>
    %34 = arith.addf %32, %33 : vector<128x128xf32>
    %35 = math.tanh %34 : vector<128x128xf32>
    %36 = arith.maximumf %27, %35 : vector<128x128xf32>
    %37 = arith.maximumf %19, %36 : vector<128x128xf32>
    %38 = arith.truncf %37 : vector<128x128xf32> to vector<128x128xbf16>
    %c0_17 = arith.constant 0 : index
    %c0_18 = arith.constant 0 : index
    %39 = vector.load %arg5[%c0_17, %c0_18] : memref<128x128xbf16, #tpu.memory_space<vmem>>, vector<128x128xbf16>
    tpu.vector_store %arg5[%c0_17, %c0_18], %38 {strides = array<i32>} : memref<128x128xbf16, #tpu.memory_space<vmem>>, vector<128x128xbf16>,
    return
  }
  func.func @transform_0(%arg0: i32) -> (i32, i32, i32) {
    %c0_i32 = arith.constant 0 : i32
    %c0_i32_0 = arith.constant 0 : i32
    %c0_i32_1 = arith.constant 0 : i32
    return %c0_i32, %arg0, %c0_i32_0 : i32, i32, i32
  }
  func.func @transform_1(%arg0: i32) -> (i32, i32) {
    %c0_i32 = arith.constant 0 : i32
    %c0_i32_0 = arith.constant 0 : i32
    %c0_i32_1 = arith.constant 0 : i32
    return %c0_i32, %c0_i32_0 : i32, i32
  }
  func.func @transform_2(%arg0: i32) -> (i32, i32) {
    %c0_i32 = arith.constant 0 : i32
    %c0_i32_0 = arith.constant 0 : i32
    %c0_i32_1 = arith.constant 0 : i32
    return %c0_i32, %c0_i32_0 : i32, i32
  }
  func.func @transform_3(%arg0: i32) -> (i32, i32) {
    %c0_i32 = arith.constant 0 : i32
    %c0_i32_0 = arith.constant 0 : i32
    %c0_i32_1 = arith.constant 0 : i32
    return %c0_i32, %c0_i32_0 : i32, i32
  }
  func.func @transform_4(%arg0: i32) -> (i32, i32) {
    %c0_i32 = arith.constant 0 : i32
    %c0_i32_0 = arith.constant 0 : i32
    return %arg0, %c0_i32 : i32, i32
  }
}

module attributes {stable_mosaic.version = 11 : i64} {
  func.func @_conv_bn_tanh_kernel(%arg0: i32, %arg1: memref<128x576xbf16, #tpu.memory_space<vmem>>, %arg2: memref<576x128xbf16, #tpu.memory_space<vmem>>, %arg3: memref<1x128xf32, #tpu.memory_space<vmem>>, %arg4: memref<1x128xf32, #tpu.memory_space<vmem>>, %arg5: memref<128x128xbf16, #tpu.memory_space<vmem>>) attributes {dimension_semantics = [#tpu.dimension_semantics<parallel>], iteration_bounds = array<i64: 2>, scalar_prefetch = 0 : i64, scratch_operands = 0 : i64, tpu.core_type = #tpu.core_type<tc>, window_params = [{transform_indices = @transform_0, window_bounds = array<i64: 128, 576>}, {pipeline_mode = #tpu.pipeline_mode<synchronous>, transform_indices = @transform_1, window_bounds = array<i64: 576, 128>}, {pipeline_mode = #tpu.pipeline_mode<synchronous>, transform_indices = @transform_2, window_bounds = array<i64: 1, 128>}, {pipeline_mode = #tpu.pipeline_mode<synchronous>, transform_indices = @transform_3, window_bounds = array<i64: 1, 128>}, {transform_indices = @transform_4, window_bounds = array<i64: 128, 128>}]} {
    %c0 = arith.constant 0 : index
    %c0_0 = arith.constant 0 : index
    %0 = vector.load %arg1[%c0, %c0_0] : memref<128x576xbf16, #tpu.memory_space<vmem>>, vector<128x576xbf16>
    %c0_1 = arith.constant 0 : index
    %c0_2 = arith.constant 0 : index
    %1 = vector.load %arg2[%c0_1, %c0_2] : memref<576x128xbf16, #tpu.memory_space<vmem>>, vector<576x128xbf16>
    %cst = arith.constant dense<0.000000e+00> : vector<128x128xf32>
    %2 = tpu.matmul %0, %1, %cst {dimension_numbers = #tpu.dot_dimension_numbers<[1], [0], [0], [1], [0, 0, 1, 1], [], []>} : vector<128x576xbf16>, vector<576x128xbf16>, vector<128x128xf32> -> vector<128x128xf32>
    %c0_3 = arith.constant 0 : index
    %c0_4 = arith.constant 0 : index
    %3 = vector.load %arg3[%c0_3, %c0_4] : memref<1x128xf32, #tpu.memory_space<vmem>>, vector<1x128xf32>
    %4 = vector.broadcast %3 : vector<1x128xf32> to vector<128x128xf32>
    %5 = arith.mulf %2, %4 : vector<128x128xf32>
    %c0_5 = arith.constant 0 : index
    %c0_6 = arith.constant 0 : index
    %6 = vector.load %arg4[%c0_5, %c0_6] : memref<1x128xf32, #tpu.memory_space<vmem>>, vector<1x128xf32>
    %7 = vector.broadcast %6 : vector<1x128xf32> to vector<128x128xf32>
    %8 = arith.addf %5, %7 : vector<128x128xf32>
    %9 = math.tanh %8 : vector<128x128xf32>
    %10 = arith.truncf %9 : vector<128x128xf32> to vector<128x128xbf16>
    %c0_7 = arith.constant 0 : index
    %c0_8 = arith.constant 0 : index
    %11 = vector.load %arg5[%c0_7, %c0_8] : memref<128x128xbf16, #tpu.memory_space<vmem>>, vector<128x128xbf16>
    tpu.vector_store %arg5[%c0_7, %c0_8], %10 {strides = array<i32>} : memref<128x128xbf16, #tpu.memory_space<vmem>>, vector<128x128xbf16>,
    return
  }
  func.func @transform_0(%arg0: i32) -> (i32, i32) {
    %c0_i32 = arith.constant 0 : i32
    %c0_i32_0 = arith.constant 0 : i32
    return %arg0, %c0_i32 : i32, i32
  }
  func.func @transform_1(%arg0: i32) -> (i32, i32) {
    %c0_i32 = arith.constant 0 : i32
    %c0_i32_0 = arith.constant 0 : i32
    %c0_i32_1 = arith.constant 0 : i32
    return %c0_i32, %c0_i32_0 : i32, i32
  }
  func.func @transform_2(%arg0: i32) -> (i32, i32) {
    %c0_i32 = arith.constant 0 : i32
    %c0_i32_0 = arith.constant 0 : i32
    %c0_i32_1 = arith.constant 0 : i32
    return %c0_i32, %c0_i32_0 : i32, i32
  }
  func.func @transform_3(%arg0: i32) -> (i32, i32) {
    %c0_i32 = arith.constant 0 : i32
    %c0_i32_0 = arith.constant 0 : i32
    %c0_i32_1 = arith.constant 0 : i32
    return %c0_i32, %c0_i32_0 : i32, i32
  }
  func.func @transform_4(%arg0: i32) -> (i32, i32) {
    %c0_i32 = arith.constant 0 : i32
    %c0_i32_0 = arith.constant 0 : i32
    return %arg0, %c0_i32 : i32, i32
  }
}

module attributes {stable_mosaic.version = 11 : i64} {
  func.func @_conv_bn_tanh_pool_kernel(%arg0: i32, %arg1: memref<4x64x128xbf16, #tpu.memory_space<vmem>>, %arg2: memref<128x128xbf16, #tpu.memory_space<vmem>>, %arg3: memref<1x128xf32, #tpu.memory_space<vmem>>, %arg4: memref<1x128xf32, #tpu.memory_space<vmem>>, %arg5: memref<64x128xbf16, #tpu.memory_space<vmem>>) attributes {dimension_semantics = [#tpu.dimension_semantics<parallel>], iteration_bounds = array<i64: 1>, scalar_prefetch = 0 : i64, scratch_operands = 0 : i64, tpu.core_type = #tpu.core_type<tc>, window_params = [{transform_indices = @transform_0, window_bounds = array<i64: 4, 64, 128>}, {pipeline_mode = #tpu.pipeline_mode<synchronous>, transform_indices = @transform_1, window_bounds = array<i64: 128, 128>}, {pipeline_mode = #tpu.pipeline_mode<synchronous>, transform_indices = @transform_2, window_bounds = array<i64: 1, 128>}, {pipeline_mode = #tpu.pipeline_mode<synchronous>, transform_indices = @transform_3, window_bounds = array<i64: 1, 128>}, {transform_indices = @transform_4, window_bounds = array<i64: 64, 128>}]} {
    %c0 = arith.constant 0 : index
    %c0_0 = arith.constant 0 : index
    %0 = vector.load %arg2[%c0, %c0_0] : memref<128x128xbf16, #tpu.memory_space<vmem>>, vector<128x128xbf16>
    %c0_1 = arith.constant 0 : index
    %c0_2 = arith.constant 0 : index
    %1 = vector.load %arg3[%c0_1, %c0_2] : memref<1x128xf32, #tpu.memory_space<vmem>>, vector<1x128xf32>
    %c0_3 = arith.constant 0 : index
    %c0_4 = arith.constant 0 : index
    %2 = vector.load %arg4[%c0_3, %c0_4] : memref<1x128xf32, #tpu.memory_space<vmem>>, vector<1x128xf32>
    %c0_5 = arith.constant 0 : index
    %c0_6 = arith.constant 0 : index
    %c0_7 = arith.constant 0 : index
    %3 = vector.load %arg1[%c0_5, %c0_6, %c0_7] : memref<4x64x128xbf16, #tpu.memory_space<vmem>>, vector<1x64x128xbf16>
    %4 = vector.shape_cast %3 : vector<1x64x128xbf16> to vector<64x128xbf16>
    %cst = arith.constant dense<0.000000e+00> : vector<64x128xf32>
    %5 = tpu.matmul %4, %0, %cst {dimension_numbers = #tpu.dot_dimension_numbers<[1], [0], [0], [1], [0, 0, 1, 1], [], []>} : vector<64x128xbf16>, vector<128x128xbf16>, vector<64x128xf32> -> vector<64x128xf32>
    %6 = vector.broadcast %1 : vector<1x128xf32> to vector<64x128xf32>
    %7 = arith.mulf %5, %6 : vector<64x128xf32>
    %8 = vector.broadcast %2 : vector<1x128xf32> to vector<64x128xf32>
    %9 = arith.addf %7, %8 : vector<64x128xf32>
    %10 = math.tanh %9 : vector<64x128xf32>
    %c1 = arith.constant 1 : index
    %c0_8 = arith.constant 0 : index
    %c0_9 = arith.constant 0 : index
    %11 = vector.load %arg1[%c1, %c0_8, %c0_9] : memref<4x64x128xbf16, #tpu.memory_space<vmem>>, vector<1x64x128xbf16>
    %12 = vector.shape_cast %11 : vector<1x64x128xbf16> to vector<64x128xbf16>
    %cst_10 = arith.constant dense<0.000000e+00> : vector<64x128xf32>
    %13 = tpu.matmul %12, %0, %cst_10 {dimension_numbers = #tpu.dot_dimension_numbers<[1], [0], [0], [1], [0, 0, 1, 1], [], []>} : vector<64x128xbf16>, vector<128x128xbf16>, vector<64x128xf32> -> vector<64x128xf32>
    %14 = vector.broadcast %1 : vector<1x128xf32> to vector<64x128xf32>
    %15 = arith.mulf %13, %14 : vector<64x128xf32>
    %16 = vector.broadcast %2 : vector<1x128xf32> to vector<64x128xf32>
    %17 = arith.addf %15, %16 : vector<64x128xf32>
    %18 = math.tanh %17 : vector<64x128xf32>
    %19 = arith.maximumf %10, %18 : vector<64x128xf32>
    %c2 = arith.constant 2 : index
    %c0_11 = arith.constant 0 : index
    %c0_12 = arith.constant 0 : index
    %20 = vector.load %arg1[%c2, %c0_11, %c0_12] : memref<4x64x128xbf16, #tpu.memory_space<vmem>>, vector<1x64x128xbf16>
    %21 = vector.shape_cast %20 : vector<1x64x128xbf16> to vector<64x128xbf16>
    %cst_13 = arith.constant dense<0.000000e+00> : vector<64x128xf32>
    %22 = tpu.matmul %21, %0, %cst_13 {dimension_numbers = #tpu.dot_dimension_numbers<[1], [0], [0], [1], [0, 0, 1, 1], [], []>} : vector<64x128xbf16>, vector<128x128xbf16>, vector<64x128xf32> -> vector<64x128xf32>
    %23 = vector.broadcast %1 : vector<1x128xf32> to vector<64x128xf32>
    %24 = arith.mulf %22, %23 : vector<64x128xf32>
    %25 = vector.broadcast %2 : vector<1x128xf32> to vector<64x128xf32>
    %26 = arith.addf %24, %25 : vector<64x128xf32>
    %27 = math.tanh %26 : vector<64x128xf32>
    %c3 = arith.constant 3 : index
    %c0_14 = arith.constant 0 : index
    %c0_15 = arith.constant 0 : index
    %28 = vector.load %arg1[%c3, %c0_14, %c0_15] : memref<4x64x128xbf16, #tpu.memory_space<vmem>>, vector<1x64x128xbf16>
    %29 = vector.shape_cast %28 : vector<1x64x128xbf16> to vector<64x128xbf16>
    %cst_16 = arith.constant dense<0.000000e+00> : vector<64x128xf32>
    %30 = tpu.matmul %29, %0, %cst_16 {dimension_numbers = #tpu.dot_dimension_numbers<[1], [0], [0], [1], [0, 0, 1, 1], [], []>} : vector<64x128xbf16>, vector<128x128xbf16>, vector<64x128xf32> -> vector<64x128xf32>
    %31 = vector.broadcast %1 : vector<1x128xf32> to vector<64x128xf32>
    %32 = arith.mulf %30, %31 : vector<64x128xf32>
    %33 = vector.broadcast %2 : vector<1x128xf32> to vector<64x128xf32>
    %34 = arith.addf %32, %33 : vector<64x128xf32>
    %35 = math.tanh %34 : vector<64x128xf32>
    %36 = arith.maximumf %27, %35 : vector<64x128xf32>
    %37 = arith.maximumf %19, %36 : vector<64x128xf32>
    %38 = arith.truncf %37 : vector<64x128xf32> to vector<64x128xbf16>
    %c0_17 = arith.constant 0 : index
    %c0_18 = arith.constant 0 : index
    %39 = vector.load %arg5[%c0_17, %c0_18] : memref<64x128xbf16, #tpu.memory_space<vmem>>, vector<64x128xbf16>
    tpu.vector_store %arg5[%c0_17, %c0_18], %38 {strides = array<i32>} : memref<64x128xbf16, #tpu.memory_space<vmem>>, vector<64x128xbf16>,
    return
  }
  func.func @transform_0(%arg0: i32) -> (i32, i32, i32) {
    %c0_i32 = arith.constant 0 : i32
    %c0_i32_0 = arith.constant 0 : i32
    %c0_i32_1 = arith.constant 0 : i32
    return %c0_i32, %arg0, %c0_i32_0 : i32, i32, i32
  }
  func.func @transform_1(%arg0: i32) -> (i32, i32) {
    %c0_i32 = arith.constant 0 : i32
    %c0_i32_0 = arith.constant 0 : i32
    %c0_i32_1 = arith.constant 0 : i32
    return %c0_i32, %c0_i32_0 : i32, i32
  }
  func.func @transform_2(%arg0: i32) -> (i32, i32) {
    %c0_i32 = arith.constant 0 : i32
    %c0_i32_0 = arith.constant 0 : i32
    %c0_i32_1 = arith.constant 0 : i32
    return %c0_i32, %c0_i32_0 : i32, i32
  }
  func.func @transform_3(%arg0: i32) -> (i32, i32) {
    %c0_i32 = arith.constant 0 : i32
    %c0_i32_0 = arith.constant 0 : i32
    %c0_i32_1 = arith.constant 0 : i32
    return %c0_i32, %c0_i32_0 : i32, i32
  }
  func.func @transform_4(%arg0: i32) -> (i32, i32) {
    %c0_i32 = arith.constant 0 : i32
    %c0_i32_0 = arith.constant 0 : i32
    return %arg0, %c0_i32 : i32, i32
  }
}

module attributes {stable_mosaic.version = 11 : i64} {
  func.func @_head_kernel(%arg0: memref<4x16x128xbf16, #tpu.memory_space<vmem>>, %arg1: memref<128x512xf32, #tpu.memory_space<vmem>>, %arg2: memref<1x512xf32, #tpu.memory_space<vmem>>, %arg3: memref<1x512xf32, #tpu.memory_space<vmem>>, %arg4: memref<512x128xf32, #tpu.memory_space<vmem>>, %arg5: memref<1x128xf32, #tpu.memory_space<vmem>>, %arg6: memref<2x128xf32, #tpu.memory_space<vmem>>) attributes {dimension_semantics = [], scalar_prefetch = 0 : i64, scratch_operands = 0 : i64, tpu.core_type = #tpu.core_type<tc>} {
    %c0 = arith.constant 0 : index
    %c0_0 = arith.constant 0 : index
    %c0_1 = arith.constant 0 : index
    %0 = vector.load %arg0[%c0, %c0_0, %c0_1] : memref<4x16x128xbf16, #tpu.memory_space<vmem>>, vector<4x16x128xbf16>
    %1 = arith.extf %0 : vector<4x16x128xbf16> to vector<4x16x128xf32>
    %2 = vector.extract_strided_slice %1 {offsets = [0, 0, 0], sizes = [2, 16, 128], strides = [1, 1, 1]} : vector<4x16x128xf32> to vector<2x16x128xf32>
    %3 = vector.extract_strided_slice %1 {offsets = [2, 0, 0], sizes = [2, 16, 128], strides = [1, 1, 1]} : vector<4x16x128xf32> to vector<2x16x128xf32>
    %4 = arith.addf %2, %3 : vector<2x16x128xf32>
    %cst = arith.constant dense<0.000000e+00> : vector<2x128xf32>
    %5 = vector.multi_reduction <add>, %4, %cst [1] : vector<2x16x128xf32> to vector<2x128xf32>
    %c0_2 = arith.constant 0 : index
    %c0_3 = arith.constant 0 : index
    %6 = vector.load %arg1[%c0_2, %c0_3] : memref<128x512xf32, #tpu.memory_space<vmem>>, vector<128x512xf32>
    %cst_4 = arith.constant dense<0.000000e+00> : vector<2x512xf32>
    %7 = tpu.matmul %5, %6, %cst_4 {dimension_numbers = #tpu.dot_dimension_numbers<[1], [0], [0], [1], [0, 0, 1, 1], [], []>} : vector<2x128xf32>, vector<128x512xf32>, vector<2x512xf32> -> vector<2x512xf32>
    %c0_5 = arith.constant 0 : index
    %c0_6 = arith.constant 0 : index
    %8 = vector.load %arg2[%c0_5, %c0_6] : memref<1x512xf32, #tpu.memory_space<vmem>>, vector<1x512xf32>
    %9 = vector.broadcast %8 : vector<1x512xf32> to vector<2x512xf32>
    %10 = arith.mulf %7, %9 : vector<2x512xf32>
    %c0_7 = arith.constant 0 : index
    %c0_8 = arith.constant 0 : index
    %11 = vector.load %arg3[%c0_7, %c0_8] : memref<1x512xf32, #tpu.memory_space<vmem>>, vector<1x512xf32>
    %12 = vector.broadcast %11 : vector<1x512xf32> to vector<2x512xf32>
    %13 = arith.addf %10, %12 : vector<2x512xf32>
    %14 = math.tanh %13 : vector<2x512xf32>
    %c0_9 = arith.constant 0 : index
    %c0_10 = arith.constant 0 : index
    %15 = vector.load %arg4[%c0_9, %c0_10] : memref<512x128xf32, #tpu.memory_space<vmem>>, vector<512x128xf32>
    %cst_11 = arith.constant dense<0.000000e+00> : vector<2x128xf32>
    %16 = tpu.matmul %14, %15, %cst_11 {dimension_numbers = #tpu.dot_dimension_numbers<[1], [0], [0], [1], [0, 0, 1, 1], [], []>} : vector<2x512xf32>, vector<512x128xf32>, vector<2x128xf32> -> vector<2x128xf32>
    %c0_12 = arith.constant 0 : index
    %c0_13 = arith.constant 0 : index
    %17 = vector.load %arg5[%c0_12, %c0_13] : memref<1x128xf32, #tpu.memory_space<vmem>>, vector<1x128xf32>
    %18 = vector.broadcast %17 : vector<1x128xf32> to vector<2x128xf32>
    %19 = arith.addf %16, %18 : vector<2x128xf32>
    %c0_14 = arith.constant 0 : index
    %c0_15 = arith.constant 0 : index
    %20 = vector.load %arg6[%c0_14, %c0_15] : memref<2x128xf32, #tpu.memory_space<vmem>>, vector<2x128xf32>
    tpu.vector_store %arg6[%c0_14, %c0_15], %19 {strides = array<i32>} : memref<2x128xf32, #tpu.memory_space<vmem>>, vector<2x128xf32>,
    return
  }
}

</mosaic_0001>

<llo_original>
// kernel: getnet_forward.5
$region0: #{getnet_forward.5}
  #allocation0 [shape = 'u32[]', space=smem, size = 0x4, offset = 0x4, fixed_abs, tag = 'smem constant byte address 0x4 - core index']
  #allocation1 [shape = 'u32[144,128]{1,0:T(1,128)}', space=vmem, size = 0x12000, scoped, tag = 'internal scratch']
  %s0 = inlined_call_operand.vmem [shape: bf16[1024,100], index: 0, kind: input, shape index: {}]
  %s1 = inlined_call_operand.vmem [shape: bf16[100,128], index: 1, kind: input, shape index: {}]
  %s2 = inlined_call_operand.vmem [shape: f32[1,128], index: 2, kind: input, shape index: {}]
  %s3 = inlined_call_operand.vmem [shape: f32[1,128], index: 3, kind: input, shape index: {}]
  %s4 = inlined_call_operand.vmem [shape: bf16[1024,128], index: 4, kind: output, shape index: {}]
  %s5 = sld [smem:[#allocation0]]
  $region49: #{getnet_forward.5} parent=0
    _
  %s7 = ssub.s32 1, %s5
  %s8 = scalar_select 0, %s7, %s5
  loop: start=0, step=1, limit=6
  $region2: #{getnet_forward.5} parent=0 // loop_pre_header
    _
  $region3: #{getnet_forward.5} parent=0 // loop_header
    %s10 = sphi 0, %s14
    %p11 = scmp.ge.s32.totalorder %s10, 6
    %s20 = sphi 0, %s22
    %s23 = sphi 0, %s20
    %s24 = sphi 0, %s23
    %s40 = sphi 0, %s24
    %s44 = sphi 0, %s44
    %s46 = sphi 0, %s44
    %s47 = sphi 0, %s46
    %s61 = sphi 0, %s47
    %s65 = sphi 0, %s65
    %s67 = sphi 0, %s65
    %s68 = sphi 0, %s67
    %s82 = sphi 0, %s68
    %s86 = sphi 0, %s86
    %s88 = sphi 0, %s86
    %s89 = sphi 0, %s88
    %s103 = sphi 0, %s89
    %s109 = sphi 0, %s111
    %s112 = sphi 0, %s109
    %s113 = sphi 0, %s112
    %s129 = sphi 0, %s113
  $region4: #{getnet_forward.5} parent=0 // loop_header_branch
    %13 = sbr.rel (%p11) target = $region8
  $region5: #{getnet_forward.5} parent=0 // loop_body
    %s15 = ssub.s32 %s10, 1
    %s16 = ssub.s32 %s10, 2
    %s17 = sadd.s32 %s10, 1
    %s18 = ssub.s32 %s10, %s17
    %p19 = scmp.eq.s32.totalorder %s18, 0
    %s21 = sadd.s32 %s20, 1
    %s22 = scalar_select %p19, %s20, %s21
    %p25 = pneg %p19
    %p26 = scmp.eq.s32.totalorder %s10, 3
    %p27 = por %p25, %p26
    %p28 = scmp.ne.s32.totalorder %s20, %s23
    %p29 = scmp.eq.s32.totalorder %s10, 0
    %p30 = por %p28, %p29
    %p31 = scmp.ne.s32.totalorder %s20, %s23
    %p32 = scmp.eq.s32.totalorder %s15, 3
    %p33 = por %p31, %p32
    %p34 = scmp.ne.s32.totalorder %s23, %s24
    %p35 = scmp.eq.s32.totalorder %s15, 0
    %p36 = por %p34, %p35
    %p37 = scmp.ne.s32.totalorder %s23, %s24
    %p38 = scmp.eq.s32.totalorder %s16, 3
    %p39 = por %p37, %p38
    %p41 = scmp.ne.s32.totalorder %s24, %s40
    %p42 = scmp.eq.s32.totalorder %s16, 0
    %p43 = por %p41, %p42
    %s45 = sadd.s32 %s44, 1
    %p48 = scmp.eq.s32.totalorder %s10, 3
    %p49 = scmp.ne.s32.totalorder %s44, %s46
    %p50 = scmp.eq.s32.totalorder %s10, 0
    %p51 = por %p49, %p50
    %p52 = scmp.ne.s32.totalorder %s44, %s46
    %p53 = scmp.eq.s32.totalorder %s15, 3
    %p54 = por %p52, %p53
    %p55 = scmp.ne.s32.totalorder %s46, %s47
    %p56 = scmp.eq.s32.totalorder %s15, 0
    %p57 = por %p55, %p56
    %p58 = scmp.ne.s32.totalorder %s46, %s47
    %p59 = scmp.eq.s32.totalorder %s16, 3
    %p60 = por %p58, %p59
    %p62 = scmp.ne.s32.totalorder %s47, %s61
    %p63 = scmp.eq.s32.totalorder %s16, 0
    %p64 = por %p62, %p63
    %s66 = sadd.s32 %s65, 1
    %p69 = scmp.eq.s32.totalorder %s10, 3
    %p70 = scmp.ne.s32.totalorder %s65, %s67
    %p71 = scmp.eq.s32.totalorder %s10, 0
    %p72 = por %p70, %p71
    %p73 = scmp.ne.s32.totalorder %s65, %s67
    %p74 = scmp.eq.s32.totalorder %s15, 3
    %p75 = por %p73, %p74
    %p76 = scmp.ne.s32.totalorder %s67, %s68
    %p77 = scmp.eq.s32.totalorder %s15, 0
    %p78 = por %p76, %p77
    %p79 = scmp.ne.s32.totalorder %s67, %s68
    %p80 = scmp.eq.s32.totalorder %s16, 3
    %p81 = por %p79, %p80
    %p83 = scmp.ne.s32.totalorder %s68, %s82
    %p84 = scmp.eq.s32.totalorder %s16, 0
    %p85 = por %p83, %p84
    %s87 = sadd.s32 %s86, 1
    %p90 = scmp.eq.s32.totalorder %s10, 3
    %p91 = scmp.ne.s32.totalorder %s86, %s88
    %p92 = scmp.eq.s32.totalorder %s10, 0
    %p93 = por %p91, %p92
    %p94 = scmp.ne.s32.totalorder %s86, %s88
    %p95 = scmp.eq.s32.totalorder %s15, 3
    %p96 = por %p94, %p95
    %p97 = scmp.ne.s32.totalorder %s88, %s89
    %p98 = scmp.eq.s32.totalorder %s15, 0
    %p99 = por %p97, %p98
    %p100 = scmp.ne.s32.totalorder %s88, %s89
    %p101 = scmp.eq.s32.totalorder %s16, 3
    %p102 = por %p100, %p101
    %p104 = scmp.ne.s32.totalorder %s89, %s103
    %p105 = scmp.eq.s32.totalorder %s16, 0
    %p106 = por %p104, %p105
    %s107 = ssub.s32 %s10, %s17
    %p108 = scmp.eq.s32.totalorder %s107, 0
    %s110 = sadd.s32 %s109, 1
    %s111 = scalar_select %p108, %s109, %s110
    %p114 = pneg %p108
    %p115 = scmp.eq.s32.totalorder %s10, 3
    %p116 = por %p114, %p115
    %p117 = scmp.ne.s32.totalorder %s109, %s112
    %p118 = scmp.eq.s32.totalorder %s10, 0
    %p119 = por %p117, %p118
    %p120 = scmp.ne.s32.totalorder %s109, %s112
    %p121 = scmp.eq.s32.totalorder %s15, 3
    %p122 = por %p120, %p121
    %p123 = scmp.ne.s32.totalorder %s112, %s113
    %p124 = scmp.eq.s32.totalorder %s15, 0
    %p125 = por %p123, %p124
    %p126 = scmp.ne.s32.totalorder %s112, %s113
    %p127 = scmp.eq.s32.totalorder %s16, 3
    %p128 = por %p126, %p127
    %p130 = scmp.ne.s32.totalorder %s113, %s129
    %p131 = scmp.eq.s32.totalorder %s16, 0
    %p132 = por %p130, %p131
    %p133 = scmp.le.s32.totalorder 1, %s10
    %p134 = scmp.lt.s32.totalorder %s10, 5
    %p135 = pnand %p133, %p134
    %p136 = pneg %p135
    // Predicated region
    $region9: #{getnet_forward.5} parent=5 // pred_check
      _
    $region10: #{getnet_forward.5} parent=5 // pred_check_branch
      %138 = sbr.rel (%p135) target = $region12
    $region11: #{getnet_forward.5} parent=5 // pred_region
      %s139 = ssub.s32 %s10, 1
      // Predicated region
      $region13: #{getnet_forward.5} parent=11 // pred_check
        %p140 = pneg %p57
      $region14: #{getnet_forward.5} parent=11 // pred_check_branch
        %142 = sbr.rel (%p140) target = $region16
      $region15: #{getnet_forward.5} parent=11 // pred_region
        _
      $region16: #{getnet_forward.5} parent=11 // pred_fallthru
        _
      // Predicated region
      $region17: #{getnet_forward.5} parent=11 // pred_check
        %p143 = pneg %p78
      $region18: #{getnet_forward.5} parent=11 // pred_check_branch
        %145 = sbr.rel (%p143) target = $region20
      $region19: #{getnet_forward.5} parent=11 // pred_region
        _
      $region20: #{getnet_forward.5} parent=11 // pred_fallthru
        _
      // Predicated region
      $region21: #{getnet_forward.5} parent=11 // pred_check
        %p146 = pneg %p99
      $region22: #{getnet_forward.5} parent=11 // pred_check_branch
        %148 = sbr.rel (%p146) target = $region24
      $region23: #{getnet_forward.5} parent=11 // pred_region
        _
      $region24: #{getnet_forward.5} parent=11 // pred_fallthru
        _
    $region12: #{getnet_forward.5} parent=5 // pred_fallthru
      _
    %p149 = scmp.lt.s32.totalorder %s10, 4
    // Predicated region
    $region25: #{getnet_forward.5} parent=5 // pred_check
      %p150 = pneg %p149
    $region26: #{getnet_forward.5} parent=5 // pred_check_branch
      %152 = sbr.rel (%p150) target = $region28
    $region27: #{getnet_forward.5} parent=5 // pred_region
      // Predicated region
      $region29: #{getnet_forward.5} parent=27 // pred_check
        %p153 = pneg %p30
      $region30: #{getnet_forward.5} parent=27 // pred_check_branch
        %155 = sbr.rel (%p153) target = $region32
      $region31: #{getnet_forward.5} parent=27 // pred_region
        %s156 = smul.u32 32, %s10
        %p157 = scmp.lt.s32.totalorder %s156, 127
        %s158 = scalar_select %p157, %s156, 127
        %s159 = smul.addr %s158, 4
        %s160 = scalar_lea.vmem %s0, %s159
        %s161 = smul.u32 32, %s10
      $region32: #{getnet_forward.5} parent=27 // pred_fallthru
        _
    $region28: #{getnet_forward.5} parent=5 // pred_fallthru
      _
    %p162 = scmp.le.s32.totalorder 1, %s10
    %p163 = scmp.lt.s32.totalorder %s10, 5
    %p164 = pnand %p162, %p163
    %p165 = pneg %p164
    // Predicated region
    $region33: #{getnet_forward.5} parent=5 // pred_check
      _
    $region34: #{getnet_forward.5} parent=5 // pred_check_branch
      %167 = sbr.rel (%p164) target = $region36
    $region35: #{getnet_forward.5} parent=5 // pred_region
      %s168 = ssub.s32 %s10, 1
      %s169 = smul.u32 32, %s15
      %p170 = scmp.lt.s32.totalorder %s169, 127
      %s171 = scalar_select %p170, %s169, 127
      %s172 = smul.addr %s171, 4
      %s173 = scalar_lea.vmem %s0, %s172
      %p174 = pneg %p36
      %p175 = pneg %p33
      %p176 = pneg %p57
      %p177 = pneg %p54
      %p178 = pneg %p78
      %p179 = pneg %p75
      %p180 = pneg %p99
      %p181 = pneg %p96
      %p182 = pneg %p125
      %p183 = pneg %p122
      %s184 = smul.u32 32, %s15
      %p185 = scmp.lt.s32.totalorder %s184, 127
      %s186 = scalar_select %p185, %s184, 127
      %s187 = smul.addr %s186, 4
      %s188 = scalar_lea.vmem %s4, %s187
      %s189 = smul.u32 32, %s15
      %p190 = scmp.lt.s32.totalorder %s189, 127
      %s191 = scalar_select %p190, %s189, 127
      %s192 = smul.addr %s191, 4
      %s193 = scalar_lea.vmem %s0, %s192
      %s194 = smul.u32 32, %s15
      %s195 = smul.u32 32, %s15
      %p196 = scmp.lt.s32.totalorder %s195, 127
      %s197 = scalar_select %p196, %s195, 127
      %s198 = smul.addr %s197, 4
      %s199 = scalar_lea.vmem %s4, %s198
      %s200 = smul.u32 32, %s15
      %v202 = vld [vmem:[%s193] sm:$0xf]
      %v203 = vld [vmem:[%s193 + $0x4] sm:$0xf]
      %v204 = vld [vmem:[%s193 + $0x8] sm:$0xf]
      %v205 = vld [vmem:[%s193 + $0xc] sm:$0xf]
      %v206 = vld [vmem:[%s193 + $0x10] sm:$0xf]
      %v207 = vld [vmem:[%s193 + $0x14] sm:$0xf]
      %v208 = vld [vmem:[%s193 + $0x18] sm:$0xf]
      %v209 = vld [vmem:[%s193 + $0x1c] sm:$0xf]
      %v210 = vld [vmem:[%s193 + $0x20] sm:$0xf]
      %v211 = vld [vmem:[%s193 + $0x24] sm:$0xf]
      %v212 = vld [vmem:[%s193 + $0x28] sm:$0xf]
      %v213 = vld [vmem:[%s193 + $0x2c] sm:$0xf]
      %v214 = vld [vmem:[%s193 + $0x30] sm:$0xf]
      %v215 = vld [vmem:[%s193 + $0x34] sm:$0xf]
      %v216 = vld [vmem:[%s193 + $0x38] sm:$0xf]
      %v217 = vld [vmem:[%s193 + $0x3c] sm:$0xf]
      %v218 = vld [vmem:[%s193 + $0x40] sm:$0xf]
      %v219 = vld [vmem:[%s193 + $0x44] sm:$0xf]
      %v220 = vld [vmem:[%s193 + $0x48] sm:$0xf]
      %v221 = vld [vmem:[%s193 + $0x4c] sm:$0xf]
      %v222 = vld [vmem:[%s193 + $0x50] sm:$0xf]
      %v223 = vld [vmem:[%s193 + $0x54] sm:$0xf]
      %v224 = vld [vmem:[%s193 + $0x58] sm:$0xf]
      %v225 = vld [vmem:[%s193 + $0x5c] sm:$0xf]
      %v226 = vld [vmem:[%s193 + $0x60] sm:$0xf]
      %v227 = vld [vmem:[%s193 + $0x64] sm:$0xf]
      %v228 = vld [vmem:[%s193 + $0x68] sm:$0xf]
      %v229 = vld [vmem:[%s193 + $0x6c] sm:$0xf]
      %v230 = vld [vmem:[%s193 + $0x70] sm:$0xf]
      %v231 = vld [vmem:[%s193 + $0x74] sm:$0xf]
      %v232 = vld [vmem:[%s193 + $0x78] sm:$0xf]
      %v233 = vld [vmem:[%s193 + $0x7c] sm:$0xf]
      %v234 = vld [vmem:[%s1] sm:$0xf]
      %v235 = vld [vmem:[%s1 + $0x4] sm:$0xf]
      %v236 = vld [vmem:[%s1 + $0x8] sm:$0xf]
      %v237 = vld [vmem:[%s1 + $0xc] sm:$0xf]
      %v238 = vld [vmem:[%s1 + $0x10] sm:$0xf]
      %v239 = vld [vmem:[%s1 + $0x14] sm:$0xf]
      %v240 = vld [vmem:[%s1 + $0x18] sm:$0xf]
      %v241 = vld [vmem:[%s1 + $0x1c] sm:$0xf]
      %v242 = vld [vmem:[%s1 + $0x20] sm:$0xf]
      %v243 = vld [vmem:[%s1 + $0x24] sm:$0xf]
      %v244 = vld [vmem:[%s1 + $0x28] sm:$0xf]
      %v245 = vld [vmem:[%s1 + $0x2c] sm:$0xf]
      %v246 = vld [vmem:[%s1 + $0x30] sm:$0x3]
      %v279 = vunpack.c.l.b16 %v202
      %v280 = vunpack.c.l.b16 %v203
      %v281 = vunpack.c.l.b16 %v204
      %v282 = vunpack.c.l.b16 %v205
      %v283 = vunpack.c.l.b16 %v206
      %v284 = vunpack.c.l.b16 %v207
      %v285 = vunpack.c.l.b16 %v208
      %v286 = vunpack.c.l.b16 %v209
      %v287 = vunpack.c.l.b16 %v210
      %v288 = vunpack.c.l.b16 %v211
      %v289 = vunpack.c.l.b16 %v212
      %v290 = vunpack.c.l.b16 %v213
      %v291 = vunpack.c.l.b16 %v214
      %v292 = vunpack.c.l.b16 %v215
      %v293 = vunpack.c.l.b16 %v216
      %v294 = vunpack.c.l.b16 %v217
      %v295 = vunpack.c.l.b16 %v218
      %v296 = vunpack.c.l.b16 %v219
      %v297 = vunpack.c.l.b16 %v220
      %v298 = vunpack.c.l.b16 %v221
      %v299 = vunpack.c.l.b16 %v222
      %v300 = vunpack.c.l.b16 %v223
      %v301 = vunpack.c.l.b16 %v224
      %v302 = vunpack.c.l.b16 %v225
      %v303 = vunpack.c.l.b16 %v226
      %v304 = vunpack.c.l.b16 %v227
      %v305 = vunpack.c.l.b16 %v228
      %v306 = vunpack.c.l.b16 %v229
      %v307 = vunpack.c.l.b16 %v230
      %v308 = vunpack.c.l.b16 %v231
      %v309 = vunpack.c.l.b16 %v232
      %v310 = vunpack.c.l.b16 %v233
      %v311 = vpack.c.b16 %v280, %v279
      %v312 = vpack.c.b16 %v282, %v281
      %v313 = vpack.c.b16 %v284, %v283
      %v314 = vpack.c.b16 %v286, %v285
      %v315 = vpack.c.b16 %v288, %v287
      %v316 = vpack.c.b16 %v290, %v289
      %v317 = vpack.c.b16 %v292, %v291
      %v318 = vpack.c.b16 %v294, %v293
      %v319 = vpack.c.b16 %v296, %v295
      %v320 = vpack.c.b16 %v298, %v297
      %v321 = vpack.c.b16 %v300, %v299
      %v322 = vpack.c.b16 %v302, %v301
      %v323 = vpack.c.b16 %v304, %v303
      %v324 = vpack.c.b16 %v306, %v305
      %v325 = vpack.c.b16 %v308, %v307
      %v326 = vpack.c.b16 %v310, %v309
      %v340 = vunpack.c.l.b16 %v234
      %v341 = vunpack.c.l.b16 %v235
      %v342 = vunpack.c.l.b16 %v236
      %v343 = vunpack.c.l.b16 %v237
      %v344 = vunpack.c.l.b16 %v238
      %v345 = vunpack.c.l.b16 %v239
      %v346 = vunpack.c.l.b16 %v240
      %v347 = vunpack.c.l.b16 %v241
      %v348 = vunpack.c.l.b16 %v242
      %v349 = vunpack.c.l.b16 %v243
      %v350 = vunpack.c.l.b16 %v244
      %v351 = vunpack.c.l.b16 %v245
      %v352 = vunpack.c.l.b16 %v246
      %v353 = vpack.c.b16 %v341, %v340
      %v354 = vpack.c.b16 %v343, %v342
      %v355 = vpack.c.b16 %v345, %v344
      %v356 = vpack.c.b16 %v347, %v346
      %v357 = vpack.c.b16 %v349, %v348
      %v358 = vpack.c.b16 %v351, %v350
      %v359 = vpack.c.b16 %v352, %v352
      %vm366 = vcmask 818176
      %v368 = vsel %vm366, %v311, 0
      %v371 = vsel %vm366, %v312, 0
      %v374 = vsel %vm366, %v313, 0
      %v377 = vsel %vm366, %v314, 0
      %v380 = vsel %vm366, %v315, 0
      %v383 = vsel %vm366, %v316, 0
      %v386 = vsel %vm366, %v317, 0
      %v389 = vsel %vm366, %v318, 0
      %v392 = vsel %vm366, %v319, 0
      %v395 = vsel %vm366, %v320, 0
      %v398 = vsel %vm366, %v321, 0
      %v401 = vsel %vm366, %v322, 0
      %v404 = vsel %vm366, %v323, 0
      %v407 = vsel %vm366, %v324, 0
      %v410 = vsel %vm366, %v325, 0
      %v413 = vsel %vm366, %v326, 0
      %vm415 = vcmask 1041408
      %v417 = vsel %vm415, %v359, 0
      %419 = vmatprep.subr.bf16.mxu0 0
      %420 = vmatpush1.bf16.msra.mxu0 0
      %421 = vmatprep.subr.bf16.mxu0 0
      %422 = vmatpush1.bf16.msra.mxu0 %v417
      %423 = vmatprep.subr.bf16.mxu0 0
      %424 = vmatpush1.bf16.msra.mxu0 %v358
      %425 = vmatprep.subr.bf16.mxu0 0
      %426 = vmatpush1.bf16.msra.mxu0 %v357
      %427 = vmatprep.subr.bf16.mxu0 0
      %428 = vmatpush1.bf16.msra.mxu0 %v356
      %429 = vmatprep.subr.bf16.mxu0 0
      %430 = vmatpush1.bf16.msra.mxu0 %v355
      %431 = vmatprep.subr.bf16.mxu0 0
      %432 = vmatpush1.bf16.msra.mxu0 %v354
      %433 = vmatprep.subr.bf16.mxu0 0
      %434 = vmatpush1.bf16.msra.mxu0 %v353
      %435 = vmatprep.subr.bf16.mxu0 0
      %436 = vmatpush2.bf16.msra.mxu0 0
      %437 = vmatprep.subr.bf16.mxu0 0
      %438 = vmatpush2.bf16.msra.mxu0 0
      %439 = vmatprep.subr.bf16.mxu0 0
      %440 = vmatpush2.bf16.msra.mxu0 0
      %441 = vmatprep.subr.bf16.mxu0 0
      %442 = vmatpush2.bf16.msra.mxu0 0
      %443 = vmatprep.subr.bf16.mxu0 0
      %444 = vmatpush2.bf16.msra.mxu0 0
      %445 = vmatprep.subr.bf16.mxu0 0
      %446 = vmatpush2.bf16.msra.mxu0 0
      %447 = vmatprep.subr.bf16.mxu0 0
      %448 = vmatpush2.bf16.msra.mxu0 0
      %449 = vmatprep.subr.bf16.mxu0 0
      %450 = vmatpush2.bf16.msra.mxu0 0
      %451 = vmatprep.mubr.bf16.mxu0 0
      %452 = vmatmul.mubr.bf16.gmra.mxu0 %v368
      %v453 = vpop.f32.mrf.mxu0
      %v454 = vadd.f32 0.0, %v453
      %v455 = vpop.f32.mrf.mxu0
      %v456 = vpop.f32.mrf.mxu0
      %v457 = vadd.f32 0.0, %v456
      %v458 = vpop.f32.mrf.mxu0
      %459 = vmatprep.mubr.bf16.mxu0 0
      %460 = vmatmul.mubr.bf16.gmra.mxu0 %v371
      %v461 = vpop.f32.mrf.mxu0
      %v462 = vadd.f32 0.0, %v461
      %v463 = vpop.f32.mrf.mxu0
      %v464 = vpop.f32.mrf.mxu0
      %v465 = vadd.f32 0.0, %v464
      %v466 = vpop.f32.mrf.mxu0
      %467 = vmatprep.mubr.bf16.mxu0 0
      %468 = vmatmul.mubr.bf16.gmra.mxu0 %v374
      %v469 = vpop.f32.mrf.mxu0
      %v470 = vadd.f32 0.0, %v469
      %v471 = vpop.f32.mrf.mxu0
      %v472 = vpop.f32.mrf.mxu0
      %v473 = vadd.f32 0.0, %v472
      %v474 = vpop.f32.mrf.mxu0
      %475 = vmatprep.mubr.bf16.mxu0 0
      %476 = vmatmul.mubr.bf16.gmra.mxu0 %v377
      %v477 = vpop.f32.mrf.mxu0
      %v478 = vadd.f32 0.0, %v477
      %v479 = vpop.f32.mrf.mxu0
      %v480 = vpop.f32.mrf.mxu0
      %v481 = vadd.f32 0.0, %v480
      %v482 = vpop.f32.mrf.mxu0
      %483 = vmatprep.mubr.bf16.mxu0 0
      %484 = vmatmul.mubr.bf16.gmra.mxu0 %v380
      %v485 = vpop.f32.mrf.mxu0
      %v486 = vadd.f32 0.0, %v485
      %v487 = vpop.f32.mrf.mxu0
      %v488 = vpop.f32.mrf.mxu0
      %v489 = vadd.f32 0.0, %v488
      %v490 = vpop.f32.mrf.mxu0
      %491 = vmatprep.mubr.bf16.mxu0 0
      %492 = vmatmul.mubr.bf16.gmra.mxu0 %v383
      %v493 = vpop.f32.mrf.mxu0
      %v494 = vadd.f32 0.0, %v493
      %v495 = vpop.f32.mrf.mxu0
      %v496 = vpop.f32.mrf.mxu0
      %v497 = vadd.f32 0.0, %v496
      %v498 = vpop.f32.mrf.mxu0
      %499 = vmatprep.mubr.bf16.mxu0 0
      %500 = vmatmul.mubr.bf16.gmra.mxu0 %v386
      %v501 = vpop.f32.mrf.mxu0
      %v502 = vadd.f32 0.0, %v501
      %v503 = vpop.f32.mrf.mxu0
      %v504 = vpop.f32.mrf.mxu0
      %v505 = vadd.f32 0.0, %v504
      %v506 = vpop.f32.mrf.mxu0
      %507 = vmatprep.mubr.bf16.mxu0 0
      %508 = vmatmul.mubr.bf16.gmra.mxu0 %v389
      %v509 = vpop.f32.mrf.mxu0
      %v510 = vadd.f32 0.0, %v509
      %v511 = vpop.f32.mrf.mxu0
      %v512 = vpop.f32.mrf.mxu0
      %v513 = vadd.f32 0.0, %v512
      %v514 = vpop.f32.mrf.mxu0
      %515 = vmatprep.mubr.bf16.mxu0 0
      %516 = vmatmul.mubr.bf16.gmra.mxu0 %v392
      %v517 = vpop.f32.mrf.mxu0
      %v518 = vadd.f32 0.0, %v517
      %v519 = vpop.f32.mrf.mxu0
      %v520 = vpop.f32.mrf.mxu0
      %v521 = vadd.f32 0.0, %v520
      %v522 = vpop.f32.mrf.mxu0
      %523 = vmatprep.mubr.bf16.mxu0 0
      %524 = vmatmul.mubr.bf16.gmra.mxu0 %v395
      %v525 = vpop.f32.mrf.mxu0
      %v526 = vadd.f32 0.0, %v525
      %v527 = vpop.f32.mrf.mxu0
      %v528 = vpop.f32.mrf.mxu0
      %v529 = vadd.f32 0.0, %v528
      %v530 = vpop.f32.mrf.mxu0
      %531 = vmatprep.mubr.bf16.mxu0 0
      %532 = vmatmul.mubr.bf16.gmra.mxu0 %v398
      %v533 = vpop.f32.mrf.mxu0
      %v534 = vadd.f32 0.0, %v533
      %v535 = vpop.f32.mrf.mxu0
      %v536 = vpop.f32.mrf.mxu0
      %v537 = vadd.f32 0.0, %v536
      %v538 = vpop.f32.mrf.mxu0
      %539 = vmatprep.mubr.bf16.mxu0 0
      %540 = vmatmul.mubr.bf16.gmra.mxu0 %v401
      %v541 = vpop.f32.mrf.mxu0
      %v542 = vadd.f32 0.0, %v541
      %v543 = vpop.f32.mrf.mxu0
      %v544 = vpop.f32.mrf.mxu0
      %v545 = vadd.f32 0.0, %v544
      %v546 = vpop.f32.mrf.mxu0
      %547 = vmatprep.mubr.bf16.mxu0 0
      %548 = vmatmul.mubr.bf16.gmra.mxu0 %v404
      %v549 = vpop.f32.mrf.mxu0
      %v550 = vadd.f32 0.0, %v549
      %v551 = vpop.f32.mrf.mxu0
      %v552 = vpop.f32.mrf.mxu0
      %v553 = vadd.f32 0.0, %v552
      %v554 = vpop.f32.mrf.mxu0
      %555 = vmatprep.mubr.bf16.mxu0 0
      %556 = vmatmul.mubr.bf16.gmra.mxu0 %v407
      %v557 = vpop.f32.mrf.mxu0
      %v558 = vadd.f32 0.0, %v557
      %v559 = vpop.f32.mrf.mxu0
      %v560 = vpop.f32.mrf.mxu0
      %v561 = vadd.f32 0.0, %v560
      %v562 = vpop.f32.mrf.mxu0
      %563 = vmatprep.mubr.bf16.mxu0 0
      %564 = vmatmul.mubr.bf16.gmra.mxu0 %v410
      %v565 = vpop.f32.mrf.mxu0
      %v566 = vadd.f32 0.0, %v565
      %v567 = vpop.f32.mrf.mxu0
      %v568 = vpop.f32.mrf.mxu0
      %v569 = vadd.f32 0.0, %v568
      %v570 = vpop.f32.mrf.mxu0
      %571 = vmatprep.mubr.bf16.mxu0 0
      %572 = vmatmul.mubr.bf16.gmra.mxu0 %v413
      %v573 = vpop.f32.mrf.mxu0
      %v574 = vadd.f32 0.0, %v573
      %v575 = vpop.f32.mrf.mxu0
      %v576 = vpop.f32.mrf.mxu0
      %v577 = vadd.f32 0.0, %v576
      %v578 = vpop.f32.mrf.mxu0
      %579 = vdwg.mxu0
      %v580 = vld [vmem:[%s2] sm:$0x1]
      %v582 = vlaneseq
      %v583 = vshrl.u32 %v582, 7
      %v584 = vsub.s32 0, %v583
      %v585 = vrot.slane %v580, %v584
      %v587 = vmul.f32 %v454, %v585
      %v588 = vmul.f32 %v457, %v585
      %v589 = vmul.f32 %v462, %v585
      %v590 = vmul.f32 %v465, %v585
      %v591 = vmul.f32 %v470, %v585
      %v592 = vmul.f32 %v473, %v585
      %v593 = vmul.f32 %v478, %v585
      %v594 = vmul.f32 %v481, %v585
      %v595 = vmul.f32 %v486, %v585
      %v596 = vmul.f32 %v489, %v585
      %v597 = vmul.f32 %v494, %v585
      %v598 = vmul.f32 %v497, %v585
      %v599 = vmul.f32 %v502, %v585
      %v600 = vmul.f32 %v505, %v585
      %v601 = vmul.f32 %v510, %v585
      %v602 = vmul.f32 %v513, %v585
      %v603 = vmul.f32 %v518, %v585
      %v604 = vmul.f32 %v521, %v585
      %v605 = vmul.f32 %v526, %v585
      %v606 = vmul.f32 %v529, %v585
      %v607 = vmul.f32 %v534, %v585
      %v608 = vmul.f32 %v537, %v585
      %v609 = vmul.f32 %v542, %v585
      %v610 = vmul.f32 %v545, %v585
      %v611 = vmul.f32 %v550, %v585
      %v612 = vmul.f32 %v553, %v585
      %v613 = vmul.f32 %v558, %v585
      %v614 = vmul.f32 %v561, %v585
      %v615 = vmul.f32 %v566, %v585
      %v616 = vmul.f32 %v569, %v585
      %v617 = vmul.f32 %v574, %v585
      %v618 = vmul.f32 %v577, %v585
      %v619 = vld [vmem:[%s3] sm:$0x1]
      %v621 = vlaneseq
      %v622 = vshrl.u32 %v621, 7
      %v623 = vsub.s32 0, %v622
      %v624 = vrot.slane %v619, %v623
      %v626 = vadd.f32 %v587, %v624
      %v627 = vadd.f32 %v588, %v624
      %v628 = vadd.f32 %v589, %v624
      %v629 = vadd.f32 %v590, %v624
      %v630 = vadd.f32 %v591, %v624
      %v631 = vadd.f32 %v592, %v624
      %v632 = vadd.f32 %v593, %v624
      %v633 = vadd.f32 %v594, %v624
      %v634 = vadd.f32 %v595, %v624
      %v635 = vadd.f32 %v596, %v624
      %v636 = vadd.f32 %v597, %v624
      %v637 = vadd.f32 %v598, %v624
      %v638 = vadd.f32 %v599, %v624
      %v639 = vadd.f32 %v600, %v624
      %v640 = vadd.f32 %v601, %v624
      %v641 = vadd.f32 %v602, %v624
      %v642 = vadd.f32 %v603, %v624
      %v643 = vadd.f32 %v604, %v624
      %v644 = vadd.f32 %v605, %v624
      %v645 = vadd.f32 %v606, %v624
      %v646 = vadd.f32 %v607, %v624
      %v647 = vadd.f32 %v608, %v624
      %v648 = vadd.f32 %v609, %v624
      %v649 = vadd.f32 %v610, %v624
      %v650 = vadd.f32 %v611, %v624
      %v651 = vadd.f32 %v612, %v624
      %v652 = vadd.f32 %v613, %v624
      %v653 = vadd.f32 %v614, %v624
      %v654 = vadd.f32 %v615, %v624
      %v655 = vadd.f32 %v616, %v624
      %v656 = vadd.f32 %v617, %v624
      %v657 = vadd.f32 %v618, %v624
      %v658 = vtanh.pop %v626
      %v659 = vtanh.pop %v627
      %v660 = vtanh.pop %v628
      %v661 = vtanh.pop %v629
      %v662 = vtanh.pop %v630
      %v663 = vtanh.pop %v631
      %v664 = vtanh.pop %v632
      %v665 = vtanh.pop %v633
      %v666 = vtanh.pop %v634
      %v667 = vtanh.pop %v635
      %v668 = vtanh.pop %v636
      %v669 = vtanh.pop %v637
      %v670 = vtanh.pop %v638
      %v671 = vtanh.pop %v639
      %v672 = vtanh.pop %v640
      %v673 = vtanh.pop %v641
      %v674 = vtanh.pop %v642
      %v675 = vtanh.pop %v643
      %v676 = vtanh.pop %v644
      %v677 = vtanh.pop %v645
      %v678 = vtanh.pop %v646
      %v679 = vtanh.pop %v647
      %v680 = vtanh.pop %v648
      %v681 = vtanh.pop %v649
      %v682 = vtanh.pop %v650
      %v683 = vtanh.pop %v651
      %v684 = vtanh.pop %v652
      %v685 = vtanh.pop %v653
      %v686 = vtanh.pop %v654
      %v687 = vtanh.pop %v655
      %v688 = vtanh.pop %v656
      %v689 = vtanh.pop %v657
      %v690 = vpack.c.bf16 %v659, %v658
      %v691 = vpack.c.bf16 %v661, %v660
      %v692 = vpack.c.bf16 %v663, %v662
      %v693 = vpack.c.bf16 %v665, %v664
      %v694 = vpack.c.bf16 %v667, %v666
      %v695 = vpack.c.bf16 %v669, %v668
      %v696 = vpack.c.bf16 %v671, %v670
      %v697 = vpack.c.bf16 %v673, %v672
      %v698 = vpack.c.bf16 %v675, %v674
      %v699 = vpack.c.bf16 %v677, %v676
      %v700 = vpack.c.bf16 %v679, %v678
      %v701 = vpack.c.bf16 %v681, %v680
      %v702 = vpack.c.bf16 %v683, %v682
      %v703 = vpack.c.bf16 %v685, %v684
      %v704 = vpack.c.bf16 %v687, %v686
      %v705 = vpack.c.bf16 %v689, %v688
      %v722 = vunpack.c.l.b16 %v690
      %v723 = vunpack.c.h.b16 %v690
      %v724 = vunpack.c.l.b16 %v691
      %v725 = vunpack.c.h.b16 %v691
      %v726 = vunpack.c.l.b16 %v692
      %v727 = vunpack.c.h.b16 %v692
      %v728 = vunpack.c.l.b16 %v693
      %v729 = vunpack.c.h.b16 %v693
      %v730 = vunpack.c.l.b16 %v694
      %v731 = vunpack.c.h.b16 %v694
      %v732 = vunpack.c.l.b16 %v695
      %v733 = vunpack.c.h.b16 %v695
      %v734 = vunpack.c.l.b16 %v696
      %v735 = vunpack.c.h.b16 %v696
      %v736 = vunpack.c.l.b16 %v697
      %v737 = vunpack.c.h.b16 %v697
      %v738 = vunpack.c.l.b16 %v698
      %v739 = vunpack.c.h.b16 %v698
      %v740 = vunpack.c.l.b16 %v699
      %v741 = vunpack.c.h.b16 %v699
      %v742 = vunpack.c.l.b16 %v700
      %v743 = vunpack.c.h.b16 %v700
      %v744 = vunpack.c.l.b16 %v701
      %v745 = vunpack.c.h.b16 %v701
      %v746 = vunpack.c.l.b16 %v702
      %v747 = vunpack.c.h.b16 %v702
      %v748 = vunpack.c.l.b16 %v703
      %v749 = vunpack.c.h.b16 %v703
      %v750 = vunpack.c.l.b16 %v704
      %v751 = vunpack.c.h.b16 %v704
      %v752 = vunpack.c.l.b16 %v705
      %v753 = vunpack.c.h.b16 %v705
      %v754 = vpack.c.b16 %v722, %v722
      %v755 = vpack.c.b16 %v723, %v723
      %v756 = vpack.c.b16 %v724, %v724
      %v757 = vpack.c.b16 %v725, %v725
      %v758 = vpack.c.b16 %v726, %v726
      %v759 = vpack.c.b16 %v727, %v727
      %v760 = vpack.c.b16 %v728, %v728
      %v761 = vpack.c.b16 %v729, %v729
      %v762 = vpack.c.b16 %v730, %v730
      %v763 = vpack.c.b16 %v731, %v731
      %v764 = vpack.c.b16 %v732, %v732
      %v765 = vpack.c.b16 %v733, %v733
      %v766 = vpack.c.b16 %v734, %v734
      %v767 = vpack.c.b16 %v735, %v735
      %v768 = vpack.c.b16 %v736, %v736
      %v769 = vpack.c.b16 %v737, %v737
      %v770 = vpack.c.b16 %v738, %v738
      %v771 = vpack.c.b16 %v739, %v739
      %v772 = vpack.c.b16 %v740, %v740
      %v773 = vpack.c.b16 %v741, %v741
      %v774 = vpack.c.b16 %v742, %v742
      %v775 = vpack.c.b16 %v743, %v743
      %v776 = vpack.c.b16 %v744, %v744
      %v777 = vpack.c.b16 %v745, %v745
      %v778 = vpack.c.b16 %v746, %v746
      %v779 = vpack.c.b16 %v747, %v747
      %v780 = vpack.c.b16 %v748, %v748
      %v781 = vpack.c.b16 %v749, %v749
      %v782 = vpack.c.b16 %v750, %v750
      %v783 = vpack.c.b16 %v751, %v751
      %v784 = vpack.c.b16 %v752, %v752
      %v785 = vpack.c.b16 %v753, %v753
      %818 = vst [vmem:[%s199] sm:$0xf] %v754
      %819 = vst [vmem:[%s199 + $0x4] sm:$0xf] %v755
      %820 = vst [vmem:[%s199 + $0x8] sm:$0xf] %v756
      %821 = vst [vmem:[%s199 + $0xc] sm:$0xf] %v757
      %822 = vst [vmem:[%s199 + $0x10] sm:$0xf] %v758
      %823 = vst [vmem:[%s199 + $0x14] sm:$0xf] %v759
      %824 = vst [vmem:[%s199 + $0x18] sm:$0xf] %v760
      %825 = vst [vmem:[%s199 + $0x1c] sm:$0xf] %v761
      %826 = vst [vmem:[%s199 + $0x20] sm:$0xf] %v762
      %827 = vst [vmem:[%s199 + $0x24] sm:$0xf] %v763
      %828 = vst [vmem:[%s199 + $0x28] sm:$0xf] %v764
      %829 = vst [vmem:[%s199 + $0x2c] sm:$0xf] %v765
      %830 = vst [vmem:[%s199 + $0x30] sm:$0xf] %v766
      %831 = vst [vmem:[%s199 + $0x34] sm:$0xf] %v767
      %832 = vst [vmem:[%s199 + $0x38] sm:$0xf] %v768
      %833 = vst [vmem:[%s199 + $0x3c] sm:$0xf] %v769
      %834 = vst [vmem:[%s199 + $0x40] sm:$0xf] %v770
      %835 = vst [vmem:[%s199 + $0x44] sm:$0xf] %v771
      %836 = vst [vmem:[%s199 + $0x48] sm:$0xf] %v772
      %837 = vst [vmem:[%s199 + $0x4c] sm:$0xf] %v773
      %838 = vst [vmem:[%s199 + $0x50] sm:$0xf] %v774
      %839 = vst [vmem:[%s199 + $0x54] sm:$0xf] %v775
      %840 = vst [vmem:[%s199 + $0x58] sm:$0xf] %v776
      %841 = vst [vmem:[%s199 + $0x5c] sm:$0xf] %v777
      %842 = vst [vmem:[%s199 + $0x60] sm:$0xf] %v778
      %843 = vst [vmem:[%s199 + $0x64] sm:$0xf] %v779
      %844 = vst [vmem:[%s199 + $0x68] sm:$0xf] %v780
      %845 = vst [vmem:[%s199 + $0x6c] sm:$0xf] %v781
      %846 = vst [vmem:[%s199 + $0x70] sm:$0xf] %v782
      %847 = vst [vmem:[%s199 + $0x74] sm:$0xf] %v783
      %848 = vst [vmem:[%s199 + $0x78] sm:$0xf] %v784
      %849 = vst [vmem:[%s199 + $0x7c] sm:$0xf] %v785
      %s850 = smul.u32 32, %s15
      %p851 = scmp.lt.s32.totalorder %s850, 127
      %s852 = scalar_select %p851, %s850, 127
      %s853 = smul.addr %s852, 4
      %s854 = scalar_lea.vmem %s4, %s853
      // Predicated region
      $region37: #{getnet_forward.5} parent=35 // pred_check
        %p855 = pneg %p122
      $region38: #{getnet_forward.5} parent=35 // pred_check_branch
        %857 = sbr.rel (%p855) target = $region40
      $region39: #{getnet_forward.5} parent=35 // pred_region
        %s858 = smul.u32 32, %s15
      $region40: #{getnet_forward.5} parent=35 // pred_fallthru
        _
    $region36: #{getnet_forward.5} parent=5 // pred_fallthru
      _
    %p859 = scmp.le.s32.totalorder 2, %s10
    // Predicated region
    $region41: #{getnet_forward.5} parent=5 // pred_check
      %p860 = pneg %p859
    $region42: #{getnet_forward.5} parent=5 // pred_check_branch
      %862 = sbr.rel (%p860) target = $region44
    $region43: #{getnet_forward.5} parent=5 // pred_region
      %s863 = ssub.s32 %s10, 2
      // Predicated region
      $region45: #{getnet_forward.5} parent=43 // pred_check
        %p864 = pneg %p128
      $region46: #{getnet_forward.5} parent=43 // pred_check_branch
        %866 = sbr.rel (%p864) target = $region48
      $region47: #{getnet_forward.5} parent=43 // pred_region
        %s867 = smul.u32 32, %s16
        %p868 = scmp.lt.s32.totalorder %s867, 127
        %s869 = scalar_select %p868, %s867, 127
        %s870 = smul.addr %s869, 4
        %s871 = scalar_lea.vmem %s4, %s870
      $region48: #{getnet_forward.5} parent=43 // pred_fallthru
        _
    $region44: #{getnet_forward.5} parent=5 // pred_fallthru
      _
  $region6: #{getnet_forward.5} parent=0 // loop_footer
    %s14 = sadd.s32 1, %s10
  $region7: #{getnet_forward.5} parent=0 // loop_footer_branch
    %9 = sbr.rel target = $region3
  $region8: #{getnet_forward.5} parent=0 // loop_exit
    _

// kernel: getnet_forward.6
$region0: #{getnet_forward.6}
  #allocation0 [shape = 'u32[]', space=smem, size = 0x4, offset = 0x4, fixed_abs, tag = 'smem constant byte address 0x4 - core index']
  #allocation1 [shape = 'u32[144,128]{1,0:T(1,128)}', space=vmem, size = 0x12000, scoped, tag = 'internal scratch']
  %s0 = inlined_call_operand.vmem [shape: bf16[4,256,288], index: 0, kind: input, shape index: {}]
  %s1 = inlined_call_operand.vmem [shape: bf16[288,128], index: 1, kind: input, shape index: {}]
  %s2 = inlined_call_operand.vmem [shape: f32[1,128], index: 2, kind: input, shape index: {}]
  %s3 = inlined_call_operand.vmem [shape: f32[1,128], index: 3, kind: input, shape index: {}]
  %s4 = inlined_call_operand.vmem [shape: bf16[256,128], index: 4, kind: output, shape index: {}]
  %s5 = sld [smem:[#allocation0]]
  $region75: #{getnet_forward.6} parent=0
    _
  %s7 = ssub.s32 1, %s5
  %s8 = scalar_select 0, %s7, %s5
  $region1: #{getnet_forward.6} parent=0
    #allocation2 [shape = 'u8[786432]{0}', space=vmem, size = 0xc0000, scoped, tag = 'input window, operand 0']
    loop: start=0, step=1, limit=4
    $region2: #{getnet_forward.6} parent=1 // loop_pre_header
      _
    $region3: #{getnet_forward.6} parent=1 // loop_header
      %s10 = sphi 0, %s14
      %p11 = scmp.ge.s32.totalorder %s10, 4
      %s20 = sphi 0, %s22
      %s23 = sphi 0, %s20
      %s24 = sphi 0, %s23
      %s40 = sphi 0, %s24
      %s44 = sphi 0, %s44
      %s46 = sphi 0, %s44
      %s47 = sphi 0, %s46
      %s61 = sphi 0, %s47
      %s65 = sphi 0, %s65
      %s67 = sphi 0, %s65
      %s68 = sphi 0, %s67
      %s82 = sphi 0, %s68
      %s86 = sphi 0, %s86
      %s88 = sphi 0, %s86
      %s89 = sphi 0, %s88
      %s103 = sphi 0, %s89
      %s109 = sphi 0, %s111
      %s112 = sphi 0, %s109
      %s113 = sphi 0, %s112
      %s129 = sphi 0, %s113
    $region4: #{getnet_forward.6} parent=1 // loop_header_branch
      %13 = sbr.rel (%p11) target = $region8
    $region5: #{getnet_forward.6} parent=1 // loop_body
      %s15 = ssub.s32 %s10, 1
      %s16 = ssub.s32 %s10, 2
      %s17 = sadd.s32 %s10, 1
      %s18 = ssub.s32 %s10, %s17
      %p19 = scmp.eq.s32.totalorder %s18, 0
      %s21 = sadd.s32 %s20, 1
      %s22 = scalar_select %p19, %s20, %s21
      %p25 = pneg %p19
      %p26 = scmp.eq.s32.totalorder %s10, 1
      %p27 = por %p25, %p26
      %p28 = scmp.ne.s32.totalorder %s20, %s23
      %p29 = scmp.eq.s32.totalorder %s10, 0
      %p30 = por %p28, %p29
      %p31 = scmp.ne.s32.totalorder %s20, %s23
      %p32 = scmp.eq.s32.totalorder %s15, 1
      %p33 = por %p31, %p32
      %p34 = scmp.ne.s32.totalorder %s23, %s24
      %p35 = scmp.eq.s32.totalorder %s15, 0
      %p36 = por %p34, %p35
      %p37 = scmp.ne.s32.totalorder %s23, %s24
      %p38 = scmp.eq.s32.totalorder %s16, 1
      %p39 = por %p37, %p38
      %p41 = scmp.ne.s32.totalorder %s24, %s40
      %p42 = scmp.eq.s32.totalorder %s16, 0
      %p43 = por %p41, %p42
      %s45 = sadd.s32 %s44, 1
      %p48 = scmp.eq.s32.totalorder %s10, 1
      %p49 = scmp.ne.s32.totalorder %s44, %s46
      %p50 = scmp.eq.s32.totalorder %s10, 0
      %p51 = por %p49, %p50
      %p52 = scmp.ne.s32.totalorder %s44, %s46
      %p53 = scmp.eq.s32.totalorder %s15, 1
      %p54 = por %p52, %p53
      %p55 = scmp.ne.s32.totalorder %s46, %s47
      %p56 = scmp.eq.s32.totalorder %s15, 0
      %p57 = por %p55, %p56
      %p58 = scmp.ne.s32.totalorder %s46, %s47
      %p59 = scmp.eq.s32.totalorder %s16, 1
      %p60 = por %p58, %p59
      %p62 = scmp.ne.s32.totalorder %s47, %s61
      %p63 = scmp.eq.s32.totalorder %s16, 0
      %p64 = por %p62, %p63
      %s66 = sadd.s32 %s65, 1
      %p69 = scmp.eq.s32.totalorder %s10, 1
      %p70 = scmp.ne.s32.totalorder %s65, %s67
      %p71 = scmp.eq.s32.totalorder %s10, 0
      %p72 = por %p70, %p71
      %p73 = scmp.ne.s32.totalorder %s65, %s67
      %p74 = scmp.eq.s32.totalorder %s15, 1
      %p75 = por %p73, %p74
      %p76 = scmp.ne.s32.totalorder %s67, %s68
      %p77 = scmp.eq.s32.totalorder %s15, 0
      %p78 = por %p76, %p77
      %p79 = scmp.ne.s32.totalorder %s67, %s68
      %p80 = scmp.eq.s32.totalorder %s16, 1
      %p81 = por %p79, %p80
      %p83 = scmp.ne.s32.totalorder %s68, %s82
      %p84 = scmp.eq.s32.totalorder %s16, 0
      %p85 = por %p83, %p84
      %s87 = sadd.s32 %s86, 1
      %p90 = scmp.eq.s32.totalorder %s10, 1
      %p91 = scmp.ne.s32.totalorder %s86, %s88
      %p92 = scmp.eq.s32.totalorder %s10, 0
      %p93 = por %p91, %p92
      %p94 = scmp.ne.s32.totalorder %s86, %s88
      %p95 = scmp.eq.s32.totalorder %s15, 1
      %p96 = por %p94, %p95
      %p97 = scmp.ne.s32.totalorder %s88, %s89
      %p98 = scmp.eq.s32.totalorder %s15, 0
      %p99 = por %p97, %p98
      %p100 = scmp.ne.s32.totalorder %s88, %s89
      %p101 = scmp.eq.s32.totalorder %s16, 1
      %p102 = por %p100, %p101
      %p104 = scmp.ne.s32.totalorder %s89, %s103
      %p105 = scmp.eq.s32.totalorder %s16, 0
      %p106 = por %p104, %p105
      %s107 = ssub.s32 %s10, %s17
      %p108 = scmp.eq.s32.totalorder %s107, 0
      %s110 = sadd.s32 %s109, 1
      %s111 = scalar_select %p108, %s109, %s110
      %p114 = pneg %p108
      %p115 = scmp.eq.s32.totalorder %s10, 1
      %p116 = por %p114, %p115
      %p117 = scmp.ne.s32.totalorder %s109, %s112
      %p118 = scmp.eq.s32.totalorder %s10, 0
      %p119 = por %p117, %p118
      %p120 = scmp.ne.s32.totalorder %s109, %s112
      %p121 = scmp.eq.s32.totalorder %s15, 1
      %p122 = por %p120, %p121
      %p123 = scmp.ne.s32.totalorder %s112, %s113
      %p124 = scmp.eq.s32.totalorder %s15, 0
      %p125 = por %p123, %p124
      %p126 = scmp.ne.s32.totalorder %s112, %s113
      %p127 = scmp.eq.s32.totalorder %s16, 1
      %p128 = por %p126, %p127
      %p130 = scmp.ne.s32.totalorder %s113, %s129
      %p131 = scmp.eq.s32.totalorder %s16, 0
      %p132 = por %p130, %p131
      %p133 = scmp.le.s32.totalorder 1, %s10
      %p134 = scmp.lt.s32.totalorder %s10, 3
      %p135 = pnand %p133, %p134
      %p136 = pneg %p135
      // Predicated region
      $region9: #{getnet_forward.6} parent=5 // pred_check
        _
      $region10: #{getnet_forward.6} parent=5 // pred_check_branch
        %138 = sbr.rel (%p135) target = $region12
      $region11: #{getnet_forward.6} parent=5 // pred_region
        %s139 = ssub.s32 %s10, 1
        // Predicated region
        $region13: #{getnet_forward.6} parent=11 // pred_check
          %p140 = pneg %p57
        $region14: #{getnet_forward.6} parent=11 // pred_check_branch
          %142 = sbr.rel (%p140) target = $region16
        $region15: #{getnet_forward.6} parent=11 // pred_region
          _
        $region16: #{getnet_forward.6} parent=11 // pred_fallthru
          _
        // Predicated region
        $region17: #{getnet_forward.6} parent=11 // pred_check
          %p143 = pneg %p78
        $region18: #{getnet_forward.6} parent=11 // pred_check_branch
          %145 = sbr.rel (%p143) target = $region20
        $region19: #{getnet_forward.6} parent=11 // pred_region
          _
        $region20: #{getnet_forward.6} parent=11 // pred_fallthru
          _
        // Predicated region
        $region21: #{getnet_forward.6} parent=11 // pred_check
          %p146 = pneg %p99
        $region22: #{getnet_forward.6} parent=11 // pred_check_branch
          %148 = sbr.rel (%p146) target = $region24
        $region23: #{getnet_forward.6} parent=11 // pred_region
          _
        $region24: #{getnet_forward.6} parent=11 // pred_fallthru
          _
      $region12: #{getnet_forward.6} parent=5 // pred_fallthru
        _
      %p149 = scmp.lt.s32.totalorder %s10, 2
      // Predicated region
      $region25: #{getnet_forward.6} parent=5 // pred_check
        %p150 = pneg %p149
      $region26: #{getnet_forward.6} parent=5 // pred_check_branch
        %152 = sbr.rel (%p150) target = $region28
      $region27: #{getnet_forward.6} parent=5 // pred_region
        // Predicated region
        $region29: #{getnet_forward.6} parent=27 // pred_check
          %p153 = pneg %p30
        $region30: #{getnet_forward.6} parent=27 // pred_check_branch
          %155 = sbr.rel (%p153) target = $region32
        $region31: #{getnet_forward.6} parent=27 // pred_region
          %s156 = sand.u32 %s20, 1
          %s157 = sand.u32 %s20, 1
          %s158 = smul.addr %s157, 768
          %s159 = scalar_lea.vmem [#allocation2], %s158
          %s160 = smul.u32 16, %s10
          %s161 = smul.addr %s160, 3
          %s162 = smul.addr %s161, 4
          %s163 = scalar_lea.vmem %s0, %s162
          // Predicated region
          $region33: #{getnet_forward.6} parent=31 // pred_check
            _
          $region34: #{getnet_forward.6} parent=31 // pred_check_branch
            %165 = sbr.rel (0) target = $region36
          $region35: #{getnet_forward.6} parent=31 // pred_region
            // Predicated region
            $region37: #{getnet_forward.6} parent=35 // pred_check
              _
            $region38: #{getnet_forward.6} parent=35 // pred_check_branch
              %167 = sbr.rel (0) target = $region40
            $region39: #{getnet_forward.6} parent=35 // pred_region
              %s168 = scalar_lea.vmem %s163, 8
              %s169 = scalar_lea.vmem %s159, 8 [#allocation2]
              loop: start=0, step=1, limit=1
              $region41: #{getnet_forward.6} parent=39 // loop_pre_header
                _
              $region42: #{getnet_forward.6} parent=39 // loop_header
                %s171 = sphi 0, %s175
                %p172 = scmp.ge.s32.totalorder %s171, 1
                %s176 = sphi %s163, %s163
                %s177 = sphi %s159, %s159
              $region43: #{getnet_forward.6} parent=39 // loop_header_branch
                %174 = sbr.rel (%p172) target = $region47
              $region44: #{getnet_forward.6} parent=39 // loop_body
                %v178 = vld [vmem:[%s176] sm:$0xff]
                %179 = vst [vmem:[%s177] sm:$0xff] %v178
                %v180 = vld [vmem:[%s176 + $0xc] sm:$0xff]
                %181 = vst [vmem:[%s177 + $0xc] sm:$0xff] %v180
                %v182 = vld [vmem:[%s176 + $0x18] sm:$0xff]
                %183 = vst [vmem:[%s177 + $0x18] sm:$0xff] %v182
                %v184 = vld [vmem:[%s176 + $0x24] sm:$0xff]
                %185 = vst [vmem:[%s177 + $0x24] sm:$0xff] %v184
                %v186 = vld [vmem:[%s176 + $0x30] sm:$0xff]
                %187 = vst [vmem:[%s177 + $0x30] sm:$0xff] %v186
                %v188 = vld [vmem:[%s176 + $0x3c] sm:$0xff]
                %189 = vst [vmem:[%s177 + $0x3c] sm:$0xff] %v188
                %v190 = vld [vmem:[%s176 + $0x48] sm:$0xff]
                %191 = vst [vmem:[%s177 + $0x48] sm:$0xff] %v190
                %v192 = vld [vmem:[%s176 + $0x54] sm:$0xff]
                %193 = vst [vmem:[%s177 + $0x54] sm:$0xff] %v192
                %v194 = vld [vmem:[%s176 + $0x60] sm:$0xff]
                %195 = vst [vmem:[%s177 + $0x60] sm:$0xff] %v194
                %v196 = vld [vmem:[%s176 + $0x6c] sm:$0xff]
                %197 = vst [vmem:[%s177 + $0x6c] sm:$0xff] %v196
                %v198 = vld [vmem:[%s176 + $0x78] sm:$0xff]
                %199 = vst [vmem:[%s177 + $0x78] sm:$0xff] %v198
                %v200 = vld [vmem:[%s176 + $0x84] sm:$0xff]
                %201 = vst [vmem:[%s177 + $0x84] sm:$0xff] %v200
                %v202 = vld [vmem:[%s176 + $0x90] sm:$0xff]
                %203 = vst [vmem:[%s177 + $0x90] sm:$0xff] %v202
                %v204 = vld [vmem:[%s176 + $0x9c] sm:$0xff]
                %205 = vst [vmem:[%s177 + $0x9c] sm:$0xff] %v204
                %v206 = vld [vmem:[%s176 + $0xa8] sm:$0xff]
                %207 = vst [vmem:[%s177 + $0xa8] sm:$0xff] %v206
                %v208 = vld [vmem:[%s176 + $0xb4] sm:$0xff]
                %209 = vst [vmem:[%s177 + $0xb4] sm:$0xff] %v208
                %v210 = vld [vmem:[%s176 + $0x180] sm:$0xff]
                %211 = vst [vmem:[%s177 + $0xc0] sm:$0xff] %v210
                %v212 = vld [vmem:[%s176 + $0x18c] sm:$0xff]
                %213 = vst [vmem:[%s177 + $0xcc] sm:$0xff] %v212
                %v214 = vld [vmem:[%s176 + $0x198] sm:$0xff]
                %215 = vst [vmem:[%s177 + $0xd8] sm:$0xff] %v214
                %v216 = vld [vmem:[%s176 + $0x1a4] sm:$0xff]
                %217 = vst [vmem:[%s177 + $0xe4] sm:$0xff] %v216
                %v218 = vld [vmem:[%s176 + $0x1b0] sm:$0xff]
                %219 = vst [vmem:[%s177 + $0xf0] sm:$0xff] %v218
                %v220 = vld [vmem:[%s176 + $0x1bc] sm:$0xff]
                %221 = vst [vmem:[%s177 + $0xfc] sm:$0xff] %v220
                %v222 = vld [vmem:[%s176 + $0x1c8] sm:$0xff]
                %223 = vst [vmem:[%s177 + $0x108] sm:$0xff] %v222
                %v224 = vld [vmem:[%s176 + $0x1d4] sm:$0xff]
                %225 = vst [vmem:[%s177 + $0x114] sm:$0xff] %v224
                %v226 = vld [vmem:[%s176 + $0x1e0] sm:$0xff]
                %227 = vst [vmem:[%s177 + $0x120] sm:$0xff] %v226
                %v228 = vld [vmem:[%s176 + $0x1ec] sm:$0xff]
                %229 = vst [vmem:[%s177 + $0x12c] sm:$0xff] %v228
                %v230 = vld [vmem:[%s176 + $0x1f8] sm:$0xff]
                %231 = vst [vmem:[%s177 + $0x138] sm:$0xff] %v230
                %v232 = vld [vmem:[%s176 + $0x204] sm:$0xff]
                %233 = vst [vmem:[%s177 + $0x144] sm:$0xff] %v232
                %v234 = vld [vmem:[%s176 + $0x210] sm:$0xff]
                %235 = vst [vmem:[%s177 + $0x150] sm:$0xff] %v234
                %v236 = vld [vmem:[%s176 + $0x21c] sm:$0xff]
                %237 = vst [vmem:[%s177 + $0x15c] sm:$0xff] %v236
                %v238 = vld [vmem:[%s176 + $0x228] sm:$0xff]
                %239 = vst [vmem:[%s177 + $0x168] sm:$0xff] %v238
                %v240 = vld [vmem:[%s176 + $0x234] sm:$0xff]
                %241 = vst [vmem:[%s177 + $0x174] sm:$0xff] %v240
                %v242 = vld [vmem:[%s176 + $0x300] sm:$0xff]
                %243 = vst [vmem:[%s177 + $0x180] sm:$0xff] %v242
                %v244 = vld [vmem:[%s176 + $0x30c] sm:$0xff]
                %245 = vst [vmem:[%s177 + $0x18c] sm:$0xff] %v244
                %v246 = vld [vmem:[%s176 + $0x318] sm:$0xff]
                %247 = vst [vmem:[%s177 + $0x198] sm:$0xff] %v246
                %v248 = vld [vmem:[%s176 + $0x324] sm:$0xff]
                %249 = vst [vmem:[%s177 + $0x1a4] sm:$0xff] %v248
                %v250 = vld [vmem:[%s176 + $0x330] sm:$0xff]
                %251 = vst [vmem:[%s177 + $0x1b0] sm:$0xff] %v250
                %v252 = vld [vmem:[%s176 + $0x33c] sm:$0xff]
                %253 = vst [vmem:[%s177 + $0x1bc] sm:$0xff] %v252
                %v254 = vld [vmem:[%s176 + $0x348] sm:$0xff]
                %255 = vst [vmem:[%s177 + $0x1c8] sm:$0xff] %v254
                %v256 = vld [vmem:[%s176 + $0x354] sm:$0xff]
                %257 = vst [vmem:[%s177 + $0x1d4] sm:$0xff] %v256
                %v258 = vld [vmem:[%s176 + $0x360] sm:$0xff]
                %259 = vst [vmem:[%s177 + $0x1e0] sm:$0xff] %v258
                %v260 = vld [vmem:[%s176 + $0x36c] sm:$0xff]
                %261 = vst [vmem:[%s177 + $0x1ec] sm:$0xff] %v260
                %v262 = vld [vmem:[%s176 + $0x378] sm:$0xff]
                %263 = vst [vmem:[%s177 + $0x1f8] sm:$0xff] %v262
                %v264 = vld [vmem:[%s176 + $0x384] sm:$0xff]
                %265 = vst [vmem:[%s177 + $0x204] sm:$0xff] %v264
                %v266 = vld [vmem:[%s176 + $0x390] sm:$0xff]
                %267 = vst [vmem:[%s177 + $0x210] sm:$0xff] %v266
                %v268 = vld [vmem:[%s176 + $0x39c] sm:$0xff]
                %269 = vst [vmem:[%s177 + $0x21c] sm:$0xff] %v268
                %v270 = vld [vmem:[%s176 + $0x3a8] sm:$0xff]
                %271 = vst [vmem:[%s177 + $0x228] sm:$0xff] %v270
                %v272 = vld [vmem:[%s176 + $0x3b4] sm:$0xff]
                %273 = vst [vmem:[%s177 + $0x234] sm:$0xff] %v272
                %v274 = vld [vmem:[%s176 + $0x480] sm:$0xff]
                %275 = vst [vmem:[%s177 + $0x240] sm:$0xff] %v274
                %v276 = vld [vmem:[%s176 + $0x48c] sm:$0xff]
                %277 = vst [vmem:[%s177 + $0x24c] sm:$0xff] %v276
                %v278 = vld [vmem:[%s176 + $0x498] sm:$0xff]
                %279 = vst [vmem:[%s177 + $0x258] sm:$0xff] %v278
                %v280 = vld [vmem:[%s176 + $0x4a4] sm:$0xff]
                %281 = vst [vmem:[%s177 + $0x264] sm:$0xff] %v280
                %v282 = vld [vmem:[%s176 + $0x4b0] sm:$0xff]
                %283 = vst [vmem:[%s177 + $0x270] sm:$0xff] %v282
                %v284 = vld [vmem:[%s176 + $0x4bc] sm:$0xff]
                %285 = vst [vmem:[%s177 + $0x27c] sm:$0xff] %v284
                %v286 = vld [vmem:[%s176 + $0x4c8] sm:$0xff]
                %287 = vst [vmem:[%s177 + $0x288] sm:$0xff] %v286
                %v288 = vld [vmem:[%s176 + $0x4d4] sm:$0xff]
                %289 = vst [vmem:[%s177 + $0x294] sm:$0xff] %v288
                %v290 = vld [vmem:[%s176 + $0x4e0] sm:$0xff]
                %291 = vst [vmem:[%s177 + $0x2a0] sm:$0xff] %v290
                %v292 = vld [vmem:[%s176 + $0x4ec] sm:$0xff]
                %293 = vst [vmem:[%s177 + $0x2ac] sm:$0xff] %v292
                %v294 = vld [vmem:[%s176 + $0x4f8] sm:$0xff]
                %295 = vst [vmem:[%s177 + $0x2b8] sm:$0xff] %v294
                %v296 = vld [vmem:[%s176 + $0x504] sm:$0xff]
                %297 = vst [vmem:[%s177 + $0x2c4] sm:$0xff] %v296
                %v298 = vld [vmem:[%s176 + $0x510] sm:$0xff]
                %299 = vst [vmem:[%s177 + $0x2d0] sm:$0xff] %v298
                %v300 = vld [vmem:[%s176 + $0x51c] sm:$0xff]
                %301 = vst [vmem:[%s177 + $0x2dc] sm:$0xff] %v300
                %v302 = vld [vmem:[%s176 + $0x528] sm:$0xff]
                %303 = vst [vmem:[%s177 + $0x2e8] sm:$0xff] %v302
                %v304 = vld [vmem:[%s176 + $0x534] sm:$0xff]
                %305 = vst [vmem:[%s177 + $0x2f4] sm:$0xff] %v304
              $region45: #{getnet_forward.6} parent=39 // loop_footer
                %s175 = sadd.s32 1, %s171
              $region46: #{getnet_forward.6} parent=39 // loop_footer_branch
                %170 = sbr.rel target = $region42
              $region47: #{getnet_forward.6} parent=39 // loop_exit
                _
              %s307 = ssub.s32 16, 1
              loop: start=0, step=1, limit=1
              $region48: #{getnet_forward.6} parent=39 // loop_pre_header
                _
              $region49: #{getnet_forward.6} parent=39 // loop_header
                %s309 = sphi 0, %s313
                %p310 = scmp.ge.s32.totalorder %s309, 1
                %s314 = sphi %s168, %s168
                %s315 = sphi %s169, %s169
              $region50: #{getnet_forward.6} parent=39 // loop_header_branch
                %312 = sbr.rel (%p310) target = $region54
              $region51: #{getnet_forward.6} parent=39 // loop_body
                %v316 = vld [vmem:[%s314] sm:%s307]
                %317 = vst [vmem:[%s315] sm:%s307] %v316
                %v318 = vld [vmem:[%s314 + $0xc] sm:%s307]
                %319 = vst [vmem:[%s315 + $0xc] sm:%s307] %v318
                %v320 = vld [vmem:[%s314 + $0x18] sm:%s307]
                %321 = vst [vmem:[%s315 + $0x18] sm:%s307] %v320
                %v322 = vld [vmem:[%s314 + $0x24] sm:%s307]
                %323 = vst [vmem:[%s315 + $0x24] sm:%s307] %v322
                %v324 = vld [vmem:[%s314 + $0x30] sm:%s307]
                %325 = vst [vmem:[%s315 + $0x30] sm:%s307] %v324
                %v326 = vld [vmem:[%s314 + $0x3c] sm:%s307]
                %327 = vst [vmem:[%s315 + $0x3c] sm:%s307] %v326
                %v328 = vld [vmem:[%s314 + $0x48] sm:%s307]
                %329 = vst [vmem:[%s315 + $0x48] sm:%s307] %v328
                %v330 = vld [vmem:[%s314 + $0x54] sm:%s307]
                %331 = vst [vmem:[%s315 + $0x54] sm:%s307] %v330
                %v332 = vld [vmem:[%s314 + $0x60] sm:%s307]
                %333 = vst [vmem:[%s315 + $0x60] sm:%s307] %v332
                %v334 = vld [vmem:[%s314 + $0x6c] sm:%s307]
                %335 = vst [vmem:[%s315 + $0x6c] sm:%s307] %v334
                %v336 = vld [vmem:[%s314 + $0x78] sm:%s307]
                %337 = vst [vmem:[%s315 + $0x78] sm:%s307] %v336
                %v338 = vld [vmem:[%s314 + $0x84] sm:%s307]
                %339 = vst [vmem:[%s315 + $0x84] sm:%s307] %v338
                %v340 = vld [vmem:[%s314 + $0x90] sm:%s307]
                %341 = vst [vmem:[%s315 + $0x90] sm:%s307] %v340
                %v342 = vld [vmem:[%s314 + $0x9c] sm:%s307]
                %343 = vst [vmem:[%s315 + $0x9c] sm:%s307] %v342
                %v344 = vld [vmem:[%s314 + $0xa8] sm:%s307]
                %345 = vst [vmem:[%s315 + $0xa8] sm:%s307] %v344
                %v346 = vld [vmem:[%s314 + $0xb4] sm:%s307]
                %347 = vst [vmem:[%s315 + $0xb4] sm:%s307] %v346
                %v348 = vld [vmem:[%s314 + $0x180] sm:%s307]
                %349 = vst [vmem:[%s315 + $0xc0] sm:%s307] %v348
                %v350 = vld [vmem:[%s314 + $0x18c] sm:%s307]
                %351 = vst [vmem:[%s315 + $0xcc] sm:%s307] %v350
                %v352 = vld [vmem:[%s314 + $0x198] sm:%s307]
                %353 = vst [vmem:[%s315 + $0xd8] sm:%s307] %v352
                %v354 = vld [vmem:[%s314 + $0x1a4] sm:%s307]
                %355 = vst [vmem:[%s315 + $0xe4] sm:%s307] %v354
                %v356 = vld [vmem:[%s314 + $0x1b0] sm:%s307]
                %357 = vst [vmem:[%s315 + $0xf0] sm:%s307] %v356
                %v358 = vld [vmem:[%s314 + $0x1bc] sm:%s307]
                %359 = vst [vmem:[%s315 + $0xfc] sm:%s307] %v358
                %v360 = vld [vmem:[%s314 + $0x1c8] sm:%s307]
                %361 = vst [vmem:[%s315 + $0x108] sm:%s307] %v360
                %v362 = vld [vmem:[%s314 + $0x1d4] sm:%s307]
                %363 = vst [vmem:[%s315 + $0x114] sm:%s307] %v362
                %v364 = vld [vmem:[%s314 + $0x1e0] sm:%s307]
                %365 = vst [vmem:[%s315 + $0x120] sm:%s307] %v364
                %v366 = vld [vmem:[%s314 + $0x1ec] sm:%s307]
                %367 = vst [vmem:[%s315 + $0x12c] sm:%s307] %v366
                %v368 = vld [vmem:[%s314 + $0x1f8] sm:%s307]
                %369 = vst [vmem:[%s315 + $0x138] sm:%s307] %v368
                %v370 = vld [vmem:[%s314 + $0x204] sm:%s307]
                %371 = vst [vmem:[%s315 + $0x144] sm:%s307] %v370
                %v372 = vld [vmem:[%s314 + $0x210] sm:%s307]
                %373 = vst [vmem:[%s315 + $0x150] sm:%s307] %v372
                %v374 = vld [vmem:[%s314 + $0x21c] sm:%s307]
                %375 = vst [vmem:[%s315 + $0x15c] sm:%s307] %v374
                %v376 = vld [vmem:[%s314 + $0x228] sm:%s307]
                %377 = vst [vmem:[%s315 + $0x168] sm:%s307] %v376
                %v378 = vld [vmem:[%s314 + $0x234] sm:%s307]
                %379 = vst [vmem:[%s315 + $0x174] sm:%s307] %v378
                %v380 = vld [vmem:[%s314 + $0x300] sm:%s307]
                %381 = vst [vmem:[%s315 + $0x180] sm:%s307] %v380
                %v382 = vld [vmem:[%s314 + $0x30c] sm:%s307]
                %383 = vst [vmem:[%s315 + $0x18c] sm:%s307] %v382
                %v384 = vld [vmem:[%s314 + $0x318] sm:%s307]
                %385 = vst [vmem:[%s315 + $0x198] sm:%s307] %v384
                %v386 = vld [vmem:[%s314 + $0x324] sm:%s307]
                %387 = vst [vmem:[%s315 + $0x1a4] sm:%s307] %v386
                %v388 = vld [vmem:[%s314 + $0x330] sm:%s307]
                %389 = vst [vmem:[%s315 + $0x1b0] sm:%s307] %v388
                %v390 = vld [vmem:[%s314 + $0x33c] sm:%s307]
                %391 = vst [vmem:[%s315 + $0x1bc] sm:%s307] %v390
                %v392 = vld [vmem:[%s314 + $0x348] sm:%s307]
                %393 = vst [vmem:[%s315 + $0x1c8] sm:%s307] %v392
                %v394 = vld [vmem:[%s314 + $0x354] sm:%s307]
                %395 = vst [vmem:[%s315 + $0x1d4] sm:%s307] %v394
                %v396 = vld [vmem:[%s314 + $0x360] sm:%s307]
                %397 = vst [vmem:[%s315 + $0x1e0] sm:%s307] %v396
                %v398 = vld [vmem:[%s314 + $0x36c] sm:%s307]
                %399 = vst [vmem:[%s315 + $0x1ec] sm:%s307] %v398
                %v400 = vld [vmem:[%s314 + $0x378] sm:%s307]
                %401 = vst [vmem:[%s315 + $0x1f8] sm:%s307] %v400
                %v402 = vld [vmem:[%s314 + $0x384] sm:%s307]
                %403 = vst [vmem:[%s315 + $0x204] sm:%s307] %v402
                %v404 = vld [vmem:[%s314 + $0x390] sm:%s307]
                %405 = vst [vmem:[%s315 + $0x210] sm:%s307] %v404
                %v406 = vld [vmem:[%s314 + $0x39c] sm:%s307]
                %407 = vst [vmem:[%s315 + $0x21c] sm:%s307] %v406
                %v408 = vld [vmem:[%s314 + $0x3a8] sm:%s307]
                %409 = vst [vmem:[%s315 + $0x228] sm:%s307] %v408
                %v410 = vld [vmem:[%s314 + $0x3b4] sm:%s307]
                %411 = vst [vmem:[%s315 + $0x234] sm:%s307] %v410
                %v412 = vld [vmem:[%s314 + $0x480] sm:%s307]
                %413 = vst [vmem:[%s315 + $0x240] sm:%s307] %v412
                %v414 = vld [vmem:[%s314 + $0x48c] sm:%s307]
                %415 = vst [vmem:[%s315 + $0x24c] sm:%s307] %v414
                %v416 = vld [vmem:[%s314 + $0x498] sm:%s307]
                %417 = vst [vmem:[%s315 + $0x258] sm:%s307] %v416
                %v418 = vld [vmem:[%s314 + $0x4a4] sm:%s307]
                %419 = vst [vmem:[%s315 + $0x264] sm:%s307] %v418
                %v420 = vld [vmem:[%s314 + $0x4b0] sm:%s307]
                %421 = vst [vmem:[%s315 + $0x270] sm:%s307] %v420
                %v422 = vld [vmem:[%s314 + $0x4bc] sm:%s307]
                %423 = vst [vmem:[%s315 + $0x27c] sm:%s307] %v422
                %v424 = vld [vmem:[%s314 + $0x4c8] sm:%s307]
                %425 = vst [vmem:[%s315 + $0x288] sm:%s307] %v424
                %v426 = vld [vmem:[%s314 + $0x4d4] sm:%s307]
                %427 = vst [vmem:[%s315 + $0x294] sm:%s307] %v426
                %v428 = vld [vmem:[%s314 + $0x4e0] sm:%s307]
                %429 = vst [vmem:[%s315 + $0x2a0] sm:%s307] %v428
                %v430 = vld [vmem:[%s314 + $0x4ec] sm:%s307]
                %431 = vst [vmem:[%s315 + $0x2ac] sm:%s307] %v430
                %v432 = vld [vmem:[%s314 + $0x4f8] sm:%s307]
                %433 = vst [vmem:[%s315 + $0x2b8] sm:%s307] %v432
                %v434 = vld [vmem:[%s314 + $0x504] sm:%s307]
                %435 = vst [vmem:[%s315 + $0x2c4] sm:%s307] %v434
                %v436 = vld [vmem:[%s314 + $0x510] sm:%s307]
                %437 = vst [vmem:[%s315 + $0x2d0] sm:%s307] %v436
                %v438 = vld [vmem:[%s314 + $0x51c] sm:%s307]
                %439 = vst [vmem:[%s315 + $0x2dc] sm:%s307] %v438
                %v440 = vld [vmem:[%s314 + $0x528] sm:%s307]
                %441 = vst [vmem:[%s315 + $0x2e8] sm:%s307] %v440
                %v442 = vld [vmem:[%s314 + $0x534] sm:%s307]
                %443 = vst [vmem:[%s315 + $0x2f4] sm:%s307] %v442
              $region52: #{getnet_forward.6} parent=39 // loop_footer
                %s313 = sadd.s32 1, %s309
              $region53: #{getnet_forward.6} parent=39 // loop_footer_branch
                %308 = sbr.rel target = $region49
              $region54: #{getnet_forward.6} parent=39 // loop_exit
                _
            $region40: #{getnet_forward.6} parent=35 // pred_fallthru
              _
          $region36: #{getnet_forward.6} parent=31 // pred_fallthru
            _
          %444 = vnop
        $region32: #{getnet_forward.6} parent=27 // pred_fallthru
          _
      $region28: #{getnet_forward.6} parent=5 // pred_fallthru
        _
      %p445 = scmp.le.s32.totalorder 1, %s10
      %p446 = scmp.lt.s32.totalorder %s10, 3
      %p447 = pnand %p445, %p446
      %p448 = pneg %p447
      // Predicated region
      $region55: #{getnet_forward.6} parent=5 // pred_check
        _
      $region56: #{getnet_forward.6} parent=5 // pred_check_branch
        %450 = sbr.rel (%p447) target = $region58
      $region57: #{getnet_forward.6} parent=5 // pred_region
        %s451 = ssub.s32 %s10, 1
        %s452 = sand.u32 %s23, 1
        %s453 = sand.u32 %s23, 1
        %s454 = smul.addr %s453, 768
        %s455 = scalar_lea.vmem [#allocation2], %s454
        // Predicated region
        $region59: #{getnet_forward.6} parent=57 // pred_check
          %p456 = pneg %p36
        $region60: #{getnet_forward.6} parent=57 // pred_check_branch
          %458 = sbr.rel (%p456) target = $region62
        $region61: #{getnet_forward.6} parent=57 // pred_region
          _
        $region62: #{getnet_forward.6} parent=57 // pred_fallthru
          _
        %s459 = sand.u32 %s23, 1
        %s460 = sand.u32 %s23, 1
        %s461 = smul.addr %s460, 768
        %s462 = scalar_lea.vmem [#allocation2], %s461
        %p463 = pneg %p36
        %p464 = pneg %p33
        %p465 = pneg %p57
        %p466 = pneg %p54
        %p467 = pneg %p78
        %p468 = pneg %p75
        %p469 = pneg %p99
        %p470 = pneg %p96
        %p471 = pneg %p125
        %p472 = pneg %p122
        %s473 = smul.u32 16, %s15
        %p474 = scmp.lt.s32.totalorder %s473, 31
        %s475 = scalar_select %p474, %s473, 31
        %s476 = smul.addr %s475, 4
        %s477 = scalar_lea.vmem %s4, %s476
        %s478 = smul.u32 16, %s15
        %s479 = smul.u32 16, %s15
        %p480 = scmp.lt.s32.totalorder %s479, 31
        %s481 = scalar_select %p480, %s479, 31
        %s482 = smul.addr %s481, 4
        %s483 = scalar_lea.vmem %s4, %s482
        %s484 = smul.u32 16, %s15
        %v486 = vld [vmem:[%s1] sm:$0xf]
        %v487 = vld [vmem:[%s1 + $0x4] sm:$0xf]
        %v488 = vld [vmem:[%s1 + $0x8] sm:$0xf]
        %v489 = vld [vmem:[%s1 + $0xc] sm:$0xf]
        %v490 = vld [vmem:[%s1 + $0x10] sm:$0xf]
        %v491 = vld [vmem:[%s1 + $0x14] sm:$0xf]
        %v492 = vld [vmem:[%s1 + $0x18] sm:$0xf]
        %v493 = vld [vmem:[%s1 + $0x1c] sm:$0xf]
        %v494 = vld [vmem:[%s1 + $0x20] sm:$0xf]
        %v495 = vld [vmem:[%s1 + $0x24] sm:$0xf]
        %v496 = vld [vmem:[%s1 + $0x28] sm:$0xf]
        %v497 = vld [vmem:[%s1 + $0x2c] sm:$0xf]
        %v498 = vld [vmem:[%s1 + $0x30] sm:$0xf]
        %v499 = vld [vmem:[%s1 + $0x34] sm:$0xf]
        %v500 = vld [vmem:[%s1 + $0x38] sm:$0xf]
        %v501 = vld [vmem:[%s1 + $0x3c] sm:$0xf]
        %v502 = vld [vmem:[%s1 + $0x40] sm:$0xf]
        %v503 = vld [vmem:[%s1 + $0x44] sm:$0xf]
        %v504 = vld [vmem:[%s1 + $0x48] sm:$0xf]
        %v505 = vld [vmem:[%s1 + $0x4c] sm:$0xf]
        %v506 = vld [vmem:[%s1 + $0x50] sm:$0xf]
        %v507 = vld [vmem:[%s1 + $0x54] sm:$0xf]
        %v508 = vld [vmem:[%s1 + $0x58] sm:$0xf]
        %v509 = vld [vmem:[%s1 + $0x5c] sm:$0xf]
        %v510 = vld [vmem:[%s1 + $0x60] sm:$0xf]
        %v511 = vld [vmem:[%s1 + $0x64] sm:$0xf]
        %v512 = vld [vmem:[%s1 + $0x68] sm:$0xf]
        %v513 = vld [vmem:[%s1 + $0x6c] sm:$0xf]
        %v514 = vld [vmem:[%s1 + $0x70] sm:$0xf]
        %v515 = vld [vmem:[%s1 + $0x74] sm:$0xf]
        %v516 = vld [vmem:[%s1 + $0x78] sm:$0xf]
        %v517 = vld [vmem:[%s1 + $0x7c] sm:$0xf]
        %v518 = vld [vmem:[%s1 + $0x80] sm:$0xf]
        %v519 = vld [vmem:[%s1 + $0x84] sm:$0xf]
        %v520 = vld [vmem:[%s1 + $0x88] sm:$0xf]
        %v521 = vld [vmem:[%s1 + $0x8c] sm:$0xf]
        %v522 = vld [vmem:[%s2] sm:$0x1]
        %v523 = vld [vmem:[%s3] sm:$0x1]
        %v524 = vld [vmem:[%s455] sm:$0xff]
        %v525 = vld [vmem:[%s455 + $0x8] sm:$0xf]
        %v526 = vld [vmem:[%s455 + $0xc] sm:$0xff]
        %v527 = vld [vmem:[%s455 + $0x14] sm:$0xf]
        %v528 = vld [vmem:[%s455 + $0x18] sm:$0xff]
        %v529 = vld [vmem:[%s455 + $0x20] sm:$0xf]
        %v530 = vld [vmem:[%s455 + $0x24] sm:$0xff]
        %v531 = vld [vmem:[%s455 + $0x2c] sm:$0xf]
        %v532 = vld [vmem:[%s455 + $0x30] sm:$0xff]
        %v533 = vld [vmem:[%s455 + $0x38] sm:$0xf]
        %v534 = vld [vmem:[%s455 + $0x3c] sm:$0xff]
        %v535 = vld [vmem:[%s455 + $0x44] sm:$0xf]
        %v536 = vld [vmem:[%s455 + $0x48] sm:$0xff]
        %v537 = vld [vmem:[%s455 + $0x50] sm:$0xf]
        %v538 = vld [vmem:[%s455 + $0x54] sm:$0xff]
        %v539 = vld [vmem:[%s455 + $0x5c] sm:$0xf]
        %v540 = vld [vmem:[%s455 + $0x60] sm:$0xff]
        %v541 = vld [vmem:[%s455 + $0x68] sm:$0xf]
        %v542 = vld [vmem:[%s455 + $0x6c] sm:$0xff]
        %v543 = vld [vmem:[%s455 + $0x74] sm:$0xf]
        %v544 = vld [vmem:[%s455 + $0x78] sm:$0xff]
        %v545 = vld [vmem:[%s455 + $0x80] sm:$0xf]
        %v546 = vld [vmem:[%s455 + $0x84] sm:$0xff]
        %v547 = vld [vmem:[%s455 + $0x8c] sm:$0xf]
        %v548 = vld [vmem:[%s455 + $0x90] sm:$0xff]
        %v549 = vld [vmem:[%s455 + $0x98] sm:$0xf]
        %v550 = vld [vmem:[%s455 + $0x9c] sm:$0xff]
        %v551 = vld [vmem:[%s455 + $0xa4] sm:$0xf]
        %v552 = vld [vmem:[%s455 + $0xa8] sm:$0xff]
        %v553 = vld [vmem:[%s455 + $0xb0] sm:$0xf]
        %v554 = vld [vmem:[%s455 + $0xb4] sm:$0xff]
        %v555 = vld [vmem:[%s455 + $0xbc] sm:$0xf]
        %v588 = vunpack.c.l.b16 %v524
        %v589 = vunpack.c.h.b16 %v524
        %v590 = vunpack.c.l.b16 %v525
        %v591 = vunpack.c.l.b16 %v526
        %v592 = vunpack.c.h.b16 %v526
        %v593 = vunpack.c.l.b16 %v527
        %v594 = vunpack.c.l.b16 %v528
        %v595 = vunpack.c.h.b16 %v528
        %v596 = vunpack.c.l.b16 %v529
        %v597 = vunpack.c.l.b16 %v530
        %v598 = vunpack.c.h.b16 %v530
        %v599 = vunpack.c.l.b16 %v531
        %v600 = vunpack.c.l.b16 %v532
        %v601 = vunpack.c.h.b16 %v532
        %v602 = vunpack.c.l.b16 %v533
        %v603 = vunpack.c.l.b16 %v534
        %v604 = vunpack.c.h.b16 %v534
        %v605 = vunpack.c.l.b16 %v535
        %v606 = vunpack.c.l.b16 %v536
        %v607 = vunpack.c.h.b16 %v536
        %v608 = vunpack.c.l.b16 %v537
        %v609 = vunpack.c.l.b16 %v538
        %v610 = vunpack.c.h.b16 %v538
        %v611 = vunpack.c.l.b16 %v539
        %v612 = vunpack.c.l.b16 %v540
        %v613 = vunpack.c.h.b16 %v540
        %v614 = vunpack.c.l.b16 %v541
        %v615 = vunpack.c.l.b16 %v542
        %v616 = vunpack.c.h.b16 %v542
        %v617 = vunpack.c.l.b16 %v543
        %v618 = vunpack.c.l.b16 %v544
        %v619 = vunpack.c.h.b16 %v544
        %v620 = vunpack.c.l.b16 %v545
        %v621 = vunpack.c.l.b16 %v546
        %v622 = vunpack.c.h.b16 %v546
        %v623 = vunpack.c.l.b16 %v547
        %v624 = vunpack.c.l.b16 %v548
        %v625 = vunpack.c.h.b16 %v548
        %v626 = vunpack.c.l.b16 %v549
        %v627 = vunpack.c.l.b16 %v550
        %v628 = vunpack.c.h.b16 %v550
        %v629 = vunpack.c.l.b16 %v551
        %v630 = vunpack.c.l.b16 %v552
        %v631 = vunpack.c.h.b16 %v552
        %v632 = vunpack.c.l.b16 %v553
        %v633 = vunpack.c.l.b16 %v554
        %v634 = vunpack.c.h.b16 %v554
        %v635 = vunpack.c.l.b16 %v555
        %v636 = vpack.c.b16 %v591, %v588
        %v637 = vpack.c.b16 %v592, %v589
        %v638 = vpack.c.b16 %v593, %v590
        %v639 = vpack.c.b16 %v597, %v594
        %v640 = vpack.c.b16 %v598, %v595
        %v641 = vpack.c.b16 %v599, %v596
        %v642 = vpack.c.b16 %v603, %v600
        %v643 = vpack.c.b16 %v604, %v601
        %v644 = vpack.c.b16 %v605, %v602
        %v645 = vpack.c.b16 %v609, %v606
        %v646 = vpack.c.b16 %v610, %v607
        %v647 = vpack.c.b16 %v611, %v608
        %v648 = vpack.c.b16 %v615, %v612
        %v649 = vpack.c.b16 %v616, %v613
        %v650 = vpack.c.b16 %v617, %v614
        %v651 = vpack.c.b16 %v621, %v618
        %v652 = vpack.c.b16 %v622, %v619
        %v653 = vpack.c.b16 %v623, %v620
        %v654 = vpack.c.b16 %v627, %v624
        %v655 = vpack.c.b16 %v628, %v625
        %v656 = vpack.c.b16 %v629, %v626
        %v657 = vpack.c.b16 %v633, %v630
        %v658 = vpack.c.b16 %v634, %v631
        %v659 = vpack.c.b16 %v635, %v632
        %v712 = vunpack.c.l.b16 %v486
        %v713 = vunpack.c.l.b16 %v487
        %v714 = vunpack.c.l.b16 %v488
        %v715 = vunpack.c.l.b16 %v489
        %v716 = vunpack.c.l.b16 %v490
        %v717 = vunpack.c.l.b16 %v491
        %v718 = vunpack.c.l.b16 %v492
        %v719 = vunpack.c.l.b16 %v493
        %v720 = vunpack.c.l.b16 %v494
        %v721 = vunpack.c.l.b16 %v495
        %v722 = vunpack.c.l.b16 %v496
        %v723 = vunpack.c.l.b16 %v497
        %v724 = vunpack.c.l.b16 %v498
        %v725 = vunpack.c.l.b16 %v499
        %v726 = vunpack.c.l.b16 %v500
        %v727 = vunpack.c.l.b16 %v501
        %v728 = vunpack.c.l.b16 %v502
        %v729 = vunpack.c.l.b16 %v503
        %v730 = vunpack.c.l.b16 %v504
        %v731 = vunpack.c.l.b16 %v505
        %v732 = vunpack.c.l.b16 %v506
        %v733 = vunpack.c.l.b16 %v507
        %v734 = vunpack.c.l.b16 %v508
        %v735 = vunpack.c.l.b16 %v509
        %v736 = vunpack.c.l.b16 %v510
        %v737 = vunpack.c.l.b16 %v511
        %v738 = vunpack.c.l.b16 %v512
        %v739 = vunpack.c.l.b16 %v513
        %v740 = vunpack.c.l.b16 %v514
        %v741 = vunpack.c.l.b16 %v515
        %v742 = vunpack.c.l.b16 %v516
        %v743 = vunpack.c.l.b16 %v517
        %v744 = vunpack.c.l.b16 %v518
        %v745 = vunpack.c.l.b16 %v519
        %v746 = vunpack.c.l.b16 %v520
        %v747 = vunpack.c.l.b16 %v521
        %v748 = vpack.c.b16 %v713, %v712
        %v749 = vpack.c.b16 %v715, %v714
        %v750 = vpack.c.b16 %v717, %v716
        %v751 = vpack.c.b16 %v719, %v718
        %v752 = vpack.c.b16 %v721, %v720
        %v753 = vpack.c.b16 %v723, %v722
        %v754 = vpack.c.b16 %v725, %v724
        %v755 = vpack.c.b16 %v727, %v726
        %v756 = vpack.c.b16 %v729, %v728
        %v757 = vpack.c.b16 %v731, %v730
        %v758 = vpack.c.b16 %v733, %v732
        %v759 = vpack.c.b16 %v735, %v734
        %v760 = vpack.c.b16 %v737, %v736
        %v761 = vpack.c.b16 %v739, %v738
        %v762 = vpack.c.b16 %v741, %v740
        %v763 = vpack.c.b16 %v743, %v742
        %v764 = vpack.c.b16 %v745, %v744
        %v765 = vpack.c.b16 %v747, %v746
        %vm784 = vcmask 261120
        %v786 = vsel %vm784, %v638, 0
        %v789 = vsel %vm784, %v641, 0
        %v792 = vsel %vm784, %v644, 0
        %v795 = vsel %vm784, %v647, 0
        %v798 = vsel %vm784, %v650, 0
        %v801 = vsel %vm784, %v653, 0
        %v804 = vsel %vm784, %v656, 0
        %v807 = vsel %vm784, %v659, 0
        %809 = vmatprep.subr.bf16.mxu0 0
        %810 = vmatpush1.bf16.msra.mxu0 %v755
        %811 = vmatprep.subr.bf16.mxu0 0
        %812 = vmatpush1.bf16.msra.mxu0 %v754
        %813 = vmatprep.subr.bf16.mxu0 0
        %814 = vmatpush1.bf16.msra.mxu0 %v753
        %815 = vmatprep.subr.bf16.mxu0 0
        %816 = vmatpush1.bf16.msra.mxu0 %v752
        %817 = vmatprep.subr.bf16.mxu0 0
        %818 = vmatpush1.bf16.msra.mxu0 %v751
        %819 = vmatprep.subr.bf16.mxu0 0
        %820 = vmatpush1.bf16.msra.mxu0 %v750
        %821 = vmatprep.subr.bf16.mxu0 0
        %822 = vmatpush1.bf16.msra.mxu0 %v749
        %823 = vmatprep.subr.bf16.mxu0 0
        %824 = vmatpush1.bf16.msra.mxu0 %v748
        %825 = vmatprep.subr.bf16.mxu0 0
        %826 = vmatpush2.bf16.msra.mxu0 %v763
        %827 = vmatprep.subr.bf16.mxu0 0
        %828 = vmatpush2.bf16.msra.mxu0 %v762
        %829 = vmatprep.subr.bf16.mxu0 0
        %830 = vmatpush2.bf16.msra.mxu0 %v761
        %831 = vmatprep.subr.bf16.mxu0 0
        %832 = vmatpush2.bf16.msra.mxu0 %v760
        %833 = vmatprep.subr.bf16.mxu0 0
        %834 = vmatpush2.bf16.msra.mxu0 %v759
        %835 = vmatprep.subr.bf16.mxu0 0
        %836 = vmatpush2.bf16.msra.mxu0 %v758
        %837 = vmatprep.subr.bf16.mxu0 0
        %838 = vmatpush2.bf16.msra.mxu0 %v757
        %839 = vmatprep.subr.bf16.mxu0 0
        %840 = vmatpush2.bf16.msra.mxu0 %v756
        %841 = vmatprep.mubr.bf16.mxu0 %v637
        %842 = vmatmul.mubr.bf16.gmra.mxu0 %v636
        %v843 = vpop.f32.mrf.mxu0
        %v844 = vadd.f32 0.0, %v843
        %v845 = vpop.f32.mrf.mxu0
        %v846 = vpop.f32.mrf.mxu0
        %v847 = vadd.f32 0.0, %v846
        %v848 = vpop.f32.mrf.mxu0
        %849 = vmatprep.mubr.bf16.mxu0 %v640
        %850 = vmatmul.mubr.bf16.gmra.mxu0 %v639
        %v851 = vpop.f32.mrf.mxu0
        %v852 = vadd.f32 0.0, %v851
        %v853 = vpop.f32.mrf.mxu0
        %v854 = vpop.f32.mrf.mxu0
        %v855 = vadd.f32 0.0, %v854
        %v856 = vpop.f32.mrf.mxu0
        %857 = vmatprep.mubr.bf16.mxu0 %v643
        %858 = vmatmul.mubr.bf16.gmra.mxu0 %v642
        %v859 = vpop.f32.mrf.mxu0
        %v860 = vadd.f32 0.0, %v859
        %v861 = vpop.f32.mrf.mxu0
        %v862 = vpop.f32.mrf.mxu0
        %v863 = vadd.f32 0.0, %v862
        %v864 = vpop.f32.mrf.mxu0
        %865 = vmatprep.mubr.bf16.mxu0 %v646
        %866 = vmatmul.mubr.bf16.gmra.mxu0 %v645
        %v867 = vpop.f32.mrf.mxu0
        %v868 = vadd.f32 0.0, %v867
        %v869 = vpop.f32.mrf.mxu0
        %v870 = vpop.f32.mrf.mxu0
        %v871 = vadd.f32 0.0, %v870
        %v872 = vpop.f32.mrf.mxu0
        %873 = vmatprep.mubr.bf16.mxu0 %v649
        %874 = vmatmul.mubr.bf16.gmra.mxu0 %v648
        %v875 = vpop.f32.mrf.mxu0
        %v876 = vadd.f32 0.0, %v875
        %v877 = vpop.f32.mrf.mxu0
        %v878 = vpop.f32.mrf.mxu0
        %v879 = vadd.f32 0.0, %v878
        %v880 = vpop.f32.mrf.mxu0
        %881 = vmatprep.mubr.bf16.mxu0 %v652
        %882 = vmatmul.mubr.bf16.gmra.mxu0 %v651
        %v883 = vpop.f32.mrf.mxu0
        %v884 = vadd.f32 0.0, %v883
        %v885 = vpop.f32.mrf.mxu0
        %v886 = vpop.f32.mrf.mxu0
        %v887 = vadd.f32 0.0, %v886
        %v888 = vpop.f32.mrf.mxu0
        %889 = vmatprep.mubr.bf16.mxu0 %v655
        %890 = vmatmul.mubr.bf16.gmra.mxu0 %v654
        %v891 = vpop.f32.mrf.mxu0
        %v892 = vadd.f32 0.0, %v891
        %v893 = vpop.f32.mrf.mxu0
        %v894 = vpop.f32.mrf.mxu0
        %v895 = vadd.f32 0.0, %v894
        %v896 = vpop.f32.mrf.mxu0
        %897 = vmatprep.mubr.bf16.mxu0 %v658
        %898 = vmatmul.mubr.bf16.gmra.mxu0 %v657
        %v899 = vpop.f32.mrf.mxu0
        %v900 = vadd.f32 0.0, %v899
        %v901 = vpop.f32.mrf.mxu0
        %v902 = vpop.f32.mrf.mxu0
        %v903 = vadd.f32 0.0, %v902
        %v904 = vpop.f32.mrf.mxu0
        %905 = vdwg.mxu0
        %906 = vmatprep.subr.bf16.mxu0 0
        %907 = vmatpush1.bf16.msra.mxu0 0
        %908 = vmatprep.subr.bf16.mxu0 0
        %909 = vmatpush1.bf16.msra.mxu0 0
        %910 = vmatprep.subr.bf16.mxu0 0
        %911 = vmatpush1.bf16.msra.mxu0 0
        %912 = vmatprep.subr.bf16.mxu0 0
        %913 = vmatpush1.bf16.msra.mxu0 0
        %914 = vmatprep.subr.bf16.mxu0 0
        %915 = vmatpush1.bf16.msra.mxu0 0
        %916 = vmatprep.subr.bf16.mxu0 0
        %917 = vmatpush1.bf16.msra.mxu0 0
        %918 = vmatprep.subr.bf16.mxu0 0
        %919 = vmatpush1.bf16.msra.mxu0 %v765
        %920 = vmatprep.subr.bf16.mxu0 0
        %921 = vmatpush1.bf16.msra.mxu0 %v764
        %922 = vmatprep.subr.bf16.mxu0 0
        %923 = vmatpush2.bf16.msra.mxu0 0
        %924 = vmatprep.subr.bf16.mxu0 0
        %925 = vmatpush2.bf16.msra.mxu0 0
        %926 = vmatprep.subr.bf16.mxu0 0
        %927 = vmatpush2.bf16.msra.mxu0 0
        %928 = vmatprep.subr.bf16.mxu0 0
        %929 = vmatpush2.bf16.msra.mxu0 0
        %930 = vmatprep.subr.bf16.mxu0 0
        %931 = vmatpush2.bf16.msra.mxu0 0
        %932 = vmatprep.subr.bf16.mxu0 0
        %933 = vmatpush2.bf16.msra.mxu0 0
        %934 = vmatprep.subr.bf16.mxu0 0
        %935 = vmatpush2.bf16.msra.mxu0 0
        %936 = vmatprep.subr.bf16.mxu0 0
        %937 = vmatpush2.bf16.msra.mxu0 0
        %938 = vmatprep.mubr.bf16.mxu0 0
        %939 = vmatmul.mubr.bf16.gmra.mxu0 %v786
        %v940 = vpop.f32.mrf.mxu0
        %v941 = vadd.f32 %v844, %v940
        %v942 = vpop.f32.mrf.mxu0
        %v943 = vpop.f32.mrf.mxu0
        %v944 = vadd.f32 %v847, %v943
        %v945 = vpop.f32.mrf.mxu0
        %946 = vmatprep.mubr.bf16.mxu0 0
        %947 = vmatmul.mubr.bf16.gmra.mxu0 %v789
        %v948 = vpop.f32.mrf.mxu0
        %v949 = vadd.f32 %v852, %v948
        %v950 = vpop.f32.mrf.mxu0
        %v951 = vpop.f32.mrf.mxu0
        %v952 = vadd.f32 %v855, %v951
        %v953 = vpop.f32.mrf.mxu0
        %954 = vmatprep.mubr.bf16.mxu0 0
        %955 = vmatmul.mubr.bf16.gmra.mxu0 %v792
        %v956 = vpop.f32.mrf.mxu0
        %v957 = vadd.f32 %v860, %v956
        %v958 = vpop.f32.mrf.mxu0
        %v959 = vpop.f32.mrf.mxu0
        %v960 = vadd.f32 %v863, %v959
        %v961 = vpop.f32.mrf.mxu0
        %962 = vmatprep.mubr.bf16.mxu0 0
        %963 = vmatmul.mubr.bf16.gmra.mxu0 %v795
        %v964 = vpop.f32.mrf.mxu0
        %v965 = vadd.f32 %v868, %v964
        %v966 = vpop.f32.mrf.mxu0
        %v967 = vpop.f32.mrf.mxu0
        %v968 = vadd.f32 %v871, %v967
        %v969 = vpop.f32.mrf.mxu0
        %970 = vmatprep.mubr.bf16.mxu0 0
        %971 = vmatmul.mubr.bf16.gmra.mxu0 %v798
        %v972 = vpop.f32.mrf.mxu0
        %v973 = vadd.f32 %v876, %v972
        %v974 = vpop.f32.mrf.mxu0
        %v975 = vpop.f32.mrf.mxu0
        %v976 = vadd.f32 %v879, %v975
        %v977 = vpop.f32.mrf.mxu0
        %978 = vmatprep.mubr.bf16.mxu0 0
        %979 = vmatmul.mubr.bf16.gmra.mxu0 %v801
        %v980 = vpop.f32.mrf.mxu0
        %v981 = vadd.f32 %v884, %v980
        %v982 = vpop.f32.mrf.mxu0
        %v983 = vpop.f32.mrf.mxu0
        %v984 = vadd.f32 %v887, %v983
        %v985 = vpop.f32.mrf.mxu0
        %986 = vmatprep.mubr.bf16.mxu0 0
        %987 = vmatmul.mubr.bf16.gmra.mxu0 %v804
        %v988 = vpop.f32.mrf.mxu0
        %v989 = vadd.f32 %v892, %v988
        %v990 = vpop.f32.mrf.mxu0
        %v991 = vpop.f32.mrf.mxu0
        %v992 = vadd.f32 %v895, %v991
        %v993 = vpop.f32.mrf.mxu0
        %994 = vmatprep.mubr.bf16.mxu0 0
        %995 = vmatmul.mubr.bf16.gmra.mxu0 %v807
        %v996 = vpop.f32.mrf.mxu0
        %v997 = vadd.f32 %v900, %v996
        %v998 = vpop.f32.mrf.mxu0
        %v999 = vpop.f32.mrf.mxu0
        %v1000 = vadd.f32 %v903, %v999
        %v1001 = vpop.f32.mrf.mxu0
        %1002 = vdwg.mxu0
        %v1004 = vlaneseq
        %v1005 = vshrl.u32 %v1004, 7
        %v1006 = vsub.s32 0, %v1005
        %v1007 = vrot.slane %v522, %v1006
        %v1009 = vmul.f32 %v941, %v1007
        %v1010 = vmul.f32 %v944, %v1007
        %v1011 = vmul.f32 %v949, %v1007
        %v1012 = vmul.f32 %v952, %v1007
        %v1013 = vmul.f32 %v957, %v1007
        %v1014 = vmul.f32 %v960, %v1007
        %v1015 = vmul.f32 %v965, %v1007
        %v1016 = vmul.f32 %v968, %v1007
        %v1017 = vmul.f32 %v973, %v1007
        %v1018 = vmul.f32 %v976, %v1007
        %v1019 = vmul.f32 %v981, %v1007
        %v1020 = vmul.f32 %v984, %v1007
        %v1021 = vmul.f32 %v989, %v1007
        %v1022 = vmul.f32 %v992, %v1007
        %v1023 = vmul.f32 %v997, %v1007
        %v1024 = vmul.f32 %v1000, %v1007
        %v1026 = vlaneseq
        %v1027 = vshrl.u32 %v1026, 7
        %v1028 = vsub.s32 0, %v1027
        %v1029 = vrot.slane %v523, %v1028
        %v1031 = vadd.f32 %v1009, %v1029
        %v1032 = vadd.f32 %v1010, %v1029
        %v1033 = vadd.f32 %v1011, %v1029
        %v1034 = vadd.f32 %v1012, %v1029
        %v1035 = vadd.f32 %v1013, %v1029
        %v1036 = vadd.f32 %v1014, %v1029
        %v1037 = vadd.f32 %v1015, %v1029
        %v1038 = vadd.f32 %v1016, %v1029
        %v1039 = vadd.f32 %v1017, %v1029
        %v1040 = vadd.f32 %v1018, %v1029
        %v1041 = vadd.f32 %v1019, %v1029
        %v1042 = vadd.f32 %v1020, %v1029
        %v1043 = vadd.f32 %v1021, %v1029
        %v1044 = vadd.f32 %v1022, %v1029
        %v1045 = vadd.f32 %v1023, %v1029
        %v1046 = vadd.f32 %v1024, %v1029
        %v1047 = vtanh.pop %v1031
        %v1048 = vtanh.pop %v1032
        %v1049 = vtanh.pop %v1033
        %v1050 = vtanh.pop %v1034
        %v1051 = vtanh.pop %v1035
        %v1052 = vtanh.pop %v1036
        %v1053 = vtanh.pop %v1037
        %v1054 = vtanh.pop %v1038
        %v1055 = vtanh.pop %v1039
        %v1056 = vtanh.pop %v1040
        %v1057 = vtanh.pop %v1041
        %v1058 = vtanh.pop %v1042
        %v1059 = vtanh.pop %v1043
        %v1060 = vtanh.pop %v1044
        %v1061 = vtanh.pop %v1045
        %v1062 = vtanh.pop %v1046
        %s1063 = scalar_lea.vmem %s455, 192 [#allocation2]
        %v1064 = vld [vmem:[%s1063] sm:$0xff]
        %v1065 = vld [vmem:[%s1063 + $0x8] sm:$0xf]
        %v1066 = vld [vmem:[%s1063 + $0xc] sm:$0xff]
        %v1067 = vld [vmem:[%s1063 + $0x14] sm:$0xf]
        %v1068 = vld [vmem:[%s1063 + $0x18] sm:$0xff]
        %v1069 = vld [vmem:[%s1063 + $0x20] sm:$0xf]
        %v1070 = vld [vmem:[%s1063 + $0x24] sm:$0xff]
        %v1071 = vld [vmem:[%s1063 + $0x2c] sm:$0xf]
        %v1072 = vld [vmem:[%s1063 + $0x30] sm:$0xff]
        %v1073 = vld [vmem:[%s1063 + $0x38] sm:$0xf]
        %v1074 = vld [vmem:[%s1063 + $0x3c] sm:$0xff]
        %v1075 = vld [vmem:[%s1063 + $0x44] sm:$0xf]
        %v1076 = vld [vmem:[%s1063 + $0x48] sm:$0xff]
        %v1077 = vld [vmem:[%s1063 + $0x50] sm:$0xf]
        %v1078 = vld [vmem:[%s1063 + $0x54] sm:$0xff]
        %v1079 = vld [vmem:[%s1063 + $0x5c] sm:$0xf]
        %v1080 = vld [vmem:[%s1063 + $0x60] sm:$0xff]
        %v1081 = vld [vmem:[%s1063 + $0x68] sm:$0xf]
        %v1082 = vld [vmem:[%s1063 + $0x6c] sm:$0xff]
        %v1083 = vld [vmem:[%s1063 + $0x74] sm:$0xf]
        %v1084 = vld [vmem:[%s1063 + $0x78] sm:$0xff]
        %v1085 = vld [vmem:[%s1063 + $0x80] sm:$0xf]
        %v1086 = vld [vmem:[%s1063 + $0x84] sm:$0xff]
        %v1087 = vld [vmem:[%s1063 + $0x8c] sm:$0xf]
        %v1088 = vld [vmem:[%s1063 + $0x90] sm:$0xff]
        %v1089 = vld [vmem:[%s1063 + $0x98] sm:$0xf]
        %v1090 = vld [vmem:[%s1063 + $0x9c] sm:$0xff]
        %v1091 = vld [vmem:[%s1063 + $0xa4] sm:$0xf]
        %v1092 = vld [vmem:[%s1063 + $0xa8] sm:$0xff]
        %v1093 = vld [vmem:[%s1063 + $0xb0] sm:$0xf]
        %v1094 = vld [vmem:[%s1063 + $0xb4] sm:$0xff]
        %v1095 = vld [vmem:[%s1063 + $0xbc] sm:$0xf]
        %v1128 = vunpack.c.l.b16 %v1064
        %v1129 = vunpack.c.h.b16 %v1064
        %v1130 = vunpack.c.l.b16 %v1065
        %v1131 = vunpack.c.l.b16 %v1066
        %v1132 = vunpack.c.h.b16 %v1066
        %v1133 = vunpack.c.l.b16 %v1067
        %v1134 = vunpack.c.l.b16 %v1068
        %v1135 = vunpack.c.h.b16 %v1068
        %v1136 = vunpack.c.l.b16 %v1069
        %v1137 = vunpack.c.l.b16 %v1070
        %v1138 = vunpack.c.h.b16 %v1070
        %v1139 = vunpack.c.l.b16 %v1071
        %v1140 = vunpack.c.l.b16 %v1072
        %v1141 = vunpack.c.h.b16 %v1072
        %v1142 = vunpack.c.l.b16 %v1073
        %v1143 = vunpack.c.l.b16 %v1074
        %v1144 = vunpack.c.h.b16 %v1074
        %v1145 = vunpack.c.l.b16 %v1075
        %v1146 = vunpack.c.l.b16 %v1076
        %v1147 = vunpack.c.h.b16 %v1076
        %v1148 = vunpack.c.l.b16 %v1077
        %v1149 = vunpack.c.l.b16 %v1078
        %v1150 = vunpack.c.h.b16 %v1078
        %v1151 = vunpack.c.l.b16 %v1079
        %v1152 = vunpack.c.l.b16 %v1080
        %v1153 = vunpack.c.h.b16 %v1080
        %v1154 = vunpack.c.l.b16 %v1081
        %v1155 = vunpack.c.l.b16 %v1082
        %v1156 = vunpack.c.h.b16 %v1082
        %v1157 = vunpack.c.l.b16 %v1083
        %v1158 = vunpack.c.l.b16 %v1084
        %v1159 = vunpack.c.h.b16 %v1084
        %v1160 = vunpack.c.l.b16 %v1085
        %v1161 = vunpack.c.l.b16 %v1086
        %v1162 = vunpack.c.h.b16 %v1086
        %v1163 = vunpack.c.l.b16 %v1087
        %v1164 = vunpack.c.l.b16 %v1088
        %v1165 = vunpack.c.h.b16 %v1088
        %v1166 = vunpack.c.l.b16 %v1089
        %v1167 = vunpack.c.l.b16 %v1090
        %v1168 = vunpack.c.h.b16 %v1090
        %v1169 = vunpack.c.l.b16 %v1091
        %v1170 = vunpack.c.l.b16 %v1092
        %v1171 = vunpack.c.h.b16 %v1092
        %v1172 = vunpack.c.l.b16 %v1093
        %v1173 = vunpack.c.l.b16 %v1094
        %v1174 = vunpack.c.h.b16 %v1094
        %v1175 = vunpack.c.l.b16 %v1095
        %v1176 = vpack.c.b16 %v1131, %v1128
        %v1177 = vpack.c.b16 %v1132, %v1129
        %v1178 = vpack.c.b16 %v1133, %v1130
        %v1179 = vpack.c.b16 %v1137, %v1134
        %v1180 = vpack.c.b16 %v1138, %v1135
        %v1181 = vpack.c.b16 %v1139, %v1136
        %v1182 = vpack.c.b16 %v1143, %v1140
        %v1183 = vpack.c.b16 %v1144, %v1141
        %v1184 = vpack.c.b16 %v1145, %v1142
        %v1185 = vpack.c.b16 %v1149, %v1146
        %v1186 = vpack.c.b16 %v1150, %v1147
        %v1187 = vpack.c.b16 %v1151, %v1148
        %v1188 = vpack.c.b16 %v1155, %v1152
        %v1189 = vpack.c.b16 %v1156, %v1153
        %v1190 = vpack.c.b16 %v1157, %v1154
        %v1191 = vpack.c.b16 %v1161, %v1158
        %v1192 = vpack.c.b16 %v1162, %v1159
        %v1193 = vpack.c.b16 %v1163, %v1160
        %v1194 = vpack.c.b16 %v1167, %v1164
        %v1195 = vpack.c.b16 %v1168, %v1165
        %v1196 = vpack.c.b16 %v1169, %v1166
        %v1197 = vpack.c.b16 %v1173, %v1170
        %v1198 = vpack.c.b16 %v1174, %v1171
        %v1199 = vpack.c.b16 %v1175, %v1172
        %v1217 = vsel %vm784, %v1178, 0
        %v1220 = vsel %vm784, %v1181, 0
        %v1223 = vsel %vm784, %v1184, 0
        %v1226 = vsel %vm784, %v1187, 0
        %v1229 = vsel %vm784, %v1190, 0
        %v1232 = vsel %vm784, %v1193, 0
        %v1235 = vsel %vm784, %v1196, 0
        %v1238 = vsel %vm784, %v1199, 0
        %1240 = vmatprep.subr.bf16.mxu0 0
        %1241 = vmatpush1.bf16.msra.mxu0 %v755
        %1242 = vmatprep.subr.bf16.mxu0 0
        %1243 = vmatpush1.bf16.msra.mxu0 %v754
        %1244 = vmatprep.subr.bf16.mxu0 0
        %1245 = vmatpush1.bf16.msra.mxu0 %v753
        %1246 = vmatprep.subr.bf16.mxu0 0
        %1247 = vmatpush1.bf16.msra.mxu0 %v752
        %1248 = vmatprep.subr.bf16.mxu0 0
        %1249 = vmatpush1.bf16.msra.mxu0 %v751
        %1250 = vmatprep.subr.bf16.mxu0 0
        %1251 = vmatpush1.bf16.msra.mxu0 %v750
        %1252 = vmatprep.subr.bf16.mxu0 0
        %1253 = vmatpush1.bf16.msra.mxu0 %v749
        %1254 = vmatprep.subr.bf16.mxu0 0
        %1255 = vmatpush1.bf16.msra.mxu0 %v748
        %1256 = vmatprep.subr.bf16.mxu0 0
        %1257 = vmatpush2.bf16.msra.mxu0 %v763
        %1258 = vmatprep.subr.bf16.mxu0 0
        %1259 = vmatpush2.bf16.msra.mxu0 %v762
        %1260 = vmatprep.subr.bf16.mxu0 0
        %1261 = vmatpush2.bf16.msra.mxu0 %v761
        %1262 = vmatprep.subr.bf16.mxu0 0
        %1263 = vmatpush2.bf16.msra.mxu0 %v760
        %1264 = vmatprep.subr.bf16.mxu0 0
        %1265 = vmatpush2.bf16.msra.mxu0 %v759
        %1266 = vmatprep.subr.bf16.mxu0 0
        %1267 = vmatpush2.bf16.msra.mxu0 %v758
        %1268 = vmatprep.subr.bf16.mxu0 0
        %1269 = vmatpush2.bf16.msra.mxu0 %v757
        %1270 = vmatprep.subr.bf16.mxu0 0
        %1271 = vmatpush2.bf16.msra.mxu0 %v756
        %1272 = vmatprep.mubr.bf16.mxu0 %v1177
        %1273 = vmatmul.mubr.bf16.gmra.mxu0 %v1176
        %v1274 = vpop.f32.mrf.mxu0
        %v1275 = vadd.f32 0.0, %v1274
        %v1276 = vpop.f32.mrf.mxu0
        %v1277 = vpop.f32.mrf.mxu0
        %v1278 = vadd.f32 0.0, %v1277
        %v1279 = vpop.f32.mrf.mxu0
        %1280 = vmatprep.mubr.bf16.mxu0 %v1180
        %1281 = vmatmul.mubr.bf16.gmra.mxu0 %v1179
        %v1282 = vpop.f32.mrf.mxu0
        %v1283 = vadd.f32 0.0, %v1282
        %v1284 = vpop.f32.mrf.mxu0
        %v1285 = vpop.f32.mrf.mxu0
        %v1286 = vadd.f32 0.0, %v1285
        %v1287 = vpop.f32.mrf.mxu0
        %1288 = vmatprep.mubr.bf16.mxu0 %v1183
        %1289 = vmatmul.mubr.bf16.gmra.mxu0 %v1182
        %v1290 = vpop.f32.mrf.mxu0
        %v1291 = vadd.f32 0.0, %v1290
        %v1292 = vpop.f32.mrf.mxu0
        %v1293 = vpop.f32.mrf.mxu0
        %v1294 = vadd.f32 0.0, %v1293
        %v1295 = vpop.f32.mrf.mxu0
        %1296 = vmatprep.mubr.bf16.mxu0 %v1186
        %1297 = vmatmul.mubr.bf16.gmra.mxu0 %v1185
        %v1298 = vpop.f32.mrf.mxu0
        %v1299 = vadd.f32 0.0, %v1298
        %v1300 = vpop.f32.mrf.mxu0
        %v1301 = vpop.f32.mrf.mxu0
        %v1302 = vadd.f32 0.0, %v1301
        %v1303 = vpop.f32.mrf.mxu0
        %1304 = vmatprep.mubr.bf16.mxu0 %v1189
        %1305 = vmatmul.mubr.bf16.gmra.mxu0 %v1188
        %v1306 = vpop.f32.mrf.mxu0
        %v1307 = vadd.f32 0.0, %v1306
        %v1308 = vpop.f32.mrf.mxu0
        %v1309 = vpop.f32.mrf.mxu0
        %v1310 = vadd.f32 0.0, %v1309
        %v1311 = vpop.f32.mrf.mxu0
        %1312 = vmatprep.mubr.bf16.mxu0 %v1192
        %1313 = vmatmul.mubr.bf16.gmra.mxu0 %v1191
        %v1314 = vpop.f32.mrf.mxu0
        %v1315 = vadd.f32 0.0, %v1314
        %v1316 = vpop.f32.mrf.mxu0
        %v1317 = vpop.f32.mrf.mxu0
        %v1318 = vadd.f32 0.0, %v1317
        %v1319 = vpop.f32.mrf.mxu0
        %1320 = vmatprep.mubr.bf16.mxu0 %v1195
        %1321 = vmatmul.mubr.bf16.gmra.mxu0 %v1194
        %v1322 = vpop.f32.mrf.mxu0
        %v1323 = vadd.f32 0.0, %v1322
        %v1324 = vpop.f32.mrf.mxu0
        %v1325 = vpop.f32.mrf.mxu0
        %v1326 = vadd.f32 0.0, %v1325
        %v1327 = vpop.f32.mrf.mxu0
        %1328 = vmatprep.mubr.bf16.mxu0 %v1198
        %1329 = vmatmul.mubr.bf16.gmra.mxu0 %v1197
        %v1330 = vpop.f32.mrf.mxu0
        %v1331 = vadd.f32 0.0, %v1330
        %v1332 = vpop.f32.mrf.mxu0
        %v1333 = vpop.f32.mrf.mxu0
        %v1334 = vadd.f32 0.0, %v1333
        %v1335 = vpop.f32.mrf.mxu0
        %1336 = vdwg.mxu0
        %1337 = vmatprep.subr.bf16.mxu0 0
        %1338 = vmatpush1.bf16.msra.mxu0 0
        %1339 = vmatprep.subr.bf16.mxu0 0
        %1340 = vmatpush1.bf16.msra.mxu0 0
        %1341 = vmatprep.subr.bf16.mxu0 0
        %1342 = vmatpush1.bf16.msra.mxu0 0
        %1343 = vmatprep.subr.bf16.mxu0 0
        %1344 = vmatpush1.bf16.msra.mxu0 0
        %1345 = vmatprep.subr.bf16.mxu0 0
        %1346 = vmatpush1.bf16.msra.mxu0 0
        %1347 = vmatprep.subr.bf16.mxu0 0
        %1348 = vmatpush1.bf16.msra.mxu0 0
        %1349 = vmatprep.subr.bf16.mxu0 0
        %1350 = vmatpush1.bf16.msra.mxu0 %v765
        %1351 = vmatprep.subr.bf16.mxu0 0
        %1352 = vmatpush1.bf16.msra.mxu0 %v764
        %1353 = vmatprep.subr.bf16.mxu0 0
        %1354 = vmatpush2.bf16.msra.mxu0 0
        %1355 = vmatprep.subr.bf16.mxu0 0
        %1356 = vmatpush2.bf16.msra.mxu0 0
        %1357 = vmatprep.subr.bf16.mxu0 0
        %1358 = vmatpush2.bf16.msra.mxu0 0
        %1359 = vmatprep.subr.bf16.mxu0 0
        %1360 = vmatpush2.bf16.msra.mxu0 0
        %1361 = vmatprep.subr.bf16.mxu0 0
        %1362 = vmatpush2.bf16.msra.mxu0 0
        %1363 = vmatprep.subr.bf16.mxu0 0
        %1364 = vmatpush2.bf16.msra.mxu0 0
        %1365 = vmatprep.subr.bf16.mxu0 0
        %1366 = vmatpush2.bf16.msra.mxu0 0
        %1367 = vmatprep.subr.bf16.mxu0 0
        %1368 = vmatpush2.bf16.msra.mxu0 0
        %1369 = vmatprep.mubr.bf16.mxu0 0
        %1370 = vmatmul.mubr.bf16.gmra.mxu0 %v1217
        %v1371 = vpop.f32.mrf.mxu0
        %v1372 = vadd.f32 %v1275, %v1371
        %v1373 = vpop.f32.mrf.mxu0
        %v1374 = vpop.f32.mrf.mxu0
        %v1375 = vadd.f32 %v1278, %v1374
        %v1376 = vpop.f32.mrf.mxu0
        %1377 = vmatprep.mubr.bf16.mxu0 0
        %1378 = vmatmul.mubr.bf16.gmra.mxu0 %v1220
        %v1379 = vpop.f32.mrf.mxu0
        %v1380 = vadd.f32 %v1283, %v1379
        %v1381 = vpop.f32.mrf.mxu0
        %v1382 = vpop.f32.mrf.mxu0
        %v1383 = vadd.f32 %v1286, %v1382
        %v1384 = vpop.f32.mrf.mxu0
        %1385 = vmatprep.mubr.bf16.mxu0 0
        %1386 = vmatmul.mubr.bf16.gmra.mxu0 %v1223
        %v1387 = vpop.f32.mrf.mxu0
        %v1388 = vadd.f32 %v1291, %v1387
        %v1389 = vpop.f32.mrf.mxu0
        %v1390 = vpop.f32.mrf.mxu0
        %v1391 = vadd.f32 %v1294, %v1390
        %v1392 = vpop.f32.mrf.mxu0
        %1393 = vmatprep.mubr.bf16.mxu0 0
        %1394 = vmatmul.mubr.bf16.gmra.mxu0 %v1226
        %v1395 = vpop.f32.mrf.mxu0
        %v1396 = vadd.f32 %v1299, %v1395
        %v1397 = vpop.f32.mrf.mxu0
        %v1398 = vpop.f32.mrf.mxu0
        %v1399 = vadd.f32 %v1302, %v1398
        %v1400 = vpop.f32.mrf.mxu0
        %1401 = vmatprep.mubr.bf16.mxu0 0
        %1402 = vmatmul.mubr.bf16.gmra.mxu0 %v1229
        %v1403 = vpop.f32.mrf.mxu0
        %v1404 = vadd.f32 %v1307, %v1403
        %v1405 = vpop.f32.mrf.mxu0
        %v1406 = vpop.f32.mrf.mxu0
        %v1407 = vadd.f32 %v1310, %v1406
        %v1408 = vpop.f32.mrf.mxu0
        %1409 = vmatprep.mubr.bf16.mxu0 0
        %1410 = vmatmul.mubr.bf16.gmra.mxu0 %v1232
        %v1411 = vpop.f32.mrf.mxu0
        %v1412 = vadd.f32 %v1315, %v1411
        %v1413 = vpop.f32.mrf.mxu0
        %v1414 = vpop.f32.mrf.mxu0
        %v1415 = vadd.f32 %v1318, %v1414
        %v1416 = vpop.f32.mrf.mxu0
        %1417 = vmatprep.mubr.bf16.mxu0 0
        %1418 = vmatmul.mubr.bf16.gmra.mxu0 %v1235
        %v1419 = vpop.f32.mrf.mxu0
        %v1420 = vadd.f32 %v1323, %v1419
        %v1421 = vpop.f32.mrf.mxu0
        %v1422 = vpop.f32.mrf.mxu0
        %v1423 = vadd.f32 %v1326, %v1422
        %v1424 = vpop.f32.mrf.mxu0
        %1425 = vmatprep.mubr.bf16.mxu0 0
        %1426 = vmatmul.mubr.bf16.gmra.mxu0 %v1238
        %v1427 = vpop.f32.mrf.mxu0
        %v1428 = vadd.f32 %v1331, %v1427
        %v1429 = vpop.f32.mrf.mxu0
        %v1430 = vpop.f32.mrf.mxu0
        %v1431 = vadd.f32 %v1334, %v1430
        %v1432 = vpop.f32.mrf.mxu0
        %1433 = vdwg.mxu0
        %v1434 = vmul.f32 %v1372, %v1007
        %v1435 = vmul.f32 %v1375, %v1007
        %v1436 = vmul.f32 %v1380, %v1007
        %v1437 = vmul.f32 %v1383, %v1007
        %v1438 = vmul.f32 %v1388, %v1007
        %v1439 = vmul.f32 %v1391, %v1007
        %v1440 = vmul.f32 %v1396, %v1007
        %v1441 = vmul.f32 %v1399, %v1007
        %v1442 = vmul.f32 %v1404, %v1007
        %v1443 = vmul.f32 %v1407, %v1007
        %v1444 = vmul.f32 %v1412, %v1007
        %v1445 = vmul.f32 %v1415, %v1007
        %v1446 = vmul.f32 %v1420, %v1007
        %v1447 = vmul.f32 %v1423, %v1007
        %v1448 = vmul.f32 %v1428, %v1007
        %v1449 = vmul.f32 %v1431, %v1007
        %v1450 = vadd.f32 %v1434, %v1029
        %v1451 = vadd.f32 %v1435, %v1029
        %v1452 = vadd.f32 %v1436, %v1029
        %v1453 = vadd.f32 %v1437, %v1029
        %v1454 = vadd.f32 %v1438, %v1029
        %v1455 = vadd.f32 %v1439, %v1029
        %v1456 = vadd.f32 %v1440, %v1029
        %v1457 = vadd.f32 %v1441, %v1029
        %v1458 = vadd.f32 %v1442, %v1029
        %v1459 = vadd.f32 %v1443, %v1029
        %v1460 = vadd.f32 %v1444, %v1029
        %v1461 = vadd.f32 %v1445, %v1029
        %v1462 = vadd.f32 %v1446, %v1029
        %v1463 = vadd.f32 %v1447, %v1029
        %v1464 = vadd.f32 %v1448, %v1029
        %v1465 = vadd.f32 %v1449, %v1029
        %v1466 = vtanh.pop %v1450
        %v1467 = vtanh.pop %v1451
        %v1468 = vtanh.pop %v1452
        %v1469 = vtanh.pop %v1453
        %v1470 = vtanh.pop %v1454
        %v1471 = vtanh.pop %v1455
        %v1472 = vtanh.pop %v1456
        %v1473 = vtanh.pop %v1457
        %v1474 = vtanh.pop %v1458
        %v1475 = vtanh.pop %v1459
        %v1476 = vtanh.pop %v1460
        %v1477 = vtanh.pop %v1461
        %v1478 = vtanh.pop %v1462
        %v1479 = vtanh.pop %v1463
        %v1480 = vtanh.pop %v1464
        %v1481 = vtanh.pop %v1465
        %v1482 = vmax.f32 %v1047, %v1466
        %v1483 = vmax.f32 %v1048, %v1467
        %v1484 = vmax.f32 %v1049, %v1468
        %v1485 = vmax.f32 %v1050, %v1469
        %v1486 = vmax.f32 %v1051, %v1470
        %v1487 = vmax.f32 %v1052, %v1471
        %v1488 = vmax.f32 %v1053, %v1472
        %v1489 = vmax.f32 %v1054, %v1473
        %v1490 = vmax.f32 %v1055, %v1474
        %v1491 = vmax.f32 %v1056, %v1475
        %v1492 = vmax.f32 %v1057, %v1476
        %v1493 = vmax.f32 %v1058, %v1477
        %v1494 = vmax.f32 %v1059, %v1478
        %v1495 = vmax.f32 %v1060, %v1479
        %v1496 = vmax.f32 %v1061, %v1480
        %v1497 = vmax.f32 %v1062, %v1481
        %s1498 = scalar_lea.vmem %s455, 384 [#allocation2]
        %v1499 = vld [vmem:[%s1498] sm:$0xff]
        %v1500 = vld [vmem:[%s1498 + $0x8] sm:$0xf]
        %v1501 = vld [vmem:[%s1498 + $0xc] sm:$0xff]
        %v1502 = vld [vmem:[%s1498 + $0x14] sm:$0xf]
        %v1503 = vld [vmem:[%s1498 + $0x18] sm:$0xff]
        %v1504 = vld [vmem:[%s1498 + $0x20] sm:$0xf]
        %v1505 = vld [vmem:[%s1498 + $0x24] sm:$0xff]
        %v1506 = vld [vmem:[%s1498 + $0x2c] sm:$0xf]
        %v1507 = vld [vmem:[%s1498 + $0x30] sm:$0xff]
        %v1508 = vld [vmem:[%s1498 + $0x38] sm:$0xf]
        %v1509 = vld [vmem:[%s1498 + $0x3c] sm:$0xff]
        %v1510 = vld [vmem:[%s1498 + $0x44] sm:$0xf]
        %v1511 = vld [vmem:[%s1498 + $0x48] sm:$0xff]
        %v1512 = vld [vmem:[%s1498 + $0x50] sm:$0xf]
        %v1513 = vld [vmem:[%s1498 + $0x54] sm:$0xff]
        %v1514 = vld [vmem:[%s1498 + $0x5c] sm:$0xf]
        %v1515 = vld [vmem:[%s1498 + $0x60] sm:$0xff]
        %v1516 = vld [vmem:[%s1498 + $0x68] sm:$0xf]
        %v1517 = vld [vmem:[%s1498 + $0x6c] sm:$0xff]
        %v1518 = vld [vmem:[%s1498 + $0x74] sm:$0xf]
        %v1519 = vld [vmem:[%s1498 + $0x78] sm:$0xff]
        %v1520 = vld [vmem:[%s1498 + $0x80] sm:$0xf]
        %v1521 = vld [vmem:[%s1498 + $0x84] sm:$0xff]
        %v1522 = vld [vmem:[%s1498 + $0x8c] sm:$0xf]
        %v1523 = vld [vmem:[%s1498 + $0x90] sm:$0xff]
        %v1524 = vld [vmem:[%s1498 + $0x98] sm:$0xf]
        %v1525 = vld [vmem:[%s1498 + $0x9c] sm:$0xff]
        %v1526 = vld [vmem:[%s1498 + $0xa4] sm:$0xf]
        %v1527 = vld [vmem:[%s1498 + $0xa8] sm:$0xff]
        %v1528 = vld [vmem:[%s1498 + $0xb0] sm:$0xf]
        %v1529 = vld [vmem:[%s1498 + $0xb4] sm:$0xff]
        %v1530 = vld [vmem:[%s1498 + $0xbc] sm:$0xf]
        %v1563 = vunpack.c.l.b16 %v1499
        %v1564 = vunpack.c.h.b16 %v1499
        %v1565 = vunpack.c.l.b16 %v1500
        %v1566 = vunpack.c.l.b16 %v1501
        %v1567 = vunpack.c.h.b16 %v1501
        %v1568 = vunpack.c.l.b16 %v1502
        %v1569 = vunpack.c.l.b16 %v1503
        %v1570 = vunpack.c.h.b16 %v1503
        %v1571 = vunpack.c.l.b16 %v1504
        %v1572 = vunpack.c.l.b16 %v1505
        %v1573 = vunpack.c.h.b16 %v1505
        %v1574 = vunpack.c.l.b16 %v1506
        %v1575 = vunpack.c.l.b16 %v1507
        %v1576 = vunpack.c.h.b16 %v1507
        %v1577 = vunpack.c.l.b16 %v1508
        %v1578 = vunpack.c.l.b16 %v1509
        %v1579 = vunpack.c.h.b16 %v1509
        %v1580 = vunpack.c.l.b16 %v1510
        %v1581 = vunpack.c.l.b16 %v1511
        %v1582 = vunpack.c.h.b16 %v1511
        %v1583 = vunpack.c.l.b16 %v1512
        %v1584 = vunpack.c.l.b16 %v1513
        %v1585 = vunpack.c.h.b16 %v1513
        %v1586 = vunpack.c.l.b16 %v1514
        %v1587 = vunpack.c.l.b16 %v1515
        %v1588 = vunpack.c.h.b16 %v1515
        %v1589 = vunpack.c.l.b16 %v1516
        %v1590 = vunpack.c.l.b16 %v1517
        %v1591 = vunpack.c.h.b16 %v1517
        %v1592 = vunpack.c.l.b16 %v1518
        %v1593 = vunpack.c.l.b16 %v1519
        %v1594 = vunpack.c.h.b16 %v1519
        %v1595 = vunpack.c.l.b16 %v1520
        %v1596 = vunpack.c.l.b16 %v1521
        %v1597 = vunpack.c.h.b16 %v1521
        %v1598 = vunpack.c.l.b16 %v1522
        %v1599 = vunpack.c.l.b16 %v1523
        %v1600 = vunpack.c.h.b16 %v1523
        %v1601 = vunpack.c.l.b16 %v1524
        %v1602 = vunpack.c.l.b16 %v1525
        %v1603 = vunpack.c.h.b16 %v1525
        %v1604 = vunpack.c.l.b16 %v1526
        %v1605 = vunpack.c.l.b16 %v1527
        %v1606 = vunpack.c.h.b16 %v1527
        %v1607 = vunpack.c.l.b16 %v1528
        %v1608 = vunpack.c.l.b16 %v1529
        %v1609 = vunpack.c.h.b16 %v1529
        %v1610 = vunpack.c.l.b16 %v1530
        %v1611 = vpack.c.b16 %v1566, %v1563
        %v1612 = vpack.c.b16 %v1567, %v1564
        %v1613 = vpack.c.b16 %v1568, %v1565
        %v1614 = vpack.c.b16 %v1572, %v1569
        %v1615 = vpack.c.b16 %v1573, %v1570
        %v1616 = vpack.c.b16 %v1574, %v1571
        %v1617 = vpack.c.b16 %v1578, %v1575
        %v1618 = vpack.c.b16 %v1579, %v1576
        %v1619 = vpack.c.b16 %v1580, %v1577
        %v1620 = vpack.c.b16 %v1584, %v1581
        %v1621 = vpack.c.b16 %v1585, %v1582
        %v1622 = vpack.c.b16 %v1586, %v1583
        %v1623 = vpack.c.b16 %v1590, %v1587
        %v1624 = vpack.c.b16 %v1591, %v1588
        %v1625 = vpack.c.b16 %v1592, %v1589
        %v1626 = vpack.c.b16 %v1596, %v1593
        %v1627 = vpack.c.b16 %v1597, %v1594
        %v1628 = vpack.c.b16 %v1598, %v1595
        %v1629 = vpack.c.b16 %v1602, %v1599
        %v1630 = vpack.c.b16 %v1603, %v1600
        %v1631 = vpack.c.b16 %v1604, %v1601
        %v1632 = vpack.c.b16 %v1608, %v1605
        %v1633 = vpack.c.b16 %v1609, %v1606
        %v1634 = vpack.c.b16 %v1610, %v1607
        %v1652 = vsel %vm784, %v1613, 0
        %v1655 = vsel %vm784, %v1616, 0
        %v1658 = vsel %vm784, %v1619, 0
        %v1661 = vsel %vm784, %v1622, 0
        %v1664 = vsel %vm784, %v1625, 0
        %v1667 = vsel %vm784, %v1628, 0
        %v1670 = vsel %vm784, %v1631, 0
        %v1673 = vsel %vm784, %v1634, 0
        %1675 = vmatprep.subr.bf16.mxu0 0
        %1676 = vmatpush1.bf16.msra.mxu0 %v755
        %1677 = vmatprep.subr.bf16.mxu0 0
        %1678 = vmatpush1.bf16.msra.mxu0 %v754
        %1679 = vmatprep.subr.bf16.mxu0 0
        %1680 = vmatpush1.bf16.msra.mxu0 %v753
        %1681 = vmatprep.subr.bf16.mxu0 0
        %1682 = vmatpush1.bf16.msra.mxu0 %v752
        %1683 = vmatprep.subr.bf16.mxu0 0
        %1684 = vmatpush1.bf16.msra.mxu0 %v751
        %1685 = vmatprep.subr.bf16.mxu0 0
        %1686 = vmatpush1.bf16.msra.mxu0 %v750
        %1687 = vmatprep.subr.bf16.mxu0 0
        %1688 = vmatpush1.bf16.msra.mxu0 %v749
        %1689 = vmatprep.subr.bf16.mxu0 0
        %1690 = vmatpush1.bf16.msra.mxu0 %v748
        %1691 = vmatprep.subr.bf16.mxu0 0
        %1692 = vmatpush2.bf16.msra.mxu0 %v763
        %1693 = vmatprep.subr.bf16.mxu0 0
        %1694 = vmatpush2.bf16.msra.mxu0 %v762
        %1695 = vmatprep.subr.bf16.mxu0 0
        %1696 = vmatpush2.bf16.msra.mxu0 %v761
        %1697 = vmatprep.subr.bf16.mxu0 0
        %1698 = vmatpush2.bf16.msra.mxu0 %v760
        %1699 = vmatprep.subr.bf16.mxu0 0
        %1700 = vmatpush2.bf16.msra.mxu0 %v759
        %1701 = vmatprep.subr.bf16.mxu0 0
        %1702 = vmatpush2.bf16.msra.mxu0 %v758
        %1703 = vmatprep.subr.bf16.mxu0 0
        %1704 = vmatpush2.bf16.msra.mxu0 %v757
        %1705 = vmatprep.subr.bf16.mxu0 0
        %1706 = vmatpush2.bf16.msra.mxu0 %v756
        %1707 = vmatprep.mubr.bf16.mxu0 %v1612
        %1708 = vmatmul.mubr.bf16.gmra.mxu0 %v1611
        %v1709 = vpop.f32.mrf.mxu0
        %v1710 = vadd.f32 0.0, %v1709
        %v1711 = vpop.f32.mrf.mxu0
        %v1712 = vpop.f32.mrf.mxu0
        %v1713 = vadd.f32 0.0, %v1712
        %v1714 = vpop.f32.mrf.mxu0
        %1715 = vmatprep.mubr.bf16.mxu0 %v1615
        %1716 = vmatmul.mubr.bf16.gmra.mxu0 %v1614
        %v1717 = vpop.f32.mrf.mxu0
        %v1718 = vadd.f32 0.0, %v1717
        %v1719 = vpop.f32.mrf.mxu0
        %v1720 = vpop.f32.mrf.mxu0
        %v1721 = vadd.f32 0.0, %v1720
        %v1722 = vpop.f32.mrf.mxu0
        %1723 = vmatprep.mubr.bf16.mxu0 %v1618
        %1724 = vmatmul.mubr.bf16.gmra.mxu0 %v1617
        %v1725 = vpop.f32.mrf.mxu0
        %v1726 = vadd.f32 0.0, %v1725
        %v1727 = vpop.f32.mrf.mxu0
        %v1728 = vpop.f32.mrf.mxu0
        %v1729 = vadd.f32 0.0, %v1728
        %v1730 = vpop.f32.mrf.mxu0
        %1731 = vmatprep.mubr.bf16.mxu0 %v1621
        %1732 = vmatmul.mubr.bf16.gmra.mxu0 %v1620
        %v1733 = vpop.f32.mrf.mxu0
        %v1734 = vadd.f32 0.0, %v1733
        %v1735 = vpop.f32.mrf.mxu0
        %v1736 = vpop.f32.mrf.mxu0
        %v1737 = vadd.f32 0.0, %v1736
        %v1738 = vpop.f32.mrf.mxu0
        %1739 = vmatprep.mubr.bf16.mxu0 %v1624
        %1740 = vmatmul.mubr.bf16.gmra.mxu0 %v1623
        %v1741 = vpop.f32.mrf.mxu0
        %v1742 = vadd.f32 0.0, %v1741
        %v1743 = vpop.f32.mrf.mxu0
        %v1744 = vpop.f32.mrf.mxu0
        %v1745 = vadd.f32 0.0, %v1744
        %v1746 = vpop.f32.mrf.mxu0
        %1747 = vmatprep.mubr.bf16.mxu0 %v1627
        %1748 = vmatmul.mubr.bf16.gmra.mxu0 %v1626
        %v1749 = vpop.f32.mrf.mxu0
        %v1750 = vadd.f32 0.0, %v1749
        %v1751 = vpop.f32.mrf.mxu0
        %v1752 = vpop.f32.mrf.mxu0
        %v1753 = vadd.f32 0.0, %v1752
        %v1754 = vpop.f32.mrf.mxu0
        %1755 = vmatprep.mubr.bf16.mxu0 %v1630
        %1756 = vmatmul.mubr.bf16.gmra.mxu0 %v1629
        %v1757 = vpop.f32.mrf.mxu0
        %v1758 = vadd.f32 0.0, %v1757
        %v1759 = vpop.f32.mrf.mxu0
        %v1760 = vpop.f32.mrf.mxu0
        %v1761 = vadd.f32 0.0, %v1760
        %v1762 = vpop.f32.mrf.mxu0
        %1763 = vmatprep.mubr.bf16.mxu0 %v1633
        %1764 = vmatmul.mubr.bf16.gmra.mxu0 %v1632
        %v1765 = vpop.f32.mrf.mxu0
        %v1766 = vadd.f32 0.0, %v1765
        %v1767 = vpop.f32.mrf.mxu0
        %v1768 = vpop.f32.mrf.mxu0
        %v1769 = vadd.f32 0.0, %v1768
        %v1770 = vpop.f32.mrf.mxu0
        %1771 = vdwg.mxu0
        %1772 = vmatprep.subr.bf16.mxu0 0
        %1773 = vmatpush1.bf16.msra.mxu0 0
        %1774 = vmatprep.subr.bf16.mxu0 0
        %1775 = vmatpush1.bf16.msra.mxu0 0
        %1776 = vmatprep.subr.bf16.mxu0 0
        %1777 = vmatpush1.bf16.msra.mxu0 0
        %1778 = vmatprep.subr.bf16.mxu0 0
        %1779 = vmatpush1.bf16.msra.mxu0 0
        %1780 = vmatprep.subr.bf16.mxu0 0
        %1781 = vmatpush1.bf16.msra.mxu0 0
        %1782 = vmatprep.subr.bf16.mxu0 0
        %1783 = vmatpush1.bf16.msra.mxu0 0
        %1784 = vmatprep.subr.bf16.mxu0 0
        %1785 = vmatpush1.bf16.msra.mxu0 %v765
        %1786 = vmatprep.subr.bf16.mxu0 0
        %1787 = vmatpush1.bf16.msra.mxu0 %v764
        %1788 = vmatprep.subr.bf16.mxu0 0
        %1789 = vmatpush2.bf16.msra.mxu0 0
        %1790 = vmatprep.subr.bf16.mxu0 0
        %1791 = vmatpush2.bf16.msra.mxu0 0
        %1792 = vmatprep.subr.bf16.mxu0 0
        %1793 = vmatpush2.bf16.msra.mxu0 0
        %1794 = vmatprep.subr.bf16.mxu0 0
        %1795 = vmatpush2.bf16.msra.mxu0 0
        %1796 = vmatprep.subr.bf16.mxu0 0
        %1797 = vmatpush2.bf16.msra.mxu0 0
        %1798 = vmatprep.subr.bf16.mxu0 0
        %1799 = vmatpush2.bf16.msra.mxu0 0
        %1800 = vmatprep.subr.bf16.mxu0 0
        %1801 = vmatpush2.bf16.msra.mxu0 0
        %1802 = vmatprep.subr.bf16.mxu0 0
        %1803 = vmatpush2.bf16.msra.mxu0 0
        %1804 = vmatprep.mubr.bf16.mxu0 0
        %1805 = vmatmul.mubr.bf16.gmra.mxu0 %v1652
        %v1806 = vpop.f32.mrf.mxu0
        %v1807 = vadd.f32 %v1710, %v1806
        %v1808 = vpop.f32.mrf.mxu0
        %v1809 = vpop.f32.mrf.mxu0
        %v1810 = vadd.f32 %v1713, %v1809
        %v1811 = vpop.f32.mrf.mxu0
        %1812 = vmatprep.mubr.bf16.mxu0 0
        %1813 = vmatmul.mubr.bf16.gmra.mxu0 %v1655
        %v1814 = vpop.f32.mrf.mxu0
        %v1815 = vadd.f32 %v1718, %v1814
        %v1816 = vpop.f32.mrf.mxu0
        %v1817 = vpop.f32.mrf.mxu0
        %v1818 = vadd.f32 %v1721, %v1817
        %v1819 = vpop.f32.mrf.mxu0
        %1820 = vmatprep.mubr.bf16.mxu0 0
        %1821 = vmatmul.mubr.bf16.gmra.mxu0 %v1658
        %v1822 = vpop.f32.mrf.mxu0
        %v1823 = vadd.f32 %v1726, %v1822
        %v1824 = vpop.f32.mrf.mxu0
        %v1825 = vpop.f32.mrf.mxu0
        %v1826 = vadd.f32 %v1729, %v1825
        %v1827 = vpop.f32.mrf.mxu0
        %1828 = vmatprep.mubr.bf16.mxu0 0
        %1829 = vmatmul.mubr.bf16.gmra.mxu0 %v1661
        %v1830 = vpop.f32.mrf.mxu0
        %v1831 = vadd.f32 %v1734, %v1830
        %v1832 = vpop.f32.mrf.mxu0
        %v1833 = vpop.f32.mrf.mxu0
        %v1834 = vadd.f32 %v1737, %v1833
        %v1835 = vpop.f32.mrf.mxu0
        %1836 = vmatprep.mubr.bf16.mxu0 0
        %1837 = vmatmul.mubr.bf16.gmra.mxu0 %v1664
        %v1838 = vpop.f32.mrf.mxu0
        %v1839 = vadd.f32 %v1742, %v1838
        %v1840 = vpop.f32.mrf.mxu0
        %v1841 = vpop.f32.mrf.mxu0
        %v1842 = vadd.f32 %v1745, %v1841
        %v1843 = vpop.f32.mrf.mxu0
        %1844 = vmatprep.mubr.bf16.mxu0 0
        %1845 = vmatmul.mubr.bf16.gmra.mxu0 %v1667
        %v1846 = vpop.f32.mrf.mxu0
        %v1847 = vadd.f32 %v1750, %v1846
        %v1848 = vpop.f32.mrf.mxu0
        %v1849 = vpop.f32.mrf.mxu0
        %v1850 = vadd.f32 %v1753, %v1849
        %v1851 = vpop.f32.mrf.mxu0
        %1852 = vmatprep.mubr.bf16.mxu0 0
        %1853 = vmatmul.mubr.bf16.gmra.mxu0 %v1670
        %v1854 = vpop.f32.mrf.mxu0
        %v1855 = vadd.f32 %v1758, %v1854
        %v1856 = vpop.f32.mrf.mxu0
        %v1857 = vpop.f32.mrf.mxu0
        %v1858 = vadd.f32 %v1761, %v1857
        %v1859 = vpop.f32.mrf.mxu0
        %1860 = vmatprep.mubr.bf16.mxu0 0
        %1861 = vmatmul.mubr.bf16.gmra.mxu0 %v1673
        %v1862 = vpop.f32.mrf.mxu0
        %v1863 = vadd.f32 %v1766, %v1862
        %v1864 = vpop.f32.mrf.mxu0
        %v1865 = vpop.f32.mrf.mxu0
        %v1866 = vadd.f32 %v1769, %v1865
        %v1867 = vpop.f32.mrf.mxu0
        %1868 = vdwg.mxu0
        %v1869 = vmul.f32 %v1807, %v1007
        %v1870 = vmul.f32 %v1810, %v1007
        %v1871 = vmul.f32 %v1815, %v1007
        %v1872 = vmul.f32 %v1818, %v1007
        %v1873 = vmul.f32 %v1823, %v1007
        %v1874 = vmul.f32 %v1826, %v1007
        %v1875 = vmul.f32 %v1831, %v1007
        %v1876 = vmul.f32 %v1834, %v1007
        %v1877 = vmul.f32 %v1839, %v1007
        %v1878 = vmul.f32 %v1842, %v1007
        %v1879 = vmul.f32 %v1847, %v1007
        %v1880 = vmul.f32 %v1850, %v1007
        %v1881 = vmul.f32 %v1855, %v1007
        %v1882 = vmul.f32 %v1858, %v1007
        %v1883 = vmul.f32 %v1863, %v1007
        %v1884 = vmul.f32 %v1866, %v1007
        %v1885 = vadd.f32 %v1869, %v1029
        %v1886 = vadd.f32 %v1870, %v1029
        %v1887 = vadd.f32 %v1871, %v1029
        %v1888 = vadd.f32 %v1872, %v1029
        %v1889 = vadd.f32 %v1873, %v1029
        %v1890 = vadd.f32 %v1874, %v1029
        %v1891 = vadd.f32 %v1875, %v1029
        %v1892 = vadd.f32 %v1876, %v1029
        %v1893 = vadd.f32 %v1877, %v1029
        %v1894 = vadd.f32 %v1878, %v1029
        %v1895 = vadd.f32 %v1879, %v1029
        %v1896 = vadd.f32 %v1880, %v1029
        %v1897 = vadd.f32 %v1881, %v1029
        %v1898 = vadd.f32 %v1882, %v1029
        %v1899 = vadd.f32 %v1883, %v1029
        %v1900 = vadd.f32 %v1884, %v1029
        %v1901 = vtanh.pop %v1885
        %v1902 = vtanh.pop %v1886
        %v1903 = vtanh.pop %v1887
        %v1904 = vtanh.pop %v1888
        %v1905 = vtanh.pop %v1889
        %v1906 = vtanh.pop %v1890
        %v1907 = vtanh.pop %v1891
        %v1908 = vtanh.pop %v1892
        %v1909 = vtanh.pop %v1893
        %v1910 = vtanh.pop %v1894
        %v1911 = vtanh.pop %v1895
        %v1912 = vtanh.pop %v1896
        %v1913 = vtanh.pop %v1897
        %v1914 = vtanh.pop %v1898
        %v1915 = vtanh.pop %v1899
        %v1916 = vtanh.pop %v1900
        %s1917 = scalar_lea.vmem %s455, 576 [#allocation2]
        %v1918 = vld [vmem:[%s1917] sm:$0xff]
        %v1919 = vld [vmem:[%s1917 + $0x8] sm:$0xf]
        %v1920 = vld [vmem:[%s1917 + $0xc] sm:$0xff]
        %v1921 = vld [vmem:[%s1917 + $0x14] sm:$0xf]
        %v1922 = vld [vmem:[%s1917 + $0x18] sm:$0xff]
        %v1923 = vld [vmem:[%s1917 + $0x20] sm:$0xf]
        %v1924 = vld [vmem:[%s1917 + $0x24] sm:$0xff]
        %v1925 = vld [vmem:[%s1917 + $0x2c] sm:$0xf]
        %v1926 = vld [vmem:[%s1917 + $0x30] sm:$0xff]
        %v1927 = vld [vmem:[%s1917 + $0x38] sm:$0xf]
        %v1928 = vld [vmem:[%s1917 + $0x3c] sm:$0xff]
        %v1929 = vld [vmem:[%s1917 + $0x44] sm:$0xf]
        %v1930 = vld [vmem:[%s1917 + $0x48] sm:$0xff]
        %v1931 = vld [vmem:[%s1917 + $0x50] sm:$0xf]
        %v1932 = vld [vmem:[%s1917 + $0x54] sm:$0xff]
        %v1933 = vld [vmem:[%s1917 + $0x5c] sm:$0xf]
        %v1934 = vld [vmem:[%s1917 + $0x60] sm:$0xff]
        %v1935 = vld [vmem:[%s1917 + $0x68] sm:$0xf]
        %v1936 = vld [vmem:[%s1917 + $0x6c] sm:$0xff]
        %v1937 = vld [vmem:[%s1917 + $0x74] sm:$0xf]
        %v1938 = vld [vmem:[%s1917 + $0x78] sm:$0xff]
        %v1939 = vld [vmem:[%s1917 + $0x80] sm:$0xf]
        %v1940 = vld [vmem:[%s1917 + $0x84] sm:$0xff]
        %v1941 = vld [vmem:[%s1917 + $0x8c] sm:$0xf]
        %v1942 = vld [vmem:[%s1917 + $0x90] sm:$0xff]
        %v1943 = vld [vmem:[%s1917 + $0x98] sm:$0xf]
        %v1944 = vld [vmem:[%s1917 + $0x9c] sm:$0xff]
        %v1945 = vld [vmem:[%s1917 + $0xa4] sm:$0xf]
        %v1946 = vld [vmem:[%s1917 + $0xa8] sm:$0xff]
        %v1947 = vld [vmem:[%s1917 + $0xb0] sm:$0xf]
        %v1948 = vld [vmem:[%s1917 + $0xb4] sm:$0xff]
        %v1949 = vld [vmem:[%s1917 + $0xbc] sm:$0xf]
        %v1982 = vunpack.c.l.b16 %v1918
        %v1983 = vunpack.c.h.b16 %v1918
        %v1984 = vunpack.c.l.b16 %v1919
        %v1985 = vunpack.c.l.b16 %v1920
        %v1986 = vunpack.c.h.b16 %v1920
        %v1987 = vunpack.c.l.b16 %v1921
        %v1988 = vunpack.c.l.b16 %v1922
        %v1989 = vunpack.c.h.b16 %v1922
        %v1990 = vunpack.c.l.b16 %v1923
        %v1991 = vunpack.c.l.b16 %v1924
        %v1992 = vunpack.c.h.b16 %v1924
        %v1993 = vunpack.c.l.b16 %v1925
        %v1994 = vunpack.c.l.b16 %v1926
        %v1995 = vunpack.c.h.b16 %v1926
        %v1996 = vunpack.c.l.b16 %v1927
        %v1997 = vunpack.c.l.b16 %v1928
        %v1998 = vunpack.c.h.b16 %v1928
        %v1999 = vunpack.c.l.b16 %v1929
        %v2000 = vunpack.c.l.b16 %v1930
        %v2001 = vunpack.c.h.b16 %v1930
        %v2002 = vunpack.c.l.b16 %v1931
        %v2003 = vunpack.c.l.b16 %v1932
        %v2004 = vunpack.c.h.b16 %v1932
        %v2005 = vunpack.c.l.b16 %v1933
        %v2006 = vunpack.c.l.b16 %v1934
        %v2007 = vunpack.c.h.b16 %v1934
        %v2008 = vunpack.c.l.b16 %v1935
        %v2009 = vunpack.c.l.b16 %v1936
        %v2010 = vunpack.c.h.b16 %v1936
        %v2011 = vunpack.c.l.b16 %v1937
        %v2012 = vunpack.c.l.b16 %v1938
        %v2013 = vunpack.c.h.b16 %v1938
        %v2014 = vunpack.c.l.b16 %v1939
        %v2015 = vunpack.c.l.b16 %v1940
        %v2016 = vunpack.c.h.b16 %v1940
        %v2017 = vunpack.c.l.b16 %v1941
        %v2018 = vunpack.c.l.b16 %v1942
        %v2019 = vunpack.c.h.b16 %v1942
        %v2020 = vunpack.c.l.b16 %v1943
        %v2021 = vunpack.c.l.b16 %v1944
        %v2022 = vunpack.c.h.b16 %v1944
        %v2023 = vunpack.c.l.b16 %v1945
        %v2024 = vunpack.c.l.b16 %v1946
        %v2025 = vunpack.c.h.b16 %v1946
        %v2026 = vunpack.c.l.b16 %v1947
        %v2027 = vunpack.c.l.b16 %v1948
        %v2028 = vunpack.c.h.b16 %v1948
        %v2029 = vunpack.c.l.b16 %v1949
        %v2030 = vpack.c.b16 %v1985, %v1982
        %v2031 = vpack.c.b16 %v1986, %v1983
        %v2032 = vpack.c.b16 %v1987, %v1984
        %v2033 = vpack.c.b16 %v1991, %v1988
        %v2034 = vpack.c.b16 %v1992, %v1989
        %v2035 = vpack.c.b16 %v1993, %v1990
        %v2036 = vpack.c.b16 %v1997, %v1994
        %v2037 = vpack.c.b16 %v1998, %v1995
        %v2038 = vpack.c.b16 %v1999, %v1996
        %v2039 = vpack.c.b16 %v2003, %v2000
        %v2040 = vpack.c.b16 %v2004, %v2001
        %v2041 = vpack.c.b16 %v2005, %v2002
        %v2042 = vpack.c.b16 %v2009, %v2006
        %v2043 = vpack.c.b16 %v2010, %v2007
        %v2044 = vpack.c.b16 %v2011, %v2008
        %v2045 = vpack.c.b16 %v2015, %v2012
        %v2046 = vpack.c.b16 %v2016, %v2013
        %v2047 = vpack.c.b16 %v2017, %v2014
        %v2048 = vpack.c.b16 %v2021, %v2018
        %v2049 = vpack.c.b16 %v2022, %v2019
        %v2050 = vpack.c.b16 %v2023, %v2020
        %v2051 = vpack.c.b16 %v2027, %v2024
        %v2052 = vpack.c.b16 %v2028, %v2025
        %v2053 = vpack.c.b16 %v2029, %v2026
        %v2071 = vsel %vm784, %v2032, 0
        %v2074 = vsel %vm784, %v2035, 0
        %v2077 = vsel %vm784, %v2038, 0
        %v2080 = vsel %vm784, %v2041, 0
        %v2083 = vsel %vm784, %v2044, 0
        %v2086 = vsel %vm784, %v2047, 0
        %v2089 = vsel %vm784, %v2050, 0
        %v2092 = vsel %vm784, %v2053, 0
        %2094 = vmatprep.subr.bf16.mxu0 0
        %2095 = vmatpush1.bf16.msra.mxu0 %v755
        %2096 = vmatprep.subr.bf16.mxu0 0
        %2097 = vmatpush1.bf16.msra.mxu0 %v754
        %2098 = vmatprep.subr.bf16.mxu0 0
        %2099 = vmatpush1.bf16.msra.mxu0 %v753
        %2100 = vmatprep.subr.bf16.mxu0 0
        %2101 = vmatpush1.bf16.msra.mxu0 %v752
        %2102 = vmatprep.subr.bf16.mxu0 0
        %2103 = vmatpush1.bf16.msra.mxu0 %v751
        %2104 = vmatprep.subr.bf16.mxu0 0
        %2105 = vmatpush1.bf16.msra.mxu0 %v750
        %2106 = vmatprep.subr.bf16.mxu0 0
        %2107 = vmatpush1.bf16.msra.mxu0 %v749
        %2108 = vmatprep.subr.bf16.mxu0 0
        %2109 = vmatpush1.bf16.msra.mxu0 %v748
        %2110 = vmatprep.subr.bf16.mxu0 0
        %2111 = vmatpush2.bf16.msra.mxu0 %v763
        %2112 = vmatprep.subr.bf16.mxu0 0
        %2113 = vmatpush2.bf16.msra.mxu0 %v762
        %2114 = vmatprep.subr.bf16.mxu0 0
        %2115 = vmatpush2.bf16.msra.mxu0 %v761
        %2116 = vmatprep.subr.bf16.mxu0 0
        %2117 = vmatpush2.bf16.msra.mxu0 %v760
        %2118 = vmatprep.subr.bf16.mxu0 0
        %2119 = vmatpush2.bf16.msra.mxu0 %v759
        %2120 = vmatprep.subr.bf16.mxu0 0
        %2121 = vmatpush2.bf16.msra.mxu0 %v758
        %2122 = vmatprep.subr.bf16.mxu0 0
        %2123 = vmatpush2.bf16.msra.mxu0 %v757
        %2124 = vmatprep.subr.bf16.mxu0 0
        %2125 = vmatpush2.bf16.msra.mxu0 %v756
        %2126 = vmatprep.mubr.bf16.mxu0 %v2031
        %2127 = vmatmul.mubr.bf16.gmra.mxu0 %v2030
        %v2128 = vpop.f32.mrf.mxu0
        %v2129 = vadd.f32 0.0, %v2128
        %v2130 = vpop.f32.mrf.mxu0
        %v2131 = vpop.f32.mrf.mxu0
        %v2132 = vadd.f32 0.0, %v2131
        %v2133 = vpop.f32.mrf.mxu0
        %2134 = vmatprep.mubr.bf16.mxu0 %v2034
        %2135 = vmatmul.mubr.bf16.gmra.mxu0 %v2033
        %v2136 = vpop.f32.mrf.mxu0
        %v2137 = vadd.f32 0.0, %v2136
        %v2138 = vpop.f32.mrf.mxu0
        %v2139 = vpop.f32.mrf.mxu0
        %v2140 = vadd.f32 0.0, %v2139
        %v2141 = vpop.f32.mrf.mxu0
        %2142 = vmatprep.mubr.bf16.mxu0 %v2037
        %2143 = vmatmul.mubr.bf16.gmra.mxu0 %v2036
        %v2144 = vpop.f32.mrf.mxu0
        %v2145 = vadd.f32 0.0, %v2144
        %v2146 = vpop.f32.mrf.mxu0
        %v2147 = vpop.f32.mrf.mxu0
        %v2148 = vadd.f32 0.0, %v2147
        %v2149 = vpop.f32.mrf.mxu0
        %2150 = vmatprep.mubr.bf16.mxu0 %v2040
        %2151 = vmatmul.mubr.bf16.gmra.mxu0 %v2039
        %v2152 = vpop.f32.mrf.mxu0
        %v2153 = vadd.f32 0.0, %v2152
        %v2154 = vpop.f32.mrf.mxu0
        %v2155 = vpop.f32.mrf.mxu0
        %v2156 = vadd.f32 0.0, %v2155
        %v2157 = vpop.f32.mrf.mxu0
        %2158 = vmatprep.mubr.bf16.mxu0 %v2043
        %2159 = vmatmul.mubr.bf16.gmra.mxu0 %v2042
        %v2160 = vpop.f32.mrf.mxu0
        %v2161 = vadd.f32 0.0, %v2160
        %v2162 = vpop.f32.mrf.mxu0
        %v2163 = vpop.f32.mrf.mxu0
        %v2164 = vadd.f32 0.0, %v2163
        %v2165 = vpop.f32.mrf.mxu0
        %2166 = vmatprep.mubr.bf16.mxu0 %v2046
        %2167 = vmatmul.mubr.bf16.gmra.mxu0 %v2045
        %v2168 = vpop.f32.mrf.mxu0
        %v2169 = vadd.f32 0.0, %v2168
        %v2170 = vpop.f32.mrf.mxu0
        %v2171 = vpop.f32.mrf.mxu0
        %v2172 = vadd.f32 0.0, %v2171
        %v2173 = vpop.f32.mrf.mxu0
        %2174 = vmatprep.mubr.bf16.mxu0 %v2049
        %2175 = vmatmul.mubr.bf16.gmra.mxu0 %v2048
        %v2176 = vpop.f32.mrf.mxu0
        %v2177 = vadd.f32 0.0, %v2176
        %v2178 = vpop.f32.mrf.mxu0
        %v2179 = vpop.f32.mrf.mxu0
        %v2180 = vadd.f32 0.0, %v2179
        %v2181 = vpop.f32.mrf.mxu0
        %2182 = vmatprep.mubr.bf16.mxu0 %v2052
        %2183 = vmatmul.mubr.bf16.gmra.mxu0 %v2051
        %v2184 = vpop.f32.mrf.mxu0
        %v2185 = vadd.f32 0.0, %v2184
        %v2186 = vpop.f32.mrf.mxu0
        %v2187 = vpop.f32.mrf.mxu0
        %v2188 = vadd.f32 0.0, %v2187
        %v2189 = vpop.f32.mrf.mxu0
        %2190 = vdwg.mxu0
        %2191 = vmatprep.subr.bf16.mxu0 0
        %2192 = vmatpush1.bf16.msra.mxu0 0
        %2193 = vmatprep.subr.bf16.mxu0 0
        %2194 = vmatpush1.bf16.msra.mxu0 0
        %2195 = vmatprep.subr.bf16.mxu0 0
        %2196 = vmatpush1.bf16.msra.mxu0 0
        %2197 = vmatprep.subr.bf16.mxu0 0
        %2198 = vmatpush1.bf16.msra.mxu0 0
        %2199 = vmatprep.subr.bf16.mxu0 0
        %2200 = vmatpush1.bf16.msra.mxu0 0
        %2201 = vmatprep.subr.bf16.mxu0 0
        %2202 = vmatpush1.bf16.msra.mxu0 0
        %2203 = vmatprep.subr.bf16.mxu0 0
        %2204 = vmatpush1.bf16.msra.mxu0 %v765
        %2205 = vmatprep.subr.bf16.mxu0 0
        %2206 = vmatpush1.bf16.msra.mxu0 %v764
        %2207 = vmatprep.subr.bf16.mxu0 0
        %2208 = vmatpush2.bf16.msra.mxu0 0
        %2209 = vmatprep.subr.bf16.mxu0 0
        %2210 = vmatpush2.bf16.msra.mxu0 0
        %2211 = vmatprep.subr.bf16.mxu0 0
        %2212 = vmatpush2.bf16.msra.mxu0 0
        %2213 = vmatprep.subr.bf16.mxu0 0
        %2214 = vmatpush2.bf16.msra.mxu0 0
        %2215 = vmatprep.subr.bf16.mxu0 0
        %2216 = vmatpush2.bf16.msra.mxu0 0
        %2217 = vmatprep.subr.bf16.mxu0 0
        %2218 = vmatpush2.bf16.msra.mxu0 0
        %2219 = vmatprep.subr.bf16.mxu0 0
        %2220 = vmatpush2.bf16.msra.mxu0 0
        %2221 = vmatprep.subr.bf16.mxu0 0
        %2222 = vmatpush2.bf16.msra.mxu0 0
        %2223 = vmatprep.mubr.bf16.mxu0 0
        %2224 = vmatmul.mubr.bf16.gmra.mxu0 %v2071
        %v2225 = vpop.f32.mrf.mxu0
        %v2226 = vadd.f32 %v2129, %v2225
        %v2227 = vpop.f32.mrf.mxu0
        %v2228 = vpop.f32.mrf.mxu0
        %v2229 = vadd.f32 %v2132, %v2228
        %v2230 = vpop.f32.mrf.mxu0
        %2231 = vmatprep.mubr.bf16.mxu0 0
        %2232 = vmatmul.mubr.bf16.gmra.mxu0 %v2074
        %v2233 = vpop.f32.mrf.mxu0
        %v2234 = vadd.f32 %v2137, %v2233
        %v2235 = vpop.f32.mrf.mxu0
        %v2236 = vpop.f32.mrf.mxu0
        %v2237 = vadd.f32 %v2140, %v2236
        %v2238 = vpop.f32.mrf.mxu0
        %2239 = vmatprep.mubr.bf16.mxu0 0
        %2240 = vmatmul.mubr.bf16.gmra.mxu0 %v2077
        %v2241 = vpop.f32.mrf.mxu0
        %v2242 = vadd.f32 %v2145, %v2241
        %v2243 = vpop.f32.mrf.mxu0
        %v2244 = vpop.f32.mrf.mxu0
        %v2245 = vadd.f32 %v2148, %v2244
        %v2246 = vpop.f32.mrf.mxu0
        %2247 = vmatprep.mubr.bf16.mxu0 0
        %2248 = vmatmul.mubr.bf16.gmra.mxu0 %v2080
        %v2249 = vpop.f32.mrf.mxu0
        %v2250 = vadd.f32 %v2153, %v2249
        %v2251 = vpop.f32.mrf.mxu0
        %v2252 = vpop.f32.mrf.mxu0
        %v2253 = vadd.f32 %v2156, %v2252
        %v2254 = vpop.f32.mrf.mxu0
        %2255 = vmatprep.mubr.bf16.mxu0 0
        %2256 = vmatmul.mubr.bf16.gmra.mxu0 %v2083
        %v2257 = vpop.f32.mrf.mxu0
        %v2258 = vadd.f32 %v2161, %v2257
        %v2259 = vpop.f32.mrf.mxu0
        %v2260 = vpop.f32.mrf.mxu0
        %v2261 = vadd.f32 %v2164, %v2260
        %v2262 = vpop.f32.mrf.mxu0
        %2263 = vmatprep.mubr.bf16.mxu0 0
        %2264 = vmatmul.mubr.bf16.gmra.mxu0 %v2086
        %v2265 = vpop.f32.mrf.mxu0
        %v2266 = vadd.f32 %v2169, %v2265
        %v2267 = vpop.f32.mrf.mxu0
        %v2268 = vpop.f32.mrf.mxu0
        %v2269 = vadd.f32 %v2172, %v2268
        %v2270 = vpop.f32.mrf.mxu0
        %2271 = vmatprep.mubr.bf16.mxu0 0
        %2272 = vmatmul.mubr.bf16.gmra.mxu0 %v2089
        %v2273 = vpop.f32.mrf.mxu0
        %v2274 = vadd.f32 %v2177, %v2273
        %v2275 = vpop.f32.mrf.mxu0
        %v2276 = vpop.f32.mrf.mxu0
        %v2277 = vadd.f32 %v2180, %v2276
        %v2278 = vpop.f32.mrf.mxu0
        %2279 = vmatprep.mubr.bf16.mxu0 0
        %2280 = vmatmul.mubr.bf16.gmra.mxu0 %v2092
        %v2281 = vpop.f32.mrf.mxu0
        %v2282 = vadd.f32 %v2185, %v2281
        %v2283 = vpop.f32.mrf.mxu0
        %v2284 = vpop.f32.mrf.mxu0
        %v2285 = vadd.f32 %v2188, %v2284
        %v2286 = vpop.f32.mrf.mxu0
        %2287 = vdwg.mxu0
        %v2288 = vmul.f32 %v2226, %v1007
        %v2289 = vmul.f32 %v2229, %v1007
        %v2290 = vmul.f32 %v2234, %v1007
        %v2291 = vmul.f32 %v2237, %v1007
        %v2292 = vmul.f32 %v2242, %v1007
        %v2293 = vmul.f32 %v2245, %v1007
        %v2294 = vmul.f32 %v2250, %v1007
        %v2295 = vmul.f32 %v2253, %v1007
        %v2296 = vmul.f32 %v2258, %v1007
        %v2297 = vmul.f32 %v2261, %v1007
        %v2298 = vmul.f32 %v2266, %v1007
        %v2299 = vmul.f32 %v2269, %v1007
        %v2300 = vmul.f32 %v2274, %v1007
        %v2301 = vmul.f32 %v2277, %v1007
        %v2302 = vmul.f32 %v2282, %v1007
        %v2303 = vmul.f32 %v2285, %v1007
        %v2304 = vadd.f32 %v2288, %v1029
        %v2305 = vadd.f32 %v2289, %v1029
        %v2306 = vadd.f32 %v2290, %v1029
        %v2307 = vadd.f32 %v2291, %v1029
        %v2308 = vadd.f32 %v2292, %v1029
        %v2309 = vadd.f32 %v2293, %v1029
        %v2310 = vadd.f32 %v2294, %v1029
        %v2311 = vadd.f32 %v2295, %v1029
        %v2312 = vadd.f32 %v2296, %v1029
        %v2313 = vadd.f32 %v2297, %v1029
        %v2314 = vadd.f32 %v2298, %v1029
        %v2315 = vadd.f32 %v2299, %v1029
        %v2316 = vadd.f32 %v2300, %v1029
        %v2317 = vadd.f32 %v2301, %v1029
        %v2318 = vadd.f32 %v2302, %v1029
        %v2319 = vadd.f32 %v2303, %v1029
        %v2320 = vtanh.pop %v2304
        %v2321 = vtanh.pop %v2305
        %v2322 = vtanh.pop %v2306
        %v2323 = vtanh.pop %v2307
        %v2324 = vtanh.pop %v2308
        %v2325 = vtanh.pop %v2309
        %v2326 = vtanh.pop %v2310
        %v2327 = vtanh.pop %v2311
        %v2328 = vtanh.pop %v2312
        %v2329 = vtanh.pop %v2313
        %v2330 = vtanh.pop %v2314
        %v2331 = vtanh.pop %v2315
        %v2332 = vtanh.pop %v2316
        %v2333 = vtanh.pop %v2317
        %v2334 = vtanh.pop %v2318
        %v2335 = vtanh.pop %v2319
        %v2336 = vmax.f32 %v1901, %v2320
        %v2337 = vmax.f32 %v1902, %v2321
        %v2338 = vmax.f32 %v1903, %v2322
        %v2339 = vmax.f32 %v1904, %v2323
        %v2340 = vmax.f32 %v1905, %v2324
        %v2341 = vmax.f32 %v1906, %v2325
        %v2342 = vmax.f32 %v1907, %v2326
        %v2343 = vmax.f32 %v1908, %v2327
        %v2344 = vmax.f32 %v1909, %v2328
        %v2345 = vmax.f32 %v1910, %v2329
        %v2346 = vmax.f32 %v1911, %v2330
        %v2347 = vmax.f32 %v1912, %v2331
        %v2348 = vmax.f32 %v1913, %v2332
        %v2349 = vmax.f32 %v1914, %v2333
        %v2350 = vmax.f32 %v1915, %v2334
        %v2351 = vmax.f32 %v1916, %v2335
        %v2352 = vmax.f32 %v1482, %v2336
        %v2353 = vmax.f32 %v1483, %v2337
        %v2354 = vmax.f32 %v1484, %v2338
        %v2355 = vmax.f32 %v1485, %v2339
        %v2356 = vmax.f32 %v1486, %v2340
        %v2357 = vmax.f32 %v1487, %v2341
        %v2358 = vmax.f32 %v1488, %v2342
        %v2359 = vmax.f32 %v1489, %v2343
        %v2360 = vmax.f32 %v1490, %v2344
        %v2361 = vmax.f32 %v1491, %v2345
        %v2362 = vmax.f32 %v1492, %v2346
        %v2363 = vmax.f32 %v1493, %v2347
        %v2364 = vmax.f32 %v1494, %v2348
        %v2365 = vmax.f32 %v1495, %v2349
        %v2366 = vmax.f32 %v1496, %v2350
        %v2367 = vmax.f32 %v1497, %v2351
        %v2368 = vpack.c.bf16 %v2353, %v2352
        %v2369 = vpack.c.bf16 %v2355, %v2354
        %v2370 = vpack.c.bf16 %v2357, %v2356
        %v2371 = vpack.c.bf16 %v2359, %v2358
        %v2372 = vpack.c.bf16 %v2361, %v2360
        %v2373 = vpack.c.bf16 %v2363, %v2362
        %v2374 = vpack.c.bf16 %v2365, %v2364
        %v2375 = vpack.c.bf16 %v2367, %v2366
        %v2384 = vunpack.c.l.b16 %v2368
        %v2385 = vunpack.c.h.b16 %v2368
        %v2386 = vunpack.c.l.b16 %v2369
        %v2387 = vunpack.c.h.b16 %v2369
        %v2388 = vunpack.c.l.b16 %v2370
        %v2389 = vunpack.c.h.b16 %v2370
        %v2390 = vunpack.c.l.b16 %v2371
        %v2391 = vunpack.c.h.b16 %v2371
        %v2392 = vunpack.c.l.b16 %v2372
        %v2393 = vunpack.c.h.b16 %v2372
        %v2394 = vunpack.c.l.b16 %v2373
        %v2395 = vunpack.c.h.b16 %v2373
        %v2396 = vunpack.c.l.b16 %v2374
        %v2397 = vunpack.c.h.b16 %v2374
        %v2398 = vunpack.c.l.b16 %v2375
        %v2399 = vunpack.c.h.b16 %v2375
        %v2400 = vpack.c.b16 %v2384, %v2384
        %v2401 = vpack.c.b16 %v2385, %v2385
        %v2402 = vpack.c.b16 %v2386, %v2386
        %v2403 = vpack.c.b16 %v2387, %v2387
        %v2404 = vpack.c.b16 %v2388, %v2388
        %v2405 = vpack.c.b16 %v2389, %v2389
        %v2406 = vpack.c.b16 %v2390, %v2390
        %v2407 = vpack.c.b16 %v2391, %v2391
        %v2408 = vpack.c.b16 %v2392, %v2392
        %v2409 = vpack.c.b16 %v2393, %v2393
        %v2410 = vpack.c.b16 %v2394, %v2394
        %v2411 = vpack.c.b16 %v2395, %v2395
        %v2412 = vpack.c.b16 %v2396, %v2396
        %v2413 = vpack.c.b16 %v2397, %v2397
        %v2414 = vpack.c.b16 %v2398, %v2398
        %v2415 = vpack.c.b16 %v2399, %v2399
        %2432 = vst [vmem:[%s483] sm:$0xf] %v2400
        %2433 = vst [vmem:[%s483 + $0x4] sm:$0xf] %v2401
        %2434 = vst [vmem:[%s483 + $0x8] sm:$0xf] %v2402
        %2435 = vst [vmem:[%s483 + $0xc] sm:$0xf] %v2403
        %2436 = vst [vmem:[%s483 + $0x10] sm:$0xf] %v2404
        %2437 = vst [vmem:[%s483 + $0x14] sm:$0xf] %v2405
        %2438 = vst [vmem:[%s483 + $0x18] sm:$0xf] %v2406
        %2439 = vst [vmem:[%s483 + $0x1c] sm:$0xf] %v2407
        %2440 = vst [vmem:[%s483 + $0x20] sm:$0xf] %v2408
        %2441 = vst [vmem:[%s483 + $0x24] sm:$0xf] %v2409
        %2442 = vst [vmem:[%s483 + $0x28] sm:$0xf] %v2410
        %2443 = vst [vmem:[%s483 + $0x2c] sm:$0xf] %v2411
        %2444 = vst [vmem:[%s483 + $0x30] sm:$0xf] %v2412
        %2445 = vst [vmem:[%s483 + $0x34] sm:$0xf] %v2413
        %2446 = vst [vmem:[%s483 + $0x38] sm:$0xf] %v2414
        %2447 = vst [vmem:[%s483 + $0x3c] sm:$0xf] %v2415
        %s2448 = smul.u32 16, %s15
        %p2449 = scmp.lt.s32.totalorder %s2448, 31
        %s2450 = scalar_select %p2449, %s2448, 31
        %s2451 = smul.addr %s2450, 4
        %s2452 = scalar_lea.vmem %s4, %s2451
        // Predicated region
        $region63: #{getnet_forward.6} parent=57 // pred_check
          %p2453 = pneg %p122
        $region64: #{getnet_forward.6} parent=57 // pred_check_branch
          %2455 = sbr.rel (%p2453) target = $region66
        $region65: #{getnet_forward.6} parent=57 // pred_region
          %s2456 = smul.u32 16, %s15
        $region66: #{getnet_forward.6} parent=57 // pred_fallthru
          _
      $region58: #{getnet_forward.6} parent=5 // pred_fallthru
        _
      %p2457 = scmp.le.s32.totalorder 2, %s10
      // Predicated region
      $region67: #{getnet_forward.6} parent=5 // pred_check
        %p2458 = pneg %p2457
      $region68: #{getnet_forward.6} parent=5 // pred_check_branch
        %2460 = sbr.rel (%p2458) target = $region70
      $region69: #{getnet_forward.6} parent=5 // pred_region
        %s2461 = ssub.s32 %s10, 2
        // Predicated region
        $region71: #{getnet_forward.6} parent=69 // pred_check
          %p2462 = pneg %p128
        $region72: #{getnet_forward.6} parent=69 // pred_check_branch
          %2464 = sbr.rel (%p2462) target = $region74
        $region73: #{getnet_forward.6} parent=69 // pred_region
          %s2465 = smul.u32 16, %s16
          %p2466 = scmp.lt.s32.totalorder %s2465, 31
          %s2467 = scalar_select %p2466, %s2465, 31
          %s2468 = smul.addr %s2467, 4
          %s2469 = scalar_lea.vmem %s4, %s2468
        $region74: #{getnet_forward.6} parent=69 // pred_fallthru
          _
      $region70: #{getnet_forward.6} parent=5 // pred_fallthru
        _
    $region6: #{getnet_forward.6} parent=1 // loop_footer
      %s14 = sadd.s32 1, %s10
    $region7: #{getnet_forward.6} parent=1 // loop_footer_branch
      %9 = sbr.rel target = $region3
    $region8: #{getnet_forward.6} parent=1 // loop_exit
      _

// kernel: getnet_forward.7
$region0: #{getnet_forward.7}
  #allocation0 [shape = 'u32[]', space=smem, size = 0x4, offset = 0x4, fixed_abs, tag = 'smem constant byte address 0x4 - core index']
  #allocation1 [shape = 'u32[144,128]{1,0:T(1,128)}', space=vmem, size = 0x12000, scoped, tag = 'internal scratch']
  %s0 = inlined_call_operand.vmem [shape: bf16[256,576], index: 0, kind: input, shape index: {}]
  %s1 = inlined_call_operand.vmem [shape: bf16[576,128], index: 1, kind: input, shape index: {}]
  %s2 = inlined_call_operand.vmem [shape: f32[1,128], index: 2, kind: input, shape index: {}]
  %s3 = inlined_call_operand.vmem [shape: f32[1,128], index: 3, kind: input, shape index: {}]
  %s4 = inlined_call_operand.vmem [shape: bf16[256,128], index: 4, kind: output, shape index: {}]
  %s5 = sld [smem:[#allocation0]]
  $region49: #{getnet_forward.7} parent=0
    _
  %s7 = ssub.s32 1, %s5
  %s8 = scalar_select 0, %s7, %s5
  loop: start=0, step=1, limit=4
  $region2: #{getnet_forward.7} parent=0 // loop_pre_header
    _
  $region3: #{getnet_forward.7} parent=0 // loop_header
    %s10 = sphi 0, %s14
    %p11 = scmp.ge.s32.totalorder %s10, 4
    %s20 = sphi 0, %s22
    %s23 = sphi 0, %s20
    %s24 = sphi 0, %s23
    %s40 = sphi 0, %s24
    %s44 = sphi 0, %s44
    %s46 = sphi 0, %s44
    %s47 = sphi 0, %s46
    %s61 = sphi 0, %s47
    %s65 = sphi 0, %s65
    %s67 = sphi 0, %s65
    %s68 = sphi 0, %s67
    %s82 = sphi 0, %s68
    %s86 = sphi 0, %s86
    %s88 = sphi 0, %s86
    %s89 = sphi 0, %s88
    %s103 = sphi 0, %s89
    %s109 = sphi 0, %s111
    %s112 = sphi 0, %s109
    %s113 = sphi 0, %s112
    %s129 = sphi 0, %s113
  $region4: #{getnet_forward.7} parent=0 // loop_header_branch
    %13 = sbr.rel (%p11) target = $region8
  $region5: #{getnet_forward.7} parent=0 // loop_body
    %s15 = ssub.s32 %s10, 1
    %s16 = ssub.s32 %s10, 2
    %s17 = sadd.s32 %s10, 1
    %s18 = ssub.s32 %s10, %s17
    %p19 = scmp.eq.s32.totalorder %s18, 0
    %s21 = sadd.s32 %s20, 1
    %s22 = scalar_select %p19, %s20, %s21
    %p25 = pneg %p19
    %p26 = scmp.eq.s32.totalorder %s10, 1
    %p27 = por %p25, %p26
    %p28 = scmp.ne.s32.totalorder %s20, %s23
    %p29 = scmp.eq.s32.totalorder %s10, 0
    %p30 = por %p28, %p29
    %p31 = scmp.ne.s32.totalorder %s20, %s23
    %p32 = scmp.eq.s32.totalorder %s15, 1
    %p33 = por %p31, %p32
    %p34 = scmp.ne.s32.totalorder %s23, %s24
    %p35 = scmp.eq.s32.totalorder %s15, 0
    %p36 = por %p34, %p35
    %p37 = scmp.ne.s32.totalorder %s23, %s24
    %p38 = scmp.eq.s32.totalorder %s16, 1
    %p39 = por %p37, %p38
    %p41 = scmp.ne.s32.totalorder %s24, %s40
    %p42 = scmp.eq.s32.totalorder %s16, 0
    %p43 = por %p41, %p42
    %s45 = sadd.s32 %s44, 1
    %p48 = scmp.eq.s32.totalorder %s10, 1
    %p49 = scmp.ne.s32.totalorder %s44, %s46
    %p50 = scmp.eq.s32.totalorder %s10, 0
    %p51 = por %p49, %p50
    %p52 = scmp.ne.s32.totalorder %s44, %s46
    %p53 = scmp.eq.s32.totalorder %s15, 1
    %p54 = por %p52, %p53
    %p55 = scmp.ne.s32.totalorder %s46, %s47
    %p56 = scmp.eq.s32.totalorder %s15, 0
    %p57 = por %p55, %p56
    %p58 = scmp.ne.s32.totalorder %s46, %s47
    %p59 = scmp.eq.s32.totalorder %s16, 1
    %p60 = por %p58, %p59
    %p62 = scmp.ne.s32.totalorder %s47, %s61
    %p63 = scmp.eq.s32.totalorder %s16, 0
    %p64 = por %p62, %p63
    %s66 = sadd.s32 %s65, 1
    %p69 = scmp.eq.s32.totalorder %s10, 1
    %p70 = scmp.ne.s32.totalorder %s65, %s67
    %p71 = scmp.eq.s32.totalorder %s10, 0
    %p72 = por %p70, %p71
    %p73 = scmp.ne.s32.totalorder %s65, %s67
    %p74 = scmp.eq.s32.totalorder %s15, 1
    %p75 = por %p73, %p74
    %p76 = scmp.ne.s32.totalorder %s67, %s68
    %p77 = scmp.eq.s32.totalorder %s15, 0
    %p78 = por %p76, %p77
    %p79 = scmp.ne.s32.totalorder %s67, %s68
    %p80 = scmp.eq.s32.totalorder %s16, 1
    %p81 = por %p79, %p80
    %p83 = scmp.ne.s32.totalorder %s68, %s82
    %p84 = scmp.eq.s32.totalorder %s16, 0
    %p85 = por %p83, %p84
    %s87 = sadd.s32 %s86, 1
    %p90 = scmp.eq.s32.totalorder %s10, 1
    %p91 = scmp.ne.s32.totalorder %s86, %s88
    %p92 = scmp.eq.s32.totalorder %s10, 0
    %p93 = por %p91, %p92
    %p94 = scmp.ne.s32.totalorder %s86, %s88
    %p95 = scmp.eq.s32.totalorder %s15, 1
    %p96 = por %p94, %p95
    %p97 = scmp.ne.s32.totalorder %s88, %s89
    %p98 = scmp.eq.s32.totalorder %s15, 0
    %p99 = por %p97, %p98
    %p100 = scmp.ne.s32.totalorder %s88, %s89
    %p101 = scmp.eq.s32.totalorder %s16, 1
    %p102 = por %p100, %p101
    %p104 = scmp.ne.s32.totalorder %s89, %s103
    %p105 = scmp.eq.s32.totalorder %s16, 0
    %p106 = por %p104, %p105
    %s107 = ssub.s32 %s10, %s17
    %p108 = scmp.eq.s32.totalorder %s107, 0
    %s110 = sadd.s32 %s109, 1
    %s111 = scalar_select %p108, %s109, %s110
    %p114 = pneg %p108
    %p115 = scmp.eq.s32.totalorder %s10, 1
    %p116 = por %p114, %p115
    %p117 = scmp.ne.s32.totalorder %s109, %s112
    %p118 = scmp.eq.s32.totalorder %s10, 0
    %p119 = por %p117, %p118
    %p120 = scmp.ne.s32.totalorder %s109, %s112
    %p121 = scmp.eq.s32.totalorder %s15, 1
    %p122 = por %p120, %p121
    %p123 = scmp.ne.s32.totalorder %s112, %s113
    %p124 = scmp.eq.s32.totalorder %s15, 0
    %p125 = por %p123, %p124
    %p126 = scmp.ne.s32.totalorder %s112, %s113
    %p127 = scmp.eq.s32.totalorder %s16, 1
    %p128 = por %p126, %p127
    %p130 = scmp.ne.s32.totalorder %s113, %s129
    %p131 = scmp.eq.s32.totalorder %s16, 0
    %p132 = por %p130, %p131
    %p133 = scmp.le.s32.totalorder 1, %s10
    %p134 = scmp.lt.s32.totalorder %s10, 3
    %p135 = pnand %p133, %p134
    %p136 = pneg %p135
    // Predicated region
    $region9: #{getnet_forward.7} parent=5 // pred_check
      _
    $region10: #{getnet_forward.7} parent=5 // pred_check_branch
      %138 = sbr.rel (%p135) target = $region12
    $region11: #{getnet_forward.7} parent=5 // pred_region
      %s139 = ssub.s32 %s10, 1
      // Predicated region
      $region13: #{getnet_forward.7} parent=11 // pred_check
        %p140 = pneg %p57
      $region14: #{getnet_forward.7} parent=11 // pred_check_branch
        %142 = sbr.rel (%p140) target = $region16
      $region15: #{getnet_forward.7} parent=11 // pred_region
        _
      $region16: #{getnet_forward.7} parent=11 // pred_fallthru
        _
      // Predicated region
      $region17: #{getnet_forward.7} parent=11 // pred_check
        %p143 = pneg %p78
      $region18: #{getnet_forward.7} parent=11 // pred_check_branch
        %145 = sbr.rel (%p143) target = $region20
      $region19: #{getnet_forward.7} parent=11 // pred_region
        _
      $region20: #{getnet_forward.7} parent=11 // pred_fallthru
        _
      // Predicated region
      $region21: #{getnet_forward.7} parent=11 // pred_check
        %p146 = pneg %p99
      $region22: #{getnet_forward.7} parent=11 // pred_check_branch
        %148 = sbr.rel (%p146) target = $region24
      $region23: #{getnet_forward.7} parent=11 // pred_region
        _
      $region24: #{getnet_forward.7} parent=11 // pred_fallthru
        _
    $region12: #{getnet_forward.7} parent=5 // pred_fallthru
      _
    %p149 = scmp.lt.s32.totalorder %s10, 2
    // Predicated region
    $region25: #{getnet_forward.7} parent=5 // pred_check
      %p150 = pneg %p149
    $region26: #{getnet_forward.7} parent=5 // pred_check_branch
      %152 = sbr.rel (%p150) target = $region28
    $region27: #{getnet_forward.7} parent=5 // pred_region
      // Predicated region
      $region29: #{getnet_forward.7} parent=27 // pred_check
        %p153 = pneg %p30
      $region30: #{getnet_forward.7} parent=27 // pred_check_branch
        %155 = sbr.rel (%p153) target = $region32
      $region31: #{getnet_forward.7} parent=27 // pred_region
        %s156 = smul.u32 16, %s10
        %p157 = scmp.lt.s32.totalorder %s156, 31
        %s158 = scalar_select %p157, %s156, 31
        %s159 = smul.addr %s158, 5
        %s160 = smul.addr %s159, 4
        %s161 = scalar_lea.vmem %s0, %s160
        %s162 = smul.u32 16, %s10
      $region32: #{getnet_forward.7} parent=27 // pred_fallthru
        _
    $region28: #{getnet_forward.7} parent=5 // pred_fallthru
      _
    %p163 = scmp.le.s32.totalorder 1, %s10
    %p164 = scmp.lt.s32.totalorder %s10, 3
    %p165 = pnand %p163, %p164
    %p166 = pneg %p165
    // Predicated region
    $region33: #{getnet_forward.7} parent=5 // pred_check
      _
    $region34: #{getnet_forward.7} parent=5 // pred_check_branch
      %168 = sbr.rel (%p165) target = $region36
    $region35: #{getnet_forward.7} parent=5 // pred_region
      %s169 = ssub.s32 %s10, 1
      %s170 = smul.u32 16, %s15
      %p171 = scmp.lt.s32.totalorder %s170, 31
      %s172 = scalar_select %p171, %s170, 31
      %s173 = smul.addr %s172, 5
      %s174 = smul.addr %s173, 4
      %s175 = scalar_lea.vmem %s0, %s174
      %p176 = pneg %p36
      %p177 = pneg %p33
      %p178 = pneg %p57
      %p179 = pneg %p54
      %p180 = pneg %p78
      %p181 = pneg %p75
      %p182 = pneg %p99
      %p183 = pneg %p96
      %p184 = pneg %p125
      %p185 = pneg %p122
      %s186 = smul.u32 16, %s15
      %p187 = scmp.lt.s32.totalorder %s186, 31
      %s188 = scalar_select %p187, %s186, 31
      %s189 = smul.addr %s188, 4
      %s190 = scalar_lea.vmem %s4, %s189
      %s191 = smul.u32 16, %s15
      %p192 = scmp.lt.s32.totalorder %s191, 31
      %s193 = scalar_select %p192, %s191, 31
      %s194 = smul.addr %s193, 5
      %s195 = smul.addr %s194, 4
      %s196 = scalar_lea.vmem %s0, %s195
      %s197 = smul.u32 16, %s15
      %s198 = smul.u32 16, %s15
      %p199 = scmp.lt.s32.totalorder %s198, 31
      %s200 = scalar_select %p199, %s198, 31
      %s201 = smul.addr %s200, 4
      %s202 = scalar_lea.vmem %s4, %s201
      %s203 = smul.u32 16, %s15
      %v205 = vld [vmem:[%s196] sm:$0xff]
      %v206 = vld [vmem:[%s196 + $0x8] sm:$0xff]
      %v207 = vld [vmem:[%s196 + $0x10] sm:$0xf]
      %v208 = vld [vmem:[%s196 + $0x14] sm:$0xff]
      %v209 = vld [vmem:[%s196 + $0x1c] sm:$0xff]
      %v210 = vld [vmem:[%s196 + $0x24] sm:$0xf]
      %v211 = vld [vmem:[%s196 + $0x28] sm:$0xff]
      %v212 = vld [vmem:[%s196 + $0x30] sm:$0xff]
      %v213 = vld [vmem:[%s196 + $0x38] sm:$0xf]
      %v214 = vld [vmem:[%s196 + $0x3c] sm:$0xff]
      %v215 = vld [vmem:[%s196 + $0x44] sm:$0xff]
      %v216 = vld [vmem:[%s196 + $0x4c] sm:$0xf]
      %v217 = vld [vmem:[%s196 + $0x50] sm:$0xff]
      %v218 = vld [vmem:[%s196 + $0x58] sm:$0xff]
      %v219 = vld [vmem:[%s196 + $0x60] sm:$0xf]
      %v220 = vld [vmem:[%s196 + $0x64] sm:$0xff]
      %v221 = vld [vmem:[%s196 + $0x6c] sm:$0xff]
      %v222 = vld [vmem:[%s196 + $0x74] sm:$0xf]
      %v223 = vld [vmem:[%s196 + $0x78] sm:$0xff]
      %v224 = vld [vmem:[%s196 + $0x80] sm:$0xff]
      %v225 = vld [vmem:[%s196 + $0x88] sm:$0xf]
      %v226 = vld [vmem:[%s196 + $0x8c] sm:$0xff]
      %v227 = vld [vmem:[%s196 + $0x94] sm:$0xff]
      %v228 = vld [vmem:[%s196 + $0x9c] sm:$0xf]
      %v229 = vld [vmem:[%s196 + $0xa0] sm:$0xff]
      %v230 = vld [vmem:[%s196 + $0xa8] sm:$0xff]
      %v231 = vld [vmem:[%s196 + $0xb0] sm:$0xf]
      %v232 = vld [vmem:[%s196 + $0xb4] sm:$0xff]
      %v233 = vld [vmem:[%s196 + $0xbc] sm:$0xff]
      %v234 = vld [vmem:[%s196 + $0xc4] sm:$0xf]
      %v235 = vld [vmem:[%s196 + $0xc8] sm:$0xff]
      %v236 = vld [vmem:[%s196 + $0xd0] sm:$0xff]
      %v237 = vld [vmem:[%s196 + $0xd8] sm:$0xf]
      %v238 = vld [vmem:[%s196 + $0xdc] sm:$0xff]
      %v239 = vld [vmem:[%s196 + $0xe4] sm:$0xff]
      %v240 = vld [vmem:[%s196 + $0xec] sm:$0xf]
      %v241 = vld [vmem:[%s196 + $0xf0] sm:$0xff]
      %v242 = vld [vmem:[%s196 + $0xf8] sm:$0xff]
      %v243 = vld [vmem:[%s196 + $0x100] sm:$0xf]
      %v244 = vld [vmem:[%s196 + $0x104] sm:$0xff]
      %v245 = vld [vmem:[%s196 + $0x10c] sm:$0xff]
      %v246 = vld [vmem:[%s196 + $0x114] sm:$0xf]
      %v247 = vld [vmem:[%s196 + $0x118] sm:$0xff]
      %v248 = vld [vmem:[%s196 + $0x120] sm:$0xff]
      %v249 = vld [vmem:[%s196 + $0x128] sm:$0xf]
      %v250 = vld [vmem:[%s196 + $0x12c] sm:$0xff]
      %v251 = vld [vmem:[%s196 + $0x134] sm:$0xff]
      %v252 = vld [vmem:[%s196 + $0x13c] sm:$0xf]
      %v253 = vld [vmem:[%s1] sm:$0xf]
      %v254 = vld [vmem:[%s1 + $0x4] sm:$0xf]
      %v255 = vld [vmem:[%s1 + $0x8] sm:$0xf]
      %v256 = vld [vmem:[%s1 + $0xc] sm:$0xf]
      %v257 = vld [vmem:[%s1 + $0x10] sm:$0xf]
      %v258 = vld [vmem:[%s1 + $0x14] sm:$0xf]
      %v259 = vld [vmem:[%s1 + $0x18] sm:$0xf]
      %v260 = vld [vmem:[%s1 + $0x1c] sm:$0xf]
      %v261 = vld [vmem:[%s1 + $0x20] sm:$0xf]
      %v262 = vld [vmem:[%s1 + $0x24] sm:$0xf]
      %v263 = vld [vmem:[%s1 + $0x28] sm:$0xf]
      %v264 = vld [vmem:[%s1 + $0x2c] sm:$0xf]
      %v265 = vld [vmem:[%s1 + $0x30] sm:$0xf]
      %v266 = vld [vmem:[%s1 + $0x34] sm:$0xf]
      %v267 = vld [vmem:[%s1 + $0x38] sm:$0xf]
      %v268 = vld [vmem:[%s1 + $0x3c] sm:$0xf]
      %v269 = vld [vmem:[%s1 + $0x40] sm:$0xf]
      %v270 = vld [vmem:[%s1 + $0x44] sm:$0xf]
      %v271 = vld [vmem:[%s1 + $0x48] sm:$0xf]
      %v272 = vld [vmem:[%s1 + $0x4c] sm:$0xf]
      %v273 = vld [vmem:[%s1 + $0x50] sm:$0xf]
      %v274 = vld [vmem:[%s1 + $0x54] sm:$0xf]
      %v275 = vld [vmem:[%s1 + $0x58] sm:$0xf]
      %v276 = vld [vmem:[%s1 + $0x5c] sm:$0xf]
      %v277 = vld [vmem:[%s1 + $0x60] sm:$0xf]
      %v278 = vld [vmem:[%s1 + $0x64] sm:$0xf]
      %v279 = vld [vmem:[%s1 + $0x68] sm:$0xf]
      %v280 = vld [vmem:[%s1 + $0x6c] sm:$0xf]
      %v281 = vld [vmem:[%s1 + $0x70] sm:$0xf]
      %v282 = vld [vmem:[%s1 + $0x74] sm:$0xf]
      %v283 = vld [vmem:[%s1 + $0x78] sm:$0xf]
      %v284 = vld [vmem:[%s1 + $0x7c] sm:$0xf]
      %v285 = vld [vmem:[%s1 + $0x80] sm:$0xf]
      %v286 = vld [vmem:[%s1 + $0x84] sm:$0xf]
      %v287 = vld [vmem:[%s1 + $0x88] sm:$0xf]
      %v288 = vld [vmem:[%s1 + $0x8c] sm:$0xf]
      %v289 = vld [vmem:[%s1 + $0x90] sm:$0xf]
      %v290 = vld [vmem:[%s1 + $0x94] sm:$0xf]
      %v291 = vld [vmem:[%s1 + $0x98] sm:$0xf]
      %v292 = vld [vmem:[%s1 + $0x9c] sm:$0xf]
      %v293 = vld [vmem:[%s1 + $0xa0] sm:$0xf]
      %v294 = vld [vmem:[%s1 + $0xa4] sm:$0xf]
      %v295 = vld [vmem:[%s1 + $0xa8] sm:$0xf]
      %v296 = vld [vmem:[%s1 + $0xac] sm:$0xf]
      %v297 = vld [vmem:[%s1 + $0xb0] sm:$0xf]
      %v298 = vld [vmem:[%s1 + $0xb4] sm:$0xf]
      %v299 = vld [vmem:[%s1 + $0xb8] sm:$0xf]
      %v300 = vld [vmem:[%s1 + $0xbc] sm:$0xf]
      %v301 = vld [vmem:[%s1 + $0xc0] sm:$0xf]
      %v302 = vld [vmem:[%s1 + $0xc4] sm:$0xf]
      %v303 = vld [vmem:[%s1 + $0xc8] sm:$0xf]
      %v304 = vld [vmem:[%s1 + $0xcc] sm:$0xf]
      %v305 = vld [vmem:[%s1 + $0xd0] sm:$0xf]
      %v306 = vld [vmem:[%s1 + $0xd4] sm:$0xf]
      %v307 = vld [vmem:[%s1 + $0xd8] sm:$0xf]
      %v308 = vld [vmem:[%s1 + $0xdc] sm:$0xf]
      %v309 = vld [vmem:[%s1 + $0xe0] sm:$0xf]
      %v310 = vld [vmem:[%s1 + $0xe4] sm:$0xf]
      %v311 = vld [vmem:[%s1 + $0xe8] sm:$0xf]
      %v312 = vld [vmem:[%s1 + $0xec] sm:$0xf]
      %v313 = vld [vmem:[%s1 + $0xf0] sm:$0xf]
      %v314 = vld [vmem:[%s1 + $0xf4] sm:$0xf]
      %v315 = vld [vmem:[%s1 + $0xf8] sm:$0xf]
      %v316 = vld [vmem:[%s1 + $0xfc] sm:$0xf]
      %v317 = vld [vmem:[%s1 + $0x100] sm:$0xf]
      %v318 = vld [vmem:[%s1 + $0x104] sm:$0xf]
      %v319 = vld [vmem:[%s1 + $0x108] sm:$0xf]
      %v320 = vld [vmem:[%s1 + $0x10c] sm:$0xf]
      %v321 = vld [vmem:[%s1 + $0x110] sm:$0xf]
      %v322 = vld [vmem:[%s1 + $0x114] sm:$0xf]
      %v323 = vld [vmem:[%s1 + $0x118] sm:$0xf]
      %v324 = vld [vmem:[%s1 + $0x11c] sm:$0xf]
      %v373 = vunpack.c.l.b16 %v205
      %v374 = vunpack.c.h.b16 %v205
      %v375 = vunpack.c.l.b16 %v206
      %v376 = vunpack.c.h.b16 %v206
      %v377 = vunpack.c.l.b16 %v207
      %v378 = vunpack.c.l.b16 %v208
      %v379 = vunpack.c.h.b16 %v208
      %v380 = vunpack.c.l.b16 %v209
      %v381 = vunpack.c.h.b16 %v209
      %v382 = vunpack.c.l.b16 %v210
      %v383 = vunpack.c.l.b16 %v211
      %v384 = vunpack.c.h.b16 %v211
      %v385 = vunpack.c.l.b16 %v212
      %v386 = vunpack.c.h.b16 %v212
      %v387 = vunpack.c.l.b16 %v213
      %v388 = vunpack.c.l.b16 %v214
      %v389 = vunpack.c.h.b16 %v214
      %v390 = vunpack.c.l.b16 %v215
      %v391 = vunpack.c.h.b16 %v215
      %v392 = vunpack.c.l.b16 %v216
      %v393 = vunpack.c.l.b16 %v217
      %v394 = vunpack.c.h.b16 %v217
      %v395 = vunpack.c.l.b16 %v218
      %v396 = vunpack.c.h.b16 %v218
      %v397 = vunpack.c.l.b16 %v219
      %v398 = vunpack.c.l.b16 %v220
      %v399 = vunpack.c.h.b16 %v220
      %v400 = vunpack.c.l.b16 %v221
      %v401 = vunpack.c.h.b16 %v221
      %v402 = vunpack.c.l.b16 %v222
      %v403 = vunpack.c.l.b16 %v223
      %v404 = vunpack.c.h.b16 %v223
      %v405 = vunpack.c.l.b16 %v224
      %v406 = vunpack.c.h.b16 %v224
      %v407 = vunpack.c.l.b16 %v225
      %v408 = vunpack.c.l.b16 %v226
      %v409 = vunpack.c.h.b16 %v226
      %v410 = vunpack.c.l.b16 %v227
      %v411 = vunpack.c.h.b16 %v227
      %v412 = vunpack.c.l.b16 %v228
      %v413 = vunpack.c.l.b16 %v229
      %v414 = vunpack.c.h.b16 %v229
      %v415 = vunpack.c.l.b16 %v230
      %v416 = vunpack.c.h.b16 %v230
      %v417 = vunpack.c.l.b16 %v231
      %v418 = vunpack.c.l.b16 %v232
      %v419 = vunpack.c.h.b16 %v232
      %v420 = vunpack.c.l.b16 %v233
      %v421 = vunpack.c.h.b16 %v233
      %v422 = vunpack.c.l.b16 %v234
      %v423 = vunpack.c.l.b16 %v235
      %v424 = vunpack.c.h.b16 %v235
      %v425 = vunpack.c.l.b16 %v236
      %v426 = vunpack.c.h.b16 %v236
      %v427 = vunpack.c.l.b16 %v237
      %v428 = vunpack.c.l.b16 %v238
      %v429 = vunpack.c.h.b16 %v238
      %v430 = vunpack.c.l.b16 %v239
      %v431 = vunpack.c.h.b16 %v239
      %v432 = vunpack.c.l.b16 %v240
      %v433 = vunpack.c.l.b16 %v241
      %v434 = vunpack.c.h.b16 %v241
      %v435 = vunpack.c.l.b16 %v242
      %v436 = vunpack.c.h.b16 %v242
      %v437 = vunpack.c.l.b16 %v243
      %v438 = vunpack.c.l.b16 %v244
      %v439 = vunpack.c.h.b16 %v244
      %v440 = vunpack.c.l.b16 %v245
      %v441 = vunpack.c.h.b16 %v245
      %v442 = vunpack.c.l.b16 %v246
      %v443 = vunpack.c.l.b16 %v247
      %v444 = vunpack.c.h.b16 %v247
      %v445 = vunpack.c.l.b16 %v248
      %v446 = vunpack.c.h.b16 %v248
      %v447 = vunpack.c.l.b16 %v249
      %v448 = vunpack.c.l.b16 %v250
      %v449 = vunpack.c.h.b16 %v250
      %v450 = vunpack.c.l.b16 %v251
      %v451 = vunpack.c.h.b16 %v251
      %v452 = vunpack.c.l.b16 %v252
      %v453 = vpack.c.b16 %v378, %v373
      %v454 = vpack.c.b16 %v379, %v374
      %v455 = vpack.c.b16 %v380, %v375
      %v456 = vpack.c.b16 %v381, %v376
      %v457 = vpack.c.b16 %v382, %v377
      %v458 = vpack.c.b16 %v388, %v383
      %v459 = vpack.c.b16 %v389, %v384
      %v460 = vpack.c.b16 %v390, %v385
      %v461 = vpack.c.b16 %v391, %v386
      %v462 = vpack.c.b16 %v392, %v387
      %v463 = vpack.c.b16 %v398, %v393
      %v464 = vpack.c.b16 %v399, %v394
      %v465 = vpack.c.b16 %v400, %v395
      %v466 = vpack.c.b16 %v401, %v396
      %v467 = vpack.c.b16 %v402, %v397
      %v468 = vpack.c.b16 %v408, %v403
      %v469 = vpack.c.b16 %v409, %v404
      %v470 = vpack.c.b16 %v410, %v405
      %v471 = vpack.c.b16 %v411, %v406
      %v472 = vpack.c.b16 %v412, %v407
      %v473 = vpack.c.b16 %v418, %v413
      %v474 = vpack.c.b16 %v419, %v414
      %v475 = vpack.c.b16 %v420, %v415
      %v476 = vpack.c.b16 %v421, %v416
      %v477 = vpack.c.b16 %v422, %v417
      %v478 = vpack.c.b16 %v428, %v423
      %v479 = vpack.c.b16 %v429, %v424
      %v480 = vpack.c.b16 %v430, %v425
      %v481 = vpack.c.b16 %v431, %v426
      %v482 = vpack.c.b16 %v432, %v427
      %v483 = vpack.c.b16 %v438, %v433
      %v484 = vpack.c.b16 %v439, %v434
      %v485 = vpack.c.b16 %v440, %v435
      %v486 = vpack.c.b16 %v441, %v436
      %v487 = vpack.c.b16 %v442, %v437
      %v488 = vpack.c.b16 %v448, %v443
      %v489 = vpack.c.b16 %v449, %v444
      %v490 = vpack.c.b16 %v450, %v445
      %v491 = vpack.c.b16 %v451, %v446
      %v492 = vpack.c.b16 %v452, %v447
      %v597 = vunpack.c.l.b16 %v253
      %v598 = vunpack.c.l.b16 %v254
      %v599 = vunpack.c.l.b16 %v255
      %v600 = vunpack.c.l.b16 %v256
      %v601 = vunpack.c.l.b16 %v257
      %v602 = vunpack.c.l.b16 %v258
      %v603 = vunpack.c.l.b16 %v259
      %v604 = vunpack.c.l.b16 %v260
      %v605 = vunpack.c.l.b16 %v261
      %v606 = vunpack.c.l.b16 %v262
      %v607 = vunpack.c.l.b16 %v263
      %v608 = vunpack.c.l.b16 %v264
      %v609 = vunpack.c.l.b16 %v265
      %v610 = vunpack.c.l.b16 %v266
      %v611 = vunpack.c.l.b16 %v267
      %v612 = vunpack.c.l.b16 %v268
      %v613 = vunpack.c.l.b16 %v269
      %v614 = vunpack.c.l.b16 %v270
      %v615 = vunpack.c.l.b16 %v271
      %v616 = vunpack.c.l.b16 %v272
      %v617 = vunpack.c.l.b16 %v273
      %v618 = vunpack.c.l.b16 %v274
      %v619 = vunpack.c.l.b16 %v275
      %v620 = vunpack.c.l.b16 %v276
      %v621 = vunpack.c.l.b16 %v277
      %v622 = vunpack.c.l.b16 %v278
      %v623 = vunpack.c.l.b16 %v279
      %v624 = vunpack.c.l.b16 %v280
      %v625 = vunpack.c.l.b16 %v281
      %v626 = vunpack.c.l.b16 %v282
      %v627 = vunpack.c.l.b16 %v283
      %v628 = vunpack.c.l.b16 %v284
      %v629 = vunpack.c.l.b16 %v285
      %v630 = vunpack.c.l.b16 %v286
      %v631 = vunpack.c.l.b16 %v287
      %v632 = vunpack.c.l.b16 %v288
      %v633 = vunpack.c.l.b16 %v289
      %v634 = vunpack.c.l.b16 %v290
      %v635 = vunpack.c.l.b16 %v291
      %v636 = vunpack.c.l.b16 %v292
      %v637 = vunpack.c.l.b16 %v293
      %v638 = vunpack.c.l.b16 %v294
      %v639 = vunpack.c.l.b16 %v295
      %v640 = vunpack.c.l.b16 %v296
      %v641 = vunpack.c.l.b16 %v297
      %v642 = vunpack.c.l.b16 %v298
      %v643 = vunpack.c.l.b16 %v299
      %v644 = vunpack.c.l.b16 %v300
      %v645 = vunpack.c.l.b16 %v301
      %v646 = vunpack.c.l.b16 %v302
      %v647 = vunpack.c.l.b16 %v303
      %v648 = vunpack.c.l.b16 %v304
      %v649 = vunpack.c.l.b16 %v305
      %v650 = vunpack.c.l.b16 %v306
      %v651 = vunpack.c.l.b16 %v307
      %v652 = vunpack.c.l.b16 %v308
      %v653 = vunpack.c.l.b16 %v309
      %v654 = vunpack.c.l.b16 %v310
      %v655 = vunpack.c.l.b16 %v311
      %v656 = vunpack.c.l.b16 %v312
      %v657 = vunpack.c.l.b16 %v313
      %v658 = vunpack.c.l.b16 %v314
      %v659 = vunpack.c.l.b16 %v315
      %v660 = vunpack.c.l.b16 %v316
      %v661 = vunpack.c.l.b16 %v317
      %v662 = vunpack.c.l.b16 %v318
      %v663 = vunpack.c.l.b16 %v319
      %v664 = vunpack.c.l.b16 %v320
      %v665 = vunpack.c.l.b16 %v321
      %v666 = vunpack.c.l.b16 %v322
      %v667 = vunpack.c.l.b16 %v323
      %v668 = vunpack.c.l.b16 %v324
      %v669 = vpack.c.b16 %v598, %v597
      %v670 = vpack.c.b16 %v600, %v599
      %v671 = vpack.c.b16 %v602, %v601
      %v672 = vpack.c.b16 %v604, %v603
      %v673 = vpack.c.b16 %v606, %v605
      %v674 = vpack.c.b16 %v608, %v607
      %v675 = vpack.c.b16 %v610, %v609
      %v676 = vpack.c.b16 %v612, %v611
      %v677 = vpack.c.b16 %v614, %v613
      %v678 = vpack.c.b16 %v616, %v615
      %v679 = vpack.c.b16 %v618, %v617
      %v680 = vpack.c.b16 %v620, %v619
      %v681 = vpack.c.b16 %v622, %v621
      %v682 = vpack.c.b16 %v624, %v623
      %v683 = vpack.c.b16 %v626, %v625
      %v684 = vpack.c.b16 %v628, %v627
      %v685 = vpack.c.b16 %v630, %v629
      %v686 = vpack.c.b16 %v632, %v631
      %v687 = vpack.c.b16 %v634, %v633
      %v688 = vpack.c.b16 %v636, %v635
      %v689 = vpack.c.b16 %v638, %v637
      %v690 = vpack.c.b16 %v640, %v639
      %v691 = vpack.c.b16 %v642, %v641
      %v692 = vpack.c.b16 %v644, %v643
      %v693 = vpack.c.b16 %v646, %v645
      %v694 = vpack.c.b16 %v648, %v647
      %v695 = vpack.c.b16 %v650, %v649
      %v696 = vpack.c.b16 %v652, %v651
      %v697 = vpack.c.b16 %v654, %v653
      %v698 = vpack.c.b16 %v656, %v655
      %v699 = vpack.c.b16 %v658, %v657
      %v700 = vpack.c.b16 %v660, %v659
      %v701 = vpack.c.b16 %v662, %v661
      %v702 = vpack.c.b16 %v664, %v663
      %v703 = vpack.c.b16 %v666, %v665
      %v704 = vpack.c.b16 %v668, %v667
      %vm741 = vcmask 523264
      %v743 = vsel %vm741, %v457, 0
      %v746 = vsel %vm741, %v462, 0
      %v749 = vsel %vm741, %v467, 0
      %v752 = vsel %vm741, %v472, 0
      %v755 = vsel %vm741, %v477, 0
      %v758 = vsel %vm741, %v482, 0
      %v761 = vsel %vm741, %v487, 0
      %v764 = vsel %vm741, %v492, 0
      %766 = vmatprep.subr.bf16.mxu0 0
      %767 = vmatpush1.bf16.msra.mxu0 %v676
      %768 = vmatprep.subr.bf16.mxu0 0
      %769 = vmatpush1.bf16.msra.mxu0 %v675
      %770 = vmatprep.subr.bf16.mxu0 0
      %771 = vmatpush1.bf16.msra.mxu0 %v674
      %772 = vmatprep.subr.bf16.mxu0 0
      %773 = vmatpush1.bf16.msra.mxu0 %v673
      %774 = vmatprep.subr.bf16.mxu0 0
      %775 = vmatpush1.bf16.msra.mxu0 %v672
      %776 = vmatprep.subr.bf16.mxu0 0
      %777 = vmatpush1.bf16.msra.mxu0 %v671
      %778 = vmatprep.subr.bf16.mxu0 0
      %779 = vmatpush1.bf16.msra.mxu0 %v670
      %780 = vmatprep.subr.bf16.mxu0 0
      %781 = vmatpush1.bf16.msra.mxu0 %v669
      %782 = vmatprep.subr.bf16.mxu0 0
      %783 = vmatpush2.bf16.msra.mxu0 %v684
      %784 = vmatprep.subr.bf16.mxu0 0
      %785 = vmatpush2.bf16.msra.mxu0 %v683
      %786 = vmatprep.subr.bf16.mxu0 0
      %787 = vmatpush2.bf16.msra.mxu0 %v682
      %788 = vmatprep.subr.bf16.mxu0 0
      %789 = vmatpush2.bf16.msra.mxu0 %v681
      %790 = vmatprep.subr.bf16.mxu0 0
      %791 = vmatpush2.bf16.msra.mxu0 %v680
      %792 = vmatprep.subr.bf16.mxu0 0
      %793 = vmatpush2.bf16.msra.mxu0 %v679
      %794 = vmatprep.subr.bf16.mxu0 0
      %795 = vmatpush2.bf16.msra.mxu0 %v678
      %796 = vmatprep.subr.bf16.mxu0 0
      %797 = vmatpush2.bf16.msra.mxu0 %v677
      %798 = vmatprep.mubr.bf16.mxu0 %v454
      %799 = vmatmul.mubr.bf16.gmra.mxu0 %v453
      %v800 = vpop.f32.mrf.mxu0
      %v801 = vadd.f32 0.0, %v800
      %v802 = vpop.f32.mrf.mxu0
      %v803 = vpop.f32.mrf.mxu0
      %v804 = vadd.f32 0.0, %v803
      %v805 = vpop.f32.mrf.mxu0
      %806 = vmatprep.mubr.bf16.mxu0 %v459
      %807 = vmatmul.mubr.bf16.gmra.mxu0 %v458
      %v808 = vpop.f32.mrf.mxu0
      %v809 = vadd.f32 0.0, %v808
      %v810 = vpop.f32.mrf.mxu0
      %v811 = vpop.f32.mrf.mxu0
      %v812 = vadd.f32 0.0, %v811
      %v813 = vpop.f32.mrf.mxu0
      %814 = vmatprep.mubr.bf16.mxu0 %v464
      %815 = vmatmul.mubr.bf16.gmra.mxu0 %v463
      %v816 = vpop.f32.mrf.mxu0
      %v817 = vadd.f32 0.0, %v816
      %v818 = vpop.f32.mrf.mxu0
      %v819 = vpop.f32.mrf.mxu0
      %v820 = vadd.f32 0.0, %v819
      %v821 = vpop.f32.mrf.mxu0
      %822 = vmatprep.mubr.bf16.mxu0 %v469
      %823 = vmatmul.mubr.bf16.gmra.mxu0 %v468
      %v824 = vpop.f32.mrf.mxu0
      %v825 = vadd.f32 0.0, %v824
      %v826 = vpop.f32.mrf.mxu0
      %v827 = vpop.f32.mrf.mxu0
      %v828 = vadd.f32 0.0, %v827
      %v829 = vpop.f32.mrf.mxu0
      %830 = vmatprep.mubr.bf16.mxu0 %v474
      %831 = vmatmul.mubr.bf16.gmra.mxu0 %v473
      %v832 = vpop.f32.mrf.mxu0
      %v833 = vadd.f32 0.0, %v832
      %v834 = vpop.f32.mrf.mxu0
      %v835 = vpop.f32.mrf.mxu0
      %v836 = vadd.f32 0.0, %v835
      %v837 = vpop.f32.mrf.mxu0
      %838 = vmatprep.mubr.bf16.mxu0 %v479
      %839 = vmatmul.mubr.bf16.gmra.mxu0 %v478
      %v840 = vpop.f32.mrf.mxu0
      %v841 = vadd.f32 0.0, %v840
      %v842 = vpop.f32.mrf.mxu0
      %v843 = vpop.f32.mrf.mxu0
      %v844 = vadd.f32 0.0, %v843
      %v845 = vpop.f32.mrf.mxu0
      %846 = vmatprep.mubr.bf16.mxu0 %v484
      %847 = vmatmul.mubr.bf16.gmra.mxu0 %v483
      %v848 = vpop.f32.mrf.mxu0
      %v849 = vadd.f32 0.0, %v848
      %v850 = vpop.f32.mrf.mxu0
      %v851 = vpop.f32.mrf.mxu0
      %v852 = vadd.f32 0.0, %v851
      %v853 = vpop.f32.mrf.mxu0
      %854 = vmatprep.mubr.bf16.mxu0 %v489
      %855 = vmatmul.mubr.bf16.gmra.mxu0 %v488
      %v856 = vpop.f32.mrf.mxu0
      %v857 = vadd.f32 0.0, %v856
      %v858 = vpop.f32.mrf.mxu0
      %v859 = vpop.f32.mrf.mxu0
      %v860 = vadd.f32 0.0, %v859
      %v861 = vpop.f32.mrf.mxu0
      %862 = vdwg.mxu0
      %863 = vmatprep.subr.bf16.mxu0 0
      %864 = vmatpush1.bf16.msra.mxu0 %v692
      %865 = vmatprep.subr.bf16.mxu0 0
      %866 = vmatpush1.bf16.msra.mxu0 %v691
      %867 = vmatprep.subr.bf16.mxu0 0
      %868 = vmatpush1.bf16.msra.mxu0 %v690
      %869 = vmatprep.subr.bf16.mxu0 0
      %870 = vmatpush1.bf16.msra.mxu0 %v689
      %871 = vmatprep.subr.bf16.mxu0 0
      %872 = vmatpush1.bf16.msra.mxu0 %v688
      %873 = vmatprep.subr.bf16.mxu0 0
      %874 = vmatpush1.bf16.msra.mxu0 %v687
      %875 = vmatprep.subr.bf16.mxu0 0
      %876 = vmatpush1.bf16.msra.mxu0 %v686
      %877 = vmatprep.subr.bf16.mxu0 0
      %878 = vmatpush1.bf16.msra.mxu0 %v685
      %879 = vmatprep.subr.bf16.mxu0 0
      %880 = vmatpush2.bf16.msra.mxu0 %v700
      %881 = vmatprep.subr.bf16.mxu0 0
      %882 = vmatpush2.bf16.msra.mxu0 %v699
      %883 = vmatprep.subr.bf16.mxu0 0
      %884 = vmatpush2.bf16.msra.mxu0 %v698
      %885 = vmatprep.subr.bf16.mxu0 0
      %886 = vmatpush2.bf16.msra.mxu0 %v697
      %887 = vmatprep.subr.bf16.mxu0 0
      %888 = vmatpush2.bf16.msra.mxu0 %v696
      %889 = vmatprep.subr.bf16.mxu0 0
      %890 = vmatpush2.bf16.msra.mxu0 %v695
      %891 = vmatprep.subr.bf16.mxu0 0
      %892 = vmatpush2.bf16.msra.mxu0 %v694
      %893 = vmatprep.subr.bf16.mxu0 0
      %894 = vmatpush2.bf16.msra.mxu0 %v693
      %895 = vmatprep.mubr.bf16.mxu0 %v456
      %896 = vmatmul.mubr.bf16.gmra.mxu0 %v455
      %v897 = vpop.f32.mrf.mxu0
      %v898 = vadd.f32 %v801, %v897
      %v899 = vpop.f32.mrf.mxu0
      %v900 = vpop.f32.mrf.mxu0
      %v901 = vadd.f32 %v804, %v900
      %v902 = vpop.f32.mrf.mxu0
      %903 = vmatprep.mubr.bf16.mxu0 %v461
      %904 = vmatmul.mubr.bf16.gmra.mxu0 %v460
      %v905 = vpop.f32.mrf.mxu0
      %v906 = vadd.f32 %v809, %v905
      %v907 = vpop.f32.mrf.mxu0
      %v908 = vpop.f32.mrf.mxu0
      %v909 = vadd.f32 %v812, %v908
      %v910 = vpop.f32.mrf.mxu0
      %911 = vmatprep.mubr.bf16.mxu0 %v466
      %912 = vmatmul.mubr.bf16.gmra.mxu0 %v465
      %v913 = vpop.f32.mrf.mxu0
      %v914 = vadd.f32 %v817, %v913
      %v915 = vpop.f32.mrf.mxu0
      %v916 = vpop.f32.mrf.mxu0
      %v917 = vadd.f32 %v820, %v916
      %v918 = vpop.f32.mrf.mxu0
      %919 = vmatprep.mubr.bf16.mxu0 %v471
      %920 = vmatmul.mubr.bf16.gmra.mxu0 %v470
      %v921 = vpop.f32.mrf.mxu0
      %v922 = vadd.f32 %v825, %v921
      %v923 = vpop.f32.mrf.mxu0
      %v924 = vpop.f32.mrf.mxu0
      %v925 = vadd.f32 %v828, %v924
      %v926 = vpop.f32.mrf.mxu0
      %927 = vmatprep.mubr.bf16.mxu0 %v476
      %928 = vmatmul.mubr.bf16.gmra.mxu0 %v475
      %v929 = vpop.f32.mrf.mxu0
      %v930 = vadd.f32 %v833, %v929
      %v931 = vpop.f32.mrf.mxu0
      %v932 = vpop.f32.mrf.mxu0
      %v933 = vadd.f32 %v836, %v932
      %v934 = vpop.f32.mrf.mxu0
      %935 = vmatprep.mubr.bf16.mxu0 %v481
      %936 = vmatmul.mubr.bf16.gmra.mxu0 %v480
      %v937 = vpop.f32.mrf.mxu0
      %v938 = vadd.f32 %v841, %v937
      %v939 = vpop.f32.mrf.mxu0
      %v940 = vpop.f32.mrf.mxu0
      %v941 = vadd.f32 %v844, %v940
      %v942 = vpop.f32.mrf.mxu0
      %943 = vmatprep.mubr.bf16.mxu0 %v486
      %944 = vmatmul.mubr.bf16.gmra.mxu0 %v485
      %v945 = vpop.f32.mrf.mxu0
      %v946 = vadd.f32 %v849, %v945
      %v947 = vpop.f32.mrf.mxu0
      %v948 = vpop.f32.mrf.mxu0
      %v949 = vadd.f32 %v852, %v948
      %v950 = vpop.f32.mrf.mxu0
      %951 = vmatprep.mubr.bf16.mxu0 %v491
      %952 = vmatmul.mubr.bf16.gmra.mxu0 %v490
      %v953 = vpop.f32.mrf.mxu0
      %v954 = vadd.f32 %v857, %v953
      %v955 = vpop.f32.mrf.mxu0
      %v956 = vpop.f32.mrf.mxu0
      %v957 = vadd.f32 %v860, %v956
      %v958 = vpop.f32.mrf.mxu0
      %959 = vdwg.mxu0
      %960 = vmatprep.subr.bf16.mxu0 0
      %961 = vmatpush1.bf16.msra.mxu0 0
      %962 = vmatprep.subr.bf16.mxu0 0
      %963 = vmatpush1.bf16.msra.mxu0 0
      %964 = vmatprep.subr.bf16.mxu0 0
      %965 = vmatpush1.bf16.msra.mxu0 0
      %966 = vmatprep.subr.bf16.mxu0 0
      %967 = vmatpush1.bf16.msra.mxu0 0
      %968 = vmatprep.subr.bf16.mxu0 0
      %969 = vmatpush1.bf16.msra.mxu0 %v704
      %970 = vmatprep.subr.bf16.mxu0 0
      %971 = vmatpush1.bf16.msra.mxu0 %v703
      %972 = vmatprep.subr.bf16.mxu0 0
      %973 = vmatpush1.bf16.msra.mxu0 %v702
      %974 = vmatprep.subr.bf16.mxu0 0
      %975 = vmatpush1.bf16.msra.mxu0 %v701
      %976 = vmatprep.subr.bf16.mxu0 0
      %977 = vmatpush2.bf16.msra.mxu0 0
      %978 = vmatprep.subr.bf16.mxu0 0
      %979 = vmatpush2.bf16.msra.mxu0 0
      %980 = vmatprep.subr.bf16.mxu0 0
      %981 = vmatpush2.bf16.msra.mxu0 0
      %982 = vmatprep.subr.bf16.mxu0 0
      %983 = vmatpush2.bf16.msra.mxu0 0
      %984 = vmatprep.subr.bf16.mxu0 0
      %985 = vmatpush2.bf16.msra.mxu0 0
      %986 = vmatprep.subr.bf16.mxu0 0
      %987 = vmatpush2.bf16.msra.mxu0 0
      %988 = vmatprep.subr.bf16.mxu0 0
      %989 = vmatpush2.bf16.msra.mxu0 0
      %990 = vmatprep.subr.bf16.mxu0 0
      %991 = vmatpush2.bf16.msra.mxu0 0
      %992 = vmatprep.mubr.bf16.mxu0 0
      %993 = vmatmul.mubr.bf16.gmra.mxu0 %v743
      %v994 = vpop.f32.mrf.mxu0
      %v995 = vadd.f32 %v898, %v994
      %v996 = vpop.f32.mrf.mxu0
      %v997 = vpop.f32.mrf.mxu0
      %v998 = vadd.f32 %v901, %v997
      %v999 = vpop.f32.mrf.mxu0
      %1000 = vmatprep.mubr.bf16.mxu0 0
      %1001 = vmatmul.mubr.bf16.gmra.mxu0 %v746
      %v1002 = vpop.f32.mrf.mxu0
      %v1003 = vadd.f32 %v906, %v1002
      %v1004 = vpop.f32.mrf.mxu0
      %v1005 = vpop.f32.mrf.mxu0
      %v1006 = vadd.f32 %v909, %v1005
      %v1007 = vpop.f32.mrf.mxu0
      %1008 = vmatprep.mubr.bf16.mxu0 0
      %1009 = vmatmul.mubr.bf16.gmra.mxu0 %v749
      %v1010 = vpop.f32.mrf.mxu0
      %v1011 = vadd.f32 %v914, %v1010
      %v1012 = vpop.f32.mrf.mxu0
      %v1013 = vpop.f32.mrf.mxu0
      %v1014 = vadd.f32 %v917, %v1013
      %v1015 = vpop.f32.mrf.mxu0
      %1016 = vmatprep.mubr.bf16.mxu0 0
      %1017 = vmatmul.mubr.bf16.gmra.mxu0 %v752
      %v1018 = vpop.f32.mrf.mxu0
      %v1019 = vadd.f32 %v922, %v1018
      %v1020 = vpop.f32.mrf.mxu0
      %v1021 = vpop.f32.mrf.mxu0
      %v1022 = vadd.f32 %v925, %v1021
      %v1023 = vpop.f32.mrf.mxu0
      %1024 = vmatprep.mubr.bf16.mxu0 0
      %1025 = vmatmul.mubr.bf16.gmra.mxu0 %v755
      %v1026 = vpop.f32.mrf.mxu0
      %v1027 = vadd.f32 %v930, %v1026
      %v1028 = vpop.f32.mrf.mxu0
      %v1029 = vpop.f32.mrf.mxu0
      %v1030 = vadd.f32 %v933, %v1029
      %v1031 = vpop.f32.mrf.mxu0
      %1032 = vmatprep.mubr.bf16.mxu0 0
      %1033 = vmatmul.mubr.bf16.gmra.mxu0 %v758
      %v1034 = vpop.f32.mrf.mxu0
      %v1035 = vadd.f32 %v938, %v1034
      %v1036 = vpop.f32.mrf.mxu0
      %v1037 = vpop.f32.mrf.mxu0
      %v1038 = vadd.f32 %v941, %v1037
      %v1039 = vpop.f32.mrf.mxu0
      %1040 = vmatprep.mubr.bf16.mxu0 0
      %1041 = vmatmul.mubr.bf16.gmra.mxu0 %v761
      %v1042 = vpop.f32.mrf.mxu0
      %v1043 = vadd.f32 %v946, %v1042
      %v1044 = vpop.f32.mrf.mxu0
      %v1045 = vpop.f32.mrf.mxu0
      %v1046 = vadd.f32 %v949, %v1045
      %v1047 = vpop.f32.mrf.mxu0
      %1048 = vmatprep.mubr.bf16.mxu0 0
      %1049 = vmatmul.mubr.bf16.gmra.mxu0 %v764
      %v1050 = vpop.f32.mrf.mxu0
      %v1051 = vadd.f32 %v954, %v1050
      %v1052 = vpop.f32.mrf.mxu0
      %v1053 = vpop.f32.mrf.mxu0
      %v1054 = vadd.f32 %v957, %v1053
      %v1055 = vpop.f32.mrf.mxu0
      %1056 = vdwg.mxu0
      %v1057 = vld [vmem:[%s2] sm:$0x1]
      %v1059 = vlaneseq
      %v1060 = vshrl.u32 %v1059, 7
      %v1061 = vsub.s32 0, %v1060
      %v1062 = vrot.slane %v1057, %v1061
      %v1064 = vmul.f32 %v995, %v1062
      %v1065 = vmul.f32 %v998, %v1062
      %v1066 = vmul.f32 %v1003, %v1062
      %v1067 = vmul.f32 %v1006, %v1062
      %v1068 = vmul.f32 %v1011, %v1062
      %v1069 = vmul.f32 %v1014, %v1062
      %v1070 = vmul.f32 %v1019, %v1062
      %v1071 = vmul.f32 %v1022, %v1062
      %v1072 = vmul.f32 %v1027, %v1062
      %v1073 = vmul.f32 %v1030, %v1062
      %v1074 = vmul.f32 %v1035, %v1062
      %v1075 = vmul.f32 %v1038, %v1062
      %v1076 = vmul.f32 %v1043, %v1062
      %v1077 = vmul.f32 %v1046, %v1062
      %v1078 = vmul.f32 %v1051, %v1062
      %v1079 = vmul.f32 %v1054, %v1062
      %v1080 = vld [vmem:[%s3] sm:$0x1]
      %v1082 = vlaneseq
      %v1083 = vshrl.u32 %v1082, 7
      %v1084 = vsub.s32 0, %v1083
      %v1085 = vrot.slane %v1080, %v1084
      %v1087 = vadd.f32 %v1064, %v1085
      %v1088 = vadd.f32 %v1065, %v1085
      %v1089 = vadd.f32 %v1066, %v1085
      %v1090 = vadd.f32 %v1067, %v1085
      %v1091 = vadd.f32 %v1068, %v1085
      %v1092 = vadd.f32 %v1069, %v1085
      %v1093 = vadd.f32 %v1070, %v1085
      %v1094 = vadd.f32 %v1071, %v1085
      %v1095 = vadd.f32 %v1072, %v1085
      %v1096 = vadd.f32 %v1073, %v1085
      %v1097 = vadd.f32 %v1074, %v1085
      %v1098 = vadd.f32 %v1075, %v1085
      %v1099 = vadd.f32 %v1076, %v1085
      %v1100 = vadd.f32 %v1077, %v1085
      %v1101 = vadd.f32 %v1078, %v1085
      %v1102 = vadd.f32 %v1079, %v1085
      %v1103 = vtanh.pop %v1087
      %v1104 = vtanh.pop %v1088
      %v1105 = vtanh.pop %v1089
      %v1106 = vtanh.pop %v1090
      %v1107 = vtanh.pop %v1091
      %v1108 = vtanh.pop %v1092
      %v1109 = vtanh.pop %v1093
      %v1110 = vtanh.pop %v1094
      %v1111 = vtanh.pop %v1095
      %v1112 = vtanh.pop %v1096
      %v1113 = vtanh.pop %v1097
      %v1114 = vtanh.pop %v1098
      %v1115 = vtanh.pop %v1099
      %v1116 = vtanh.pop %v1100
      %v1117 = vtanh.pop %v1101
      %v1118 = vtanh.pop %v1102
      %v1119 = vpack.c.bf16 %v1104, %v1103
      %v1120 = vpack.c.bf16 %v1106, %v1105
      %v1121 = vpack.c.bf16 %v1108, %v1107
      %v1122 = vpack.c.bf16 %v1110, %v1109
      %v1123 = vpack.c.bf16 %v1112, %v1111
      %v1124 = vpack.c.bf16 %v1114, %v1113
      %v1125 = vpack.c.bf16 %v1116, %v1115
      %v1126 = vpack.c.bf16 %v1118, %v1117
      %v1135 = vunpack.c.l.b16 %v1119
      %v1136 = vunpack.c.h.b16 %v1119
      %v1137 = vunpack.c.l.b16 %v1120
      %v1138 = vunpack.c.h.b16 %v1120
      %v1139 = vunpack.c.l.b16 %v1121
      %v1140 = vunpack.c.h.b16 %v1121
      %v1141 = vunpack.c.l.b16 %v1122
      %v1142 = vunpack.c.h.b16 %v1122
      %v1143 = vunpack.c.l.b16 %v1123
      %v1144 = vunpack.c.h.b16 %v1123
      %v1145 = vunpack.c.l.b16 %v1124
      %v1146 = vunpack.c.h.b16 %v1124
      %v1147 = vunpack.c.l.b16 %v1125
      %v1148 = vunpack.c.h.b16 %v1125
      %v1149 = vunpack.c.l.b16 %v1126
      %v1150 = vunpack.c.h.b16 %v1126
      %v1151 = vpack.c.b16 %v1135, %v1135
      %v1152 = vpack.c.b16 %v1136, %v1136
      %v1153 = vpack.c.b16 %v1137, %v1137
      %v1154 = vpack.c.b16 %v1138, %v1138
      %v1155 = vpack.c.b16 %v1139, %v1139
      %v1156 = vpack.c.b16 %v1140, %v1140
      %v1157 = vpack.c.b16 %v1141, %v1141
      %v1158 = vpack.c.b16 %v1142, %v1142
      %v1159 = vpack.c.b16 %v1143, %v1143
      %v1160 = vpack.c.b16 %v1144, %v1144
      %v1161 = vpack.c.b16 %v1145, %v1145
      %v1162 = vpack.c.b16 %v1146, %v1146
      %v1163 = vpack.c.b16 %v1147, %v1147
      %v1164 = vpack.c.b16 %v1148, %v1148
      %v1165 = vpack.c.b16 %v1149, %v1149
      %v1166 = vpack.c.b16 %v1150, %v1150
      %1183 = vst [vmem:[%s202] sm:$0xf] %v1151
      %1184 = vst [vmem:[%s202 + $0x4] sm:$0xf] %v1152
      %1185 = vst [vmem:[%s202 + $0x8] sm:$0xf] %v1153
      %1186 = vst [vmem:[%s202 + $0xc] sm:$0xf] %v1154
      %1187 = vst [vmem:[%s202 + $0x10] sm:$0xf] %v1155
      %1188 = vst [vmem:[%s202 + $0x14] sm:$0xf] %v1156
      %1189 = vst [vmem:[%s202 + $0x18] sm:$0xf] %v1157
      %1190 = vst [vmem:[%s202 + $0x1c] sm:$0xf] %v1158
      %1191 = vst [vmem:[%s202 + $0x20] sm:$0xf] %v1159
      %1192 = vst [vmem:[%s202 + $0x24] sm:$0xf] %v1160
      %1193 = vst [vmem:[%s202 + $0x28] sm:$0xf] %v1161
      %1194 = vst [vmem:[%s202 + $0x2c] sm:$0xf] %v1162
      %1195 = vst [vmem:[%s202 + $0x30] sm:$0xf] %v1163
      %1196 = vst [vmem:[%s202 + $0x34] sm:$0xf] %v1164
      %1197 = vst [vmem:[%s202 + $0x38] sm:$0xf] %v1165
      %1198 = vst [vmem:[%s202 + $0x3c] sm:$0xf] %v1166
      %s1199 = smul.u32 16, %s15
      %p1200 = scmp.lt.s32.totalorder %s1199, 31
      %s1201 = scalar_select %p1200, %s1199, 31
      %s1202 = smul.addr %s1201, 4
      %s1203 = scalar_lea.vmem %s4, %s1202
      // Predicated region
      $region37: #{getnet_forward.7} parent=35 // pred_check
        %p1204 = pneg %p122
      $region38: #{getnet_forward.7} parent=35 // pred_check_branch
        %1206 = sbr.rel (%p1204) target = $region40
      $region39: #{getnet_forward.7} parent=35 // pred_region
        %s1207 = smul.u32 16, %s15
      $region40: #{getnet_forward.7} parent=35 // pred_fallthru
        _
    $region36: #{getnet_forward.7} parent=5 // pred_fallthru
      _
    %p1208 = scmp.le.s32.totalorder 2, %s10
    // Predicated region
    $region41: #{getnet_forward.7} parent=5 // pred_check
      %p1209 = pneg %p1208
    $region42: #{getnet_forward.7} parent=5 // pred_check_branch
      %1211 = sbr.rel (%p1209) target = $region44
    $region43: #{getnet_forward.7} parent=5 // pred_region
      %s1212 = ssub.s32 %s10, 2
      // Predicated region
      $region45: #{getnet_forward.7} parent=43 // pred_check
        %p1213 = pneg %p128
      $region46: #{getnet_forward.7} parent=43 // pred_check_branch
        %1215 = sbr.rel (%p1213) target = $region48
      $region47: #{getnet_forward.7} parent=43 // pred_region
        %s1216 = smul.u32 16, %s16
        %p1217 = scmp.lt.s32.totalorder %s1216, 31
        %s1218 = scalar_select %p1217, %s1216, 31
        %s1219 = smul.addr %s1218, 4
        %s1220 = scalar_lea.vmem %s4, %s1219
      $region48: #{getnet_forward.7} parent=43 // pred_fallthru
        _
    $region44: #{getnet_forward.7} parent=5 // pred_fallthru
      _
  $region6: #{getnet_forward.7} parent=0 // loop_footer
    %s14 = sadd.s32 1, %s10
  $region7: #{getnet_forward.7} parent=0 // loop_footer_branch
    %9 = sbr.rel target = $region3
  $region8: #{getnet_forward.7} parent=0 // loop_exit
    _

// kernel: getnet_forward.8
$region0: #{getnet_forward.8}
  #allocation0 [shape = 'u32[]', space=smem, size = 0x4, offset = 0x4, fixed_abs, tag = 'smem constant byte address 0x4 - core index']
  #allocation1 [shape = 'u32[144,128]{1,0:T(1,128)}', space=vmem, size = 0x12000, scoped, tag = 'internal scratch']
  %s0 = inlined_call_operand.vmem [shape: bf16[4,64,128], index: 0, kind: input, shape index: {}]
  %s1 = inlined_call_operand.vmem [shape: bf16[128,128], index: 1, kind: input, shape index: {}]
  %s2 = inlined_call_operand.vmem [shape: f32[1,128], index: 2, kind: input, shape index: {}]
  %s3 = inlined_call_operand.vmem [shape: f32[1,128], index: 3, kind: input, shape index: {}]
  %s4 = inlined_call_operand.vmem [shape: bf16[64,128], index: 4, kind: output, shape index: {}]
  %s5 = sld [smem:[#allocation0]]
  $region26: #{getnet_forward.8} parent=0
    _
  %s7 = ssub.s32 1, %s5
  %s8 = scalar_select 0, %s7, %s5
  // Predicated region
  $region2: #{getnet_forward.8} parent=0 // pred_check
    _
  $region3: #{getnet_forward.8} parent=0 // pred_check_branch
    %10 = sbr.rel (0) target = $region5
  $region4: #{getnet_forward.8} parent=0 // pred_region
    _
  $region5: #{getnet_forward.8} parent=0 // pred_fallthru
    _
  // Predicated region
  $region6: #{getnet_forward.8} parent=0 // pred_check
    _
  $region7: #{getnet_forward.8} parent=0 // pred_check_branch
    %12 = sbr.rel (0) target = $region9
  $region8: #{getnet_forward.8} parent=0 // pred_region
    _
  $region9: #{getnet_forward.8} parent=0 // pred_fallthru
    _
  // Predicated region
  $region10: #{getnet_forward.8} parent=0 // pred_check
    _
  $region11: #{getnet_forward.8} parent=0 // pred_check_branch
    %14 = sbr.rel (0) target = $region13
  $region12: #{getnet_forward.8} parent=0 // pred_region
    _
  $region13: #{getnet_forward.8} parent=0 // pred_fallthru
    _
  // Predicated region
  $region14: #{getnet_forward.8} parent=0 // pred_check
    _
  $region15: #{getnet_forward.8} parent=0 // pred_check_branch
    %16 = sbr.rel (0) target = $region17
  $region16: #{getnet_forward.8} parent=0 // pred_region
    _
  $region17: #{getnet_forward.8} parent=0 // pred_fallthru
    _
  %v18 = vld [vmem:[%s1] sm:$0xf]
  %v19 = vld [vmem:[%s1 + $0x4] sm:$0xf]
  %v20 = vld [vmem:[%s1 + $0x8] sm:$0xf]
  %v21 = vld [vmem:[%s1 + $0xc] sm:$0xf]
  %v22 = vld [vmem:[%s1 + $0x10] sm:$0xf]
  %v23 = vld [vmem:[%s1 + $0x14] sm:$0xf]
  %v24 = vld [vmem:[%s1 + $0x18] sm:$0xf]
  %v25 = vld [vmem:[%s1 + $0x1c] sm:$0xf]
  %v26 = vld [vmem:[%s1 + $0x20] sm:$0xf]
  %v27 = vld [vmem:[%s1 + $0x24] sm:$0xf]
  %v28 = vld [vmem:[%s1 + $0x28] sm:$0xf]
  %v29 = vld [vmem:[%s1 + $0x2c] sm:$0xf]
  %v30 = vld [vmem:[%s1 + $0x30] sm:$0xf]
  %v31 = vld [vmem:[%s1 + $0x34] sm:$0xf]
  %v32 = vld [vmem:[%s1 + $0x38] sm:$0xf]
  %v33 = vld [vmem:[%s1 + $0x3c] sm:$0xf]
  %v34 = vld [vmem:[%s2] sm:$0x1]
  %v35 = vld [vmem:[%s3] sm:$0x1]
  %v36 = vld [vmem:[%s0] sm:$0xf]
  %v37 = vld [vmem:[%s0 + $0x4] sm:$0xf]
  %v38 = vld [vmem:[%s0 + $0x8] sm:$0xf]
  %v39 = vld [vmem:[%s0 + $0xc] sm:$0xf]
  %v40 = vld [vmem:[%s0 + $0x10] sm:$0xf]
  %v41 = vld [vmem:[%s0 + $0x14] sm:$0xf]
  %v42 = vld [vmem:[%s0 + $0x18] sm:$0xf]
  %v43 = vld [vmem:[%s0 + $0x1c] sm:$0xf]
  %v52 = vunpack.c.l.b16 %v36
  %v53 = vunpack.c.l.b16 %v37
  %v54 = vunpack.c.l.b16 %v38
  %v55 = vunpack.c.l.b16 %v39
  %v56 = vunpack.c.l.b16 %v40
  %v57 = vunpack.c.l.b16 %v41
  %v58 = vunpack.c.l.b16 %v42
  %v59 = vunpack.c.l.b16 %v43
  %v60 = vpack.c.b16 %v53, %v52
  %v61 = vpack.c.b16 %v55, %v54
  %v62 = vpack.c.b16 %v57, %v56
  %v63 = vpack.c.b16 %v59, %v58
  %v84 = vunpack.c.l.b16 %v18
  %v85 = vunpack.c.l.b16 %v19
  %v86 = vunpack.c.l.b16 %v20
  %v87 = vunpack.c.l.b16 %v21
  %v88 = vunpack.c.l.b16 %v22
  %v89 = vunpack.c.l.b16 %v23
  %v90 = vunpack.c.l.b16 %v24
  %v91 = vunpack.c.l.b16 %v25
  %v92 = vunpack.c.l.b16 %v26
  %v93 = vunpack.c.l.b16 %v27
  %v94 = vunpack.c.l.b16 %v28
  %v95 = vunpack.c.l.b16 %v29
  %v96 = vunpack.c.l.b16 %v30
  %v97 = vunpack.c.l.b16 %v31
  %v98 = vunpack.c.l.b16 %v32
  %v99 = vunpack.c.l.b16 %v33
  %v100 = vpack.c.b16 %v85, %v84
  %v101 = vpack.c.b16 %v87, %v86
  %v102 = vpack.c.b16 %v89, %v88
  %v103 = vpack.c.b16 %v91, %v90
  %v104 = vpack.c.b16 %v93, %v92
  %v105 = vpack.c.b16 %v95, %v94
  %v106 = vpack.c.b16 %v97, %v96
  %v107 = vpack.c.b16 %v99, %v98
  %116 = vmatprep.subr.bf16.mxu0 0
  %117 = vmatpush1.bf16.msra.mxu0 %v107
  %118 = vmatprep.subr.bf16.mxu0 0
  %119 = vmatpush1.bf16.msra.mxu0 %v106
  %120 = vmatprep.subr.bf16.mxu0 0
  %121 = vmatpush1.bf16.msra.mxu0 %v105
  %122 = vmatprep.subr.bf16.mxu0 0
  %123 = vmatpush1.bf16.msra.mxu0 %v104
  %124 = vmatprep.subr.bf16.mxu0 0
  %125 = vmatpush1.bf16.msra.mxu0 %v103
  %126 = vmatprep.subr.bf16.mxu0 0
  %127 = vmatpush1.bf16.msra.mxu0 %v102
  %128 = vmatprep.subr.bf16.mxu0 0
  %129 = vmatpush1.bf16.msra.mxu0 %v101
  %130 = vmatprep.subr.bf16.mxu0 0
  %131 = vmatpush1.bf16.msra.mxu0 %v100
  %132 = vmatprep.subr.bf16.mxu0 0
  %133 = vmatpush2.bf16.msra.mxu0 0
  %134 = vmatprep.subr.bf16.mxu0 0
  %135 = vmatpush2.bf16.msra.mxu0 0
  %136 = vmatprep.subr.bf16.mxu0 0
  %137 = vmatpush2.bf16.msra.mxu0 0
  %138 = vmatprep.subr.bf16.mxu0 0
  %139 = vmatpush2.bf16.msra.mxu0 0
  %140 = vmatprep.subr.bf16.mxu0 0
  %141 = vmatpush2.bf16.msra.mxu0 0
  %142 = vmatprep.subr.bf16.mxu0 0
  %143 = vmatpush2.bf16.msra.mxu0 0
  %144 = vmatprep.subr.bf16.mxu0 0
  %145 = vmatpush2.bf16.msra.mxu0 0
  %146 = vmatprep.subr.bf16.mxu0 0
  %147 = vmatpush2.bf16.msra.mxu0 0
  %148 = vmatprep.mubr.bf16.mxu0 0
  %149 = vmatmul.mubr.bf16.gmra.mxu0 %v60
  %v150 = vpop.f32.mrf.mxu0
  %v151 = vadd.f32 0.0, %v150
  %v152 = vpop.f32.mrf.mxu0
  %v153 = vpop.f32.mrf.mxu0
  %v154 = vadd.f32 0.0, %v153
  %v155 = vpop.f32.mrf.mxu0
  %156 = vmatprep.mubr.bf16.mxu0 0
  %157 = vmatmul.mubr.bf16.gmra.mxu0 %v61
  %v158 = vpop.f32.mrf.mxu0
  %v159 = vadd.f32 0.0, %v158
  %v160 = vpop.f32.mrf.mxu0
  %v161 = vpop.f32.mrf.mxu0
  %v162 = vadd.f32 0.0, %v161
  %v163 = vpop.f32.mrf.mxu0
  %164 = vmatprep.mubr.bf16.mxu0 0
  %165 = vmatmul.mubr.bf16.gmra.mxu0 %v62
  %v166 = vpop.f32.mrf.mxu0
  %v167 = vadd.f32 0.0, %v166
  %v168 = vpop.f32.mrf.mxu0
  %v169 = vpop.f32.mrf.mxu0
  %v170 = vadd.f32 0.0, %v169
  %v171 = vpop.f32.mrf.mxu0
  %172 = vmatprep.mubr.bf16.mxu0 0
  %173 = vmatmul.mubr.bf16.gmra.mxu0 %v63
  %v174 = vpop.f32.mrf.mxu0
  %v175 = vadd.f32 0.0, %v174
  %v176 = vpop.f32.mrf.mxu0
  %v177 = vpop.f32.mrf.mxu0
  %v178 = vadd.f32 0.0, %v177
  %v179 = vpop.f32.mrf.mxu0
  %180 = vdwg.mxu0
  %v182 = vlaneseq
  %v183 = vshrl.u32 %v182, 7
  %v184 = vsub.s32 0, %v183
  %v185 = vrot.slane %v34, %v184
  %v187 = vmul.f32 %v151, %v185
  %v188 = vmul.f32 %v154, %v185
  %v189 = vmul.f32 %v159, %v185
  %v190 = vmul.f32 %v162, %v185
  %v191 = vmul.f32 %v167, %v185
  %v192 = vmul.f32 %v170, %v185
  %v193 = vmul.f32 %v175, %v185
  %v194 = vmul.f32 %v178, %v185
  %v196 = vlaneseq
  %v197 = vshrl.u32 %v196, 7
  %v198 = vsub.s32 0, %v197
  %v199 = vrot.slane %v35, %v198
  %v201 = vadd.f32 %v187, %v199
  %v202 = vadd.f32 %v188, %v199
  %v203 = vadd.f32 %v189, %v199
  %v204 = vadd.f32 %v190, %v199
  %v205 = vadd.f32 %v191, %v199
  %v206 = vadd.f32 %v192, %v199
  %v207 = vadd.f32 %v193, %v199
  %v208 = vadd.f32 %v194, %v199
  %v209 = vtanh.pop %v201
  %v210 = vtanh.pop %v202
  %v211 = vtanh.pop %v203
  %v212 = vtanh.pop %v204
  %v213 = vtanh.pop %v205
  %v214 = vtanh.pop %v206
  %v215 = vtanh.pop %v207
  %v216 = vtanh.pop %v208
  %s217 = scalar_lea.vmem %s0, 32
  %v218 = vld [vmem:[%s217] sm:$0xf]
  %v219 = vld [vmem:[%s217 + $0x4] sm:$0xf]
  %v220 = vld [vmem:[%s217 + $0x8] sm:$0xf]
  %v221 = vld [vmem:[%s217 + $0xc] sm:$0xf]
  %v222 = vld [vmem:[%s217 + $0x10] sm:$0xf]
  %v223 = vld [vmem:[%s217 + $0x14] sm:$0xf]
  %v224 = vld [vmem:[%s217 + $0x18] sm:$0xf]
  %v225 = vld [vmem:[%s217 + $0x1c] sm:$0xf]
  %v234 = vunpack.c.l.b16 %v218
  %v235 = vunpack.c.l.b16 %v219
  %v236 = vunpack.c.l.b16 %v220
  %v237 = vunpack.c.l.b16 %v221
  %v238 = vunpack.c.l.b16 %v222
  %v239 = vunpack.c.l.b16 %v223
  %v240 = vunpack.c.l.b16 %v224
  %v241 = vunpack.c.l.b16 %v225
  %v242 = vpack.c.b16 %v235, %v234
  %v243 = vpack.c.b16 %v237, %v236
  %v244 = vpack.c.b16 %v239, %v238
  %v245 = vpack.c.b16 %v241, %v240
  %250 = vmatprep.subr.bf16.mxu0 0
  %251 = vmatpush1.bf16.msra.mxu0 %v107
  %252 = vmatprep.subr.bf16.mxu0 0
  %253 = vmatpush1.bf16.msra.mxu0 %v106
  %254 = vmatprep.subr.bf16.mxu0 0
  %255 = vmatpush1.bf16.msra.mxu0 %v105
  %256 = vmatprep.subr.bf16.mxu0 0
  %257 = vmatpush1.bf16.msra.mxu0 %v104
  %258 = vmatprep.subr.bf16.mxu0 0
  %259 = vmatpush1.bf16.msra.mxu0 %v103
  %260 = vmatprep.subr.bf16.mxu0 0
  %261 = vmatpush1.bf16.msra.mxu0 %v102
  %262 = vmatprep.subr.bf16.mxu0 0
  %263 = vmatpush1.bf16.msra.mxu0 %v101
  %264 = vmatprep.subr.bf16.mxu0 0
  %265 = vmatpush1.bf16.msra.mxu0 %v100
  %266 = vmatprep.subr.bf16.mxu0 0
  %267 = vmatpush2.bf16.msra.mxu0 0
  %268 = vmatprep.subr.bf16.mxu0 0
  %269 = vmatpush2.bf16.msra.mxu0 0
  %270 = vmatprep.subr.bf16.mxu0 0
  %271 = vmatpush2.bf16.msra.mxu0 0
  %272 = vmatprep.subr.bf16.mxu0 0
  %273 = vmatpush2.bf16.msra.mxu0 0
  %274 = vmatprep.subr.bf16.mxu0 0
  %275 = vmatpush2.bf16.msra.mxu0 0
  %276 = vmatprep.subr.bf16.mxu0 0
  %277 = vmatpush2.bf16.msra.mxu0 0
  %278 = vmatprep.subr.bf16.mxu0 0
  %279 = vmatpush2.bf16.msra.mxu0 0
  %280 = vmatprep.subr.bf16.mxu0 0
  %281 = vmatpush2.bf16.msra.mxu0 0
  %282 = vmatprep.mubr.bf16.mxu0 0
  %283 = vmatmul.mubr.bf16.gmra.mxu0 %v242
  %v284 = vpop.f32.mrf.mxu0
  %v285 = vadd.f32 0.0, %v284
  %v286 = vpop.f32.mrf.mxu0
  %v287 = vpop.f32.mrf.mxu0
  %v288 = vadd.f32 0.0, %v287
  %v289 = vpop.f32.mrf.mxu0
  %290 = vmatprep.mubr.bf16.mxu0 0
  %291 = vmatmul.mubr.bf16.gmra.mxu0 %v243
  %v292 = vpop.f32.mrf.mxu0
  %v293 = vadd.f32 0.0, %v292
  %v294 = vpop.f32.mrf.mxu0
  %v295 = vpop.f32.mrf.mxu0
  %v296 = vadd.f32 0.0, %v295
  %v297 = vpop.f32.mrf.mxu0
  %298 = vmatprep.mubr.bf16.mxu0 0
  %299 = vmatmul.mubr.bf16.gmra.mxu0 %v244
  %v300 = vpop.f32.mrf.mxu0
  %v301 = vadd.f32 0.0, %v300
  %v302 = vpop.f32.mrf.mxu0
  %v303 = vpop.f32.mrf.mxu0
  %v304 = vadd.f32 0.0, %v303
  %v305 = vpop.f32.mrf.mxu0
  %306 = vmatprep.mubr.bf16.mxu0 0
  %307 = vmatmul.mubr.bf16.gmra.mxu0 %v245
  %v308 = vpop.f32.mrf.mxu0
  %v309 = vadd.f32 0.0, %v308
  %v310 = vpop.f32.mrf.mxu0
  %v311 = vpop.f32.mrf.mxu0
  %v312 = vadd.f32 0.0, %v311
  %v313 = vpop.f32.mrf.mxu0
  %314 = vdwg.mxu0
  %v315 = vmul.f32 %v285, %v185
  %v316 = vmul.f32 %v288, %v185
  %v317 = vmul.f32 %v293, %v185
  %v318 = vmul.f32 %v296, %v185
  %v319 = vmul.f32 %v301, %v185
  %v320 = vmul.f32 %v304, %v185
  %v321 = vmul.f32 %v309, %v185
  %v322 = vmul.f32 %v312, %v185
  %v323 = vadd.f32 %v315, %v199
  %v324 = vadd.f32 %v316, %v199
  %v325 = vadd.f32 %v317, %v199
  %v326 = vadd.f32 %v318, %v199
  %v327 = vadd.f32 %v319, %v199
  %v328 = vadd.f32 %v320, %v199
  %v329 = vadd.f32 %v321, %v199
  %v330 = vadd.f32 %v322, %v199
  %v331 = vtanh.pop %v323
  %v332 = vtanh.pop %v324
  %v333 = vtanh.pop %v325
  %v334 = vtanh.pop %v326
  %v335 = vtanh.pop %v327
  %v336 = vtanh.pop %v328
  %v337 = vtanh.pop %v329
  %v338 = vtanh.pop %v330
  %v339 = vmax.f32 %v209, %v331
  %v340 = vmax.f32 %v210, %v332
  %v341 = vmax.f32 %v211, %v333
  %v342 = vmax.f32 %v212, %v334
  %v343 = vmax.f32 %v213, %v335
  %v344 = vmax.f32 %v214, %v336
  %v345 = vmax.f32 %v215, %v337
  %v346 = vmax.f32 %v216, %v338
  %s347 = scalar_lea.vmem %s0, 64
  %v348 = vld [vmem:[%s347] sm:$0xf]
  %v349 = vld [vmem:[%s347 + $0x4] sm:$0xf]
  %v350 = vld [vmem:[%s347 + $0x8] sm:$0xf]
  %v351 = vld [vmem:[%s347 + $0xc] sm:$0xf]
  %v352 = vld [vmem:[%s347 + $0x10] sm:$0xf]
  %v353 = vld [vmem:[%s347 + $0x14] sm:$0xf]
  %v354 = vld [vmem:[%s347 + $0x18] sm:$0xf]
  %v355 = vld [vmem:[%s347 + $0x1c] sm:$0xf]
  %v364 = vunpack.c.l.b16 %v348
  %v365 = vunpack.c.l.b16 %v349
  %v366 = vunpack.c.l.b16 %v350
  %v367 = vunpack.c.l.b16 %v351
  %v368 = vunpack.c.l.b16 %v352
  %v369 = vunpack.c.l.b16 %v353
  %v370 = vunpack.c.l.b16 %v354
  %v371 = vunpack.c.l.b16 %v355
  %v372 = vpack.c.b16 %v365, %v364
  %v373 = vpack.c.b16 %v367, %v366
  %v374 = vpack.c.b16 %v369, %v368
  %v375 = vpack.c.b16 %v371, %v370
  %380 = vmatprep.subr.bf16.mxu0 0
  %381 = vmatpush1.bf16.msra.mxu0 %v107
  %382 = vmatprep.subr.bf16.mxu0 0
  %383 = vmatpush1.bf16.msra.mxu0 %v106
  %384 = vmatprep.subr.bf16.mxu0 0
  %385 = vmatpush1.bf16.msra.mxu0 %v105
  %386 = vmatprep.subr.bf16.mxu0 0
  %387 = vmatpush1.bf16.msra.mxu0 %v104
  %388 = vmatprep.subr.bf16.mxu0 0
  %389 = vmatpush1.bf16.msra.mxu0 %v103
  %390 = vmatprep.subr.bf16.mxu0 0
  %391 = vmatpush1.bf16.msra.mxu0 %v102
  %392 = vmatprep.subr.bf16.mxu0 0
  %393 = vmatpush1.bf16.msra.mxu0 %v101
  %394 = vmatprep.subr.bf16.mxu0 0
  %395 = vmatpush1.bf16.msra.mxu0 %v100
  %396 = vmatprep.subr.bf16.mxu0 0
  %397 = vmatpush2.bf16.msra.mxu0 0
  %398 = vmatprep.subr.bf16.mxu0 0
  %399 = vmatpush2.bf16.msra.mxu0 0
  %400 = vmatprep.subr.bf16.mxu0 0
  %401 = vmatpush2.bf16.msra.mxu0 0
  %402 = vmatprep.subr.bf16.mxu0 0
  %403 = vmatpush2.bf16.msra.mxu0 0
  %404 = vmatprep.subr.bf16.mxu0 0
  %405 = vmatpush2.bf16.msra.mxu0 0
  %406 = vmatprep.subr.bf16.mxu0 0
  %407 = vmatpush2.bf16.msra.mxu0 0
  %408 = vmatprep.subr.bf16.mxu0 0
  %409 = vmatpush2.bf16.msra.mxu0 0
  %410 = vmatprep.subr.bf16.mxu0 0
  %411 = vmatpush2.bf16.msra.mxu0 0
  %412 = vmatprep.mubr.bf16.mxu0 0
  %413 = vmatmul.mubr.bf16.gmra.mxu0 %v372
  %v414 = vpop.f32.mrf.mxu0
  %v415 = vadd.f32 0.0, %v414
  %v416 = vpop.f32.mrf.mxu0
  %v417 = vpop.f32.mrf.mxu0
  %v418 = vadd.f32 0.0, %v417
  %v419 = vpop.f32.mrf.mxu0
  %420 = vmatprep.mubr.bf16.mxu0 0
  %421 = vmatmul.mubr.bf16.gmra.mxu0 %v373
  %v422 = vpop.f32.mrf.mxu0
  %v423 = vadd.f32 0.0, %v422
  %v424 = vpop.f32.mrf.mxu0
  %v425 = vpop.f32.mrf.mxu0
  %v426 = vadd.f32 0.0, %v425
  %v427 = vpop.f32.mrf.mxu0
  %428 = vmatprep.mubr.bf16.mxu0 0
  %429 = vmatmul.mubr.bf16.gmra.mxu0 %v374
  %v430 = vpop.f32.mrf.mxu0
  %v431 = vadd.f32 0.0, %v430
  %v432 = vpop.f32.mrf.mxu0
  %v433 = vpop.f32.mrf.mxu0
  %v434 = vadd.f32 0.0, %v433
  %v435 = vpop.f32.mrf.mxu0
  %436 = vmatprep.mubr.bf16.mxu0 0
  %437 = vmatmul.mubr.bf16.gmra.mxu0 %v375
  %v438 = vpop.f32.mrf.mxu0
  %v439 = vadd.f32 0.0, %v438
  %v440 = vpop.f32.mrf.mxu0
  %v441 = vpop.f32.mrf.mxu0
  %v442 = vadd.f32 0.0, %v441
  %v443 = vpop.f32.mrf.mxu0
  %444 = vdwg.mxu0
  %v445 = vmul.f32 %v415, %v185
  %v446 = vmul.f32 %v418, %v185
  %v447 = vmul.f32 %v423, %v185
  %v448 = vmul.f32 %v426, %v185
  %v449 = vmul.f32 %v431, %v185
  %v450 = vmul.f32 %v434, %v185
  %v451 = vmul.f32 %v439, %v185
  %v452 = vmul.f32 %v442, %v185
  %v453 = vadd.f32 %v445, %v199
  %v454 = vadd.f32 %v446, %v199
  %v455 = vadd.f32 %v447, %v199
  %v456 = vadd.f32 %v448, %v199
  %v457 = vadd.f32 %v449, %v199
  %v458 = vadd.f32 %v450, %v199
  %v459 = vadd.f32 %v451, %v199
  %v460 = vadd.f32 %v452, %v199
  %v461 = vtanh.pop %v453
  %v462 = vtanh.pop %v454
  %v463 = vtanh.pop %v455
  %v464 = vtanh.pop %v456
  %v465 = vtanh.pop %v457
  %v466 = vtanh.pop %v458
  %v467 = vtanh.pop %v459
  %v468 = vtanh.pop %v460
  %s469 = scalar_lea.vmem %s0, 96
  %v470 = vld [vmem:[%s469] sm:$0xf]
  %v471 = vld [vmem:[%s469 + $0x4] sm:$0xf]
  %v472 = vld [vmem:[%s469 + $0x8] sm:$0xf]
  %v473 = vld [vmem:[%s469 + $0xc] sm:$0xf]
  %v474 = vld [vmem:[%s469 + $0x10] sm:$0xf]
  %v475 = vld [vmem:[%s469 + $0x14] sm:$0xf]
  %v476 = vld [vmem:[%s469 + $0x18] sm:$0xf]
  %v477 = vld [vmem:[%s469 + $0x1c] sm:$0xf]
  %v486 = vunpack.c.l.b16 %v470
  %v487 = vunpack.c.l.b16 %v471
  %v488 = vunpack.c.l.b16 %v472
  %v489 = vunpack.c.l.b16 %v473
  %v490 = vunpack.c.l.b16 %v474
  %v491 = vunpack.c.l.b16 %v475
  %v492 = vunpack.c.l.b16 %v476
  %v493 = vunpack.c.l.b16 %v477
  %v494 = vpack.c.b16 %v487, %v486
  %v495 = vpack.c.b16 %v489, %v488
  %v496 = vpack.c.b16 %v491, %v490
  %v497 = vpack.c.b16 %v493, %v492
  %502 = vmatprep.subr.bf16.mxu0 0
  %503 = vmatpush1.bf16.msra.mxu0 %v107
  %504 = vmatprep.subr.bf16.mxu0 0
  %505 = vmatpush1.bf16.msra.mxu0 %v106
  %506 = vmatprep.subr.bf16.mxu0 0
  %507 = vmatpush1.bf16.msra.mxu0 %v105
  %508 = vmatprep.subr.bf16.mxu0 0
  %509 = vmatpush1.bf16.msra.mxu0 %v104
  %510 = vmatprep.subr.bf16.mxu0 0
  %511 = vmatpush1.bf16.msra.mxu0 %v103
  %512 = vmatprep.subr.bf16.mxu0 0
  %513 = vmatpush1.bf16.msra.mxu0 %v102
  %514 = vmatprep.subr.bf16.mxu0 0
  %515 = vmatpush1.bf16.msra.mxu0 %v101
  %516 = vmatprep.subr.bf16.mxu0 0
  %517 = vmatpush1.bf16.msra.mxu0 %v100
  %518 = vmatprep.subr.bf16.mxu0 0
  %519 = vmatpush2.bf16.msra.mxu0 0
  %520 = vmatprep.subr.bf16.mxu0 0
  %521 = vmatpush2.bf16.msra.mxu0 0
  %522 = vmatprep.subr.bf16.mxu0 0
  %523 = vmatpush2.bf16.msra.mxu0 0
  %524 = vmatprep.subr.bf16.mxu0 0
  %525 = vmatpush2.bf16.msra.mxu0 0
  %526 = vmatprep.subr.bf16.mxu0 0
  %527 = vmatpush2.bf16.msra.mxu0 0
  %528 = vmatprep.subr.bf16.mxu0 0
  %529 = vmatpush2.bf16.msra.mxu0 0
  %530 = vmatprep.subr.bf16.mxu0 0
  %531 = vmatpush2.bf16.msra.mxu0 0
  %532 = vmatprep.subr.bf16.mxu0 0
  %533 = vmatpush2.bf16.msra.mxu0 0
  %534 = vmatprep.mubr.bf16.mxu0 0
  %535 = vmatmul.mubr.bf16.gmra.mxu0 %v494
  %v536 = vpop.f32.mrf.mxu0
  %v537 = vadd.f32 0.0, %v536
  %v538 = vpop.f32.mrf.mxu0
  %v539 = vpop.f32.mrf.mxu0
  %v540 = vadd.f32 0.0, %v539
  %v541 = vpop.f32.mrf.mxu0
  %542 = vmatprep.mubr.bf16.mxu0 0
  %543 = vmatmul.mubr.bf16.gmra.mxu0 %v495
  %v544 = vpop.f32.mrf.mxu0
  %v545 = vadd.f32 0.0, %v544
  %v546 = vpop.f32.mrf.mxu0
  %v547 = vpop.f32.mrf.mxu0
  %v548 = vadd.f32 0.0, %v547
  %v549 = vpop.f32.mrf.mxu0
  %550 = vmatprep.mubr.bf16.mxu0 0
  %551 = vmatmul.mubr.bf16.gmra.mxu0 %v496
  %v552 = vpop.f32.mrf.mxu0
  %v553 = vadd.f32 0.0, %v552
  %v554 = vpop.f32.mrf.mxu0
  %v555 = vpop.f32.mrf.mxu0
  %v556 = vadd.f32 0.0, %v555
  %v557 = vpop.f32.mrf.mxu0
  %558 = vmatprep.mubr.bf16.mxu0 0
  %559 = vmatmul.mubr.bf16.gmra.mxu0 %v497
  %v560 = vpop.f32.mrf.mxu0
  %v561 = vadd.f32 0.0, %v560
  %v562 = vpop.f32.mrf.mxu0
  %v563 = vpop.f32.mrf.mxu0
  %v564 = vadd.f32 0.0, %v563
  %v565 = vpop.f32.mrf.mxu0
  %566 = vdwg.mxu0
  %v567 = vmul.f32 %v537, %v185
  %v568 = vmul.f32 %v540, %v185
  %v569 = vmul.f32 %v545, %v185
  %v570 = vmul.f32 %v548, %v185
  %v571 = vmul.f32 %v553, %v185
  %v572 = vmul.f32 %v556, %v185
  %v573 = vmul.f32 %v561, %v185
  %v574 = vmul.f32 %v564, %v185
  %v575 = vadd.f32 %v567, %v199
  %v576 = vadd.f32 %v568, %v199
  %v577 = vadd.f32 %v569, %v199
  %v578 = vadd.f32 %v570, %v199
  %v579 = vadd.f32 %v571, %v199
  %v580 = vadd.f32 %v572, %v199
  %v581 = vadd.f32 %v573, %v199
  %v582 = vadd.f32 %v574, %v199
  %v583 = vtanh.pop %v575
  %v584 = vtanh.pop %v576
  %v585 = vtanh.pop %v577
  %v586 = vtanh.pop %v578
  %v587 = vtanh.pop %v579
  %v588 = vtanh.pop %v580
  %v589 = vtanh.pop %v581
  %v590 = vtanh.pop %v582
  %v591 = vmax.f32 %v461, %v583
  %v592 = vmax.f32 %v462, %v584
  %v593 = vmax.f32 %v463, %v585
  %v594 = vmax.f32 %v464, %v586
  %v595 = vmax.f32 %v465, %v587
  %v596 = vmax.f32 %v466, %v588
  %v597 = vmax.f32 %v467, %v589
  %v598 = vmax.f32 %v468, %v590
  %v599 = vmax.f32 %v339, %v591
  %v600 = vmax.f32 %v340, %v592
  %v601 = vmax.f32 %v341, %v593
  %v602 = vmax.f32 %v342, %v594
  %v603 = vmax.f32 %v343, %v595
  %v604 = vmax.f32 %v344, %v596
  %v605 = vmax.f32 %v345, %v597
  %v606 = vmax.f32 %v346, %v598
  %v607 = vpack.c.bf16 %v600, %v599
  %v608 = vpack.c.bf16 %v602, %v601
  %v609 = vpack.c.bf16 %v604, %v603
  %v610 = vpack.c.bf16 %v606, %v605
  %v615 = vunpack.c.l.b16 %v607
  %v616 = vunpack.c.h.b16 %v607
  %v617 = vunpack.c.l.b16 %v608
  %v618 = vunpack.c.h.b16 %v608
  %v619 = vunpack.c.l.b16 %v609
  %v620 = vunpack.c.h.b16 %v609
  %v621 = vunpack.c.l.b16 %v610
  %v622 = vunpack.c.h.b16 %v610
  %v623 = vpack.c.b16 %v615, %v615
  %v624 = vpack.c.b16 %v616, %v616
  %v625 = vpack.c.b16 %v617, %v617
  %v626 = vpack.c.b16 %v618, %v618
  %v627 = vpack.c.b16 %v619, %v619
  %v628 = vpack.c.b16 %v620, %v620
  %v629 = vpack.c.b16 %v621, %v621
  %v630 = vpack.c.b16 %v622, %v622
  %639 = vst [vmem:[%s4] sm:$0xf] %v623
  %640 = vst [vmem:[%s4 + $0x4] sm:$0xf] %v624
  %641 = vst [vmem:[%s4 + $0x8] sm:$0xf] %v625
  %642 = vst [vmem:[%s4 + $0xc] sm:$0xf] %v626
  %643 = vst [vmem:[%s4 + $0x10] sm:$0xf] %v627
  %644 = vst [vmem:[%s4 + $0x14] sm:$0xf] %v628
  %645 = vst [vmem:[%s4 + $0x18] sm:$0xf] %v629
  %646 = vst [vmem:[%s4 + $0x1c] sm:$0xf] %v630
  // Predicated region
  $region18: #{getnet_forward.8} parent=0 // pred_check
    _
  $region19: #{getnet_forward.8} parent=0 // pred_check_branch
    %648 = sbr.rel (0) target = $region21
  $region20: #{getnet_forward.8} parent=0 // pred_region
    _
  $region21: #{getnet_forward.8} parent=0 // pred_fallthru
    _
  // Predicated region
  $region22: #{getnet_forward.8} parent=0 // pred_check
    _
  $region23: #{getnet_forward.8} parent=0 // pred_check_branch
    %650 = sbr.rel (0) target = $region25
  $region24: #{getnet_forward.8} parent=0 // pred_region
    _
  $region25: #{getnet_forward.8} parent=0 // pred_fallthru
    _

// kernel: getnet_forward.9
$region0: #{getnet_forward.9}
  #allocation0 [shape = 'u32[]', space=smem, size = 0x4, offset = 0x4, fixed_abs, tag = 'smem constant byte address 0x4 - core index']
  #allocation1 [shape = 'u32[144,128]{1,0:T(1,128)}', space=vmem, size = 0x12000, scoped, tag = 'internal scratch']
  %s0 = inlined_call_operand.vmem [shape: bf16[4,16,128], index: 0, kind: input, shape index: {}]
  %s1 = inlined_call_operand.vmem [shape: f32[128,512], index: 1, kind: input, shape index: {}]
  %s2 = inlined_call_operand.vmem [shape: f32[1,512], index: 2, kind: input, shape index: {}]
  %s3 = inlined_call_operand.vmem [shape: f32[1,512], index: 3, kind: input, shape index: {}]
  %s4 = inlined_call_operand.vmem [shape: f32[512,128], index: 4, kind: input, shape index: {}]
  %s5 = inlined_call_operand.vmem [shape: f32[1,128], index: 5, kind: input, shape index: {}]
  %s6 = inlined_call_operand.hbm [shape: f32[2,128], index: 6, kind: output, shape index: {}]
  %s7 = sld [smem:[#allocation0]]
  $region34: #{getnet_forward.9} parent=0
    _
  %s9 = ssub.s32 1, %s7
  %s10 = scalar_select 0, %s9, %s7
  $region1: #{getnet_forward.9} parent=0
    #allocation2 [shape = 'u8[1024]{0}', space=vmem, size = 0x400, scoped, tag = 'output window, operand 0, single buffered']
    #allocation3 [shape = 's32[1]{0}', space=sflag, size = 0x4, scoped, tag = 'scoped memory for getnet_forward.9']
    %11 = vsyncpa [#allocation3], 0
    // Predicated region
    $region2: #{getnet_forward.9} parent=1 // pred_check
      _
    $region3: #{getnet_forward.9} parent=1 // pred_check_branch
      %13 = sbr.rel (0) target = $region5
    $region4: #{getnet_forward.9} parent=1 // pred_region
      _
    $region5: #{getnet_forward.9} parent=1 // pred_fallthru
      _
    // Predicated region
    $region6: #{getnet_forward.9} parent=1 // pred_check
      _
    $region7: #{getnet_forward.9} parent=1 // pred_check_branch
      %15 = sbr.rel (0) target = $region9
    $region8: #{getnet_forward.9} parent=1 // pred_region
      _
    $region9: #{getnet_forward.9} parent=1 // pred_fallthru
      _
    // Predicated region
    $region10: #{getnet_forward.9} parent=1 // pred_check
      _
    $region11: #{getnet_forward.9} parent=1 // pred_check_branch
      %17 = sbr.rel (0) target = $region13
    $region12: #{getnet_forward.9} parent=1 // pred_region
      _
    $region13: #{getnet_forward.9} parent=1 // pred_fallthru
      _
    // Predicated region
    $region14: #{getnet_forward.9} parent=1 // pred_check
      _
    $region15: #{getnet_forward.9} parent=1 // pred_check_branch
      %19 = sbr.rel (0) target = $region17
    $region16: #{getnet_forward.9} parent=1 // pred_region
      _
    $region17: #{getnet_forward.9} parent=1 // pred_fallthru
      _
    // Predicated region
    $region18: #{getnet_forward.9} parent=1 // pred_check
      _
    $region19: #{getnet_forward.9} parent=1 // pred_check_branch
      %21 = sbr.rel (0) target = $region21
    $region20: #{getnet_forward.9} parent=1 // pred_region
      _
    $region21: #{getnet_forward.9} parent=1 // pred_fallthru
      _
    // Predicated region
    $region22: #{getnet_forward.9} parent=1 // pred_check
      _
    $region23: #{getnet_forward.9} parent=1 // pred_check_branch
      %23 = sbr.rel (0) target = $region25
    $region24: #{getnet_forward.9} parent=1 // pred_region
      _
    $region25: #{getnet_forward.9} parent=1 // pred_fallthru
      _
    %v24 = vld [vmem:[%s0] sm:$0xf]
    %v25 = vld [vmem:[%s0 + $0x4] sm:$0xf]
    %v26 = vld [vmem:[%s0 + $0x8] sm:$0xf]
    %v27 = vld [vmem:[%s0 + $0xc] sm:$0xf]
    %v28 = vld [vmem:[%s0 + $0x10] sm:$0xf]
    %v29 = vld [vmem:[%s0 + $0x14] sm:$0xf]
    %v30 = vld [vmem:[%s0 + $0x18] sm:$0xf]
    %v31 = vld [vmem:[%s0 + $0x1c] sm:$0xf]
    %v32 = vunpack.c.l.bf16 %v24
    %v33 = vunpack.c.l.bf16 %v25
    %v34 = vunpack.c.l.bf16 %v26
    %v35 = vunpack.c.l.bf16 %v27
    %v36 = vunpack.c.l.bf16 %v28
    %v37 = vunpack.c.l.bf16 %v29
    %v38 = vunpack.c.l.bf16 %v30
    %v39 = vunpack.c.l.bf16 %v31
    %v40 = vadd.f32 %v32, %v36
    %v41 = vadd.f32 %v33, %v37
    %v42 = vadd.f32 %v34, %v38
    %v43 = vadd.f32 %v35, %v39
    %v44 = vadd.f32 %v40, %v41
    %v45 = vrot.slane %v44, 4
    %v46 = vadd.f32 %v44, %v45
    %v47 = vrot.slane %v46, 2
    %v48 = vadd.f32 %v46, %v47
    %v49 = vrot.slane %v48, 1
    %v50 = vadd.f32 %v48, %v49
    %v51 = vadd.f32 %v42, %v43
    %v52 = vrot.slane %v51, 4
    %v53 = vadd.f32 %v51, %v52
    %v54 = vrot.slane %v53, 2
    %v55 = vadd.f32 %v53, %v54
    %v56 = vrot.slane %v55, 1
    %v57 = vadd.f32 %v55, %v56
    %v58 = vld [vmem:[%s1] sm:$0xff]
    %v59 = vld [vmem:[%s1 + $0x8] sm:$0xff]
    %v60 = vld [vmem:[%s1 + $0x10] sm:$0xff]
    %v61 = vld [vmem:[%s1 + $0x18] sm:$0xff]
    %v62 = vld [vmem:[%s1 + $0x20] sm:$0xff]
    %v63 = vld [vmem:[%s1 + $0x28] sm:$0xff]
    %v64 = vld [vmem:[%s1 + $0x30] sm:$0xff]
    %v65 = vld [vmem:[%s1 + $0x38] sm:$0xff]
    %v66 = vld [vmem:[%s1 + $0x40] sm:$0xff]
    %v67 = vld [vmem:[%s1 + $0x48] sm:$0xff]
    %v68 = vld [vmem:[%s1 + $0x50] sm:$0xff]
    %v69 = vld [vmem:[%s1 + $0x58] sm:$0xff]
    %v70 = vld [vmem:[%s1 + $0x60] sm:$0xff]
    %v71 = vld [vmem:[%s1 + $0x68] sm:$0xff]
    %v72 = vld [vmem:[%s1 + $0x70] sm:$0xff]
    %v73 = vld [vmem:[%s1 + $0x78] sm:$0xff]
    %v74 = vld [vmem:[%s1 + $0x80] sm:$0xff]
    %v75 = vld [vmem:[%s1 + $0x88] sm:$0xff]
    %v76 = vld [vmem:[%s1 + $0x90] sm:$0xff]
    %v77 = vld [vmem:[%s1 + $0x98] sm:$0xff]
    %v78 = vld [vmem:[%s1 + $0xa0] sm:$0xff]
    %v79 = vld [vmem:[%s1 + $0xa8] sm:$0xff]
    %v80 = vld [vmem:[%s1 + $0xb0] sm:$0xff]
    %v81 = vld [vmem:[%s1 + $0xb8] sm:$0xff]
    %v82 = vld [vmem:[%s1 + $0xc0] sm:$0xff]
    %v83 = vld [vmem:[%s1 + $0xc8] sm:$0xff]
    %v84 = vld [vmem:[%s1 + $0xd0] sm:$0xff]
    %v85 = vld [vmem:[%s1 + $0xd8] sm:$0xff]
    %v86 = vld [vmem:[%s1 + $0xe0] sm:$0xff]
    %v87 = vld [vmem:[%s1 + $0xe8] sm:$0xff]
    %v88 = vld [vmem:[%s1 + $0xf0] sm:$0xff]
    %v89 = vld [vmem:[%s1 + $0xf8] sm:$0xff]
    %v90 = vld [vmem:[%s1 + $0x100] sm:$0xff]
    %v91 = vld [vmem:[%s1 + $0x108] sm:$0xff]
    %v92 = vld [vmem:[%s1 + $0x110] sm:$0xff]
    %v93 = vld [vmem:[%s1 + $0x118] sm:$0xff]
    %v94 = vld [vmem:[%s1 + $0x120] sm:$0xff]
    %v95 = vld [vmem:[%s1 + $0x128] sm:$0xff]
    %v96 = vld [vmem:[%s1 + $0x130] sm:$0xff]
    %v97 = vld [vmem:[%s1 + $0x138] sm:$0xff]
    %v98 = vld [vmem:[%s1 + $0x140] sm:$0xff]
    %v99 = vld [vmem:[%s1 + $0x148] sm:$0xff]
    %v100 = vld [vmem:[%s1 + $0x150] sm:$0xff]
    %v101 = vld [vmem:[%s1 + $0x158] sm:$0xff]
    %v102 = vld [vmem:[%s1 + $0x160] sm:$0xff]
    %v103 = vld [vmem:[%s1 + $0x168] sm:$0xff]
    %v104 = vld [vmem:[%s1 + $0x170] sm:$0xff]
    %v105 = vld [vmem:[%s1 + $0x178] sm:$0xff]
    %v106 = vld [vmem:[%s1 + $0x180] sm:$0xff]
    %v107 = vld [vmem:[%s1 + $0x188] sm:$0xff]
    %v108 = vld [vmem:[%s1 + $0x190] sm:$0xff]
    %v109 = vld [vmem:[%s1 + $0x198] sm:$0xff]
    %v110 = vld [vmem:[%s1 + $0x1a0] sm:$0xff]
    %v111 = vld [vmem:[%s1 + $0x1a8] sm:$0xff]
    %v112 = vld [vmem:[%s1 + $0x1b0] sm:$0xff]
    %v113 = vld [vmem:[%s1 + $0x1b8] sm:$0xff]
    %v114 = vld [vmem:[%s1 + $0x1c0] sm:$0xff]
    %v115 = vld [vmem:[%s1 + $0x1c8] sm:$0xff]
    %v116 = vld [vmem:[%s1 + $0x1d0] sm:$0xff]
    %v117 = vld [vmem:[%s1 + $0x1d8] sm:$0xff]
    %v118 = vld [vmem:[%s1 + $0x1e0] sm:$0xff]
    %v119 = vld [vmem:[%s1 + $0x1e8] sm:$0xff]
    %v120 = vld [vmem:[%s1 + $0x1f0] sm:$0xff]
    %v121 = vld [vmem:[%s1 + $0x1f8] sm:$0xff]
    %vm124 = vcmask 1041409
    %v125 = vsel %vm124, %v57, %v50
    %127 = vmatprep.subr.mxu0 %v119
    %128 = vmatpush1.msra.mxu0 %v118
    %129 = vmatprep.subr.mxu0 %v115
    %130 = vmatpush1.msra.mxu0 %v114
    %131 = vmatprep.subr.mxu0 %v111
    %132 = vmatpush1.msra.mxu0 %v110
    %133 = vmatprep.subr.mxu0 %v107
    %134 = vmatpush1.msra.mxu0 %v106
    %135 = vmatprep.subr.mxu0 %v103
    %136 = vmatpush1.msra.mxu0 %v102
    %137 = vmatprep.subr.mxu0 %v99
    %138 = vmatpush1.msra.mxu0 %v98
    %139 = vmatprep.subr.mxu0 %v95
    %140 = vmatpush1.msra.mxu0 %v94
    %141 = vmatprep.subr.mxu0 %v91
    %142 = vmatpush1.msra.mxu0 %v90
    %143 = vmatprep.subr.mxu0 %v87
    %144 = vmatpush1.msra.mxu0 %v86
    %145 = vmatprep.subr.mxu0 %v83
    %146 = vmatpush1.msra.mxu0 %v82
    %147 = vmatprep.subr.mxu0 %v79
    %148 = vmatpush1.msra.mxu0 %v78
    %149 = vmatprep.subr.mxu0 %v75
    %150 = vmatpush1.msra.mxu0 %v74
    %151 = vmatprep.subr.mxu0 %v71
    %152 = vmatpush1.msra.mxu0 %v70
    %153 = vmatprep.subr.mxu0 %v67
    %154 = vmatpush1.msra.mxu0 %v66
    %155 = vmatprep.subr.mxu0 %v63
    %156 = vmatpush1.msra.mxu0 %v62
    %157 = vmatprep.subr.mxu0 %v59
    %158 = vmatpush1.msra.mxu0 %v58
    %159 = vmatprep.subr.mxu0 0.0
    %160 = vmatpush2.msra.mxu0 0.0
    %161 = vmatprep.subr.mxu0 0.0
    %162 = vmatpush2.msra.mxu0 0.0
    %163 = vmatprep.subr.mxu0 0.0
    %164 = vmatpush2.msra.mxu0 0.0
    %165 = vmatprep.subr.mxu0 0.0
    %166 = vmatpush2.msra.mxu0 0.0
    %167 = vmatprep.subr.mxu0 0.0
    %168 = vmatpush2.msra.mxu0 0.0
    %169 = vmatprep.subr.mxu0 0.0
    %170 = vmatpush2.msra.mxu0 0.0
    %171 = vmatprep.subr.mxu0 0.0
    %172 = vmatpush2.msra.mxu0 0.0
    %173 = vmatprep.subr.mxu0 0.0
    %174 = vmatpush2.msra.mxu0 0.0
    %175 = vmatprep.subr.mxu0 0.0
    %176 = vmatpush2.msra.mxu0 0.0
    %177 = vmatprep.subr.mxu0 0.0
    %178 = vmatpush2.msra.mxu0 0.0
    %179 = vmatprep.subr.mxu0 0.0
    %180 = vmatpush2.msra.mxu0 0.0
    %181 = vmatprep.subr.mxu0 0.0
    %182 = vmatpush2.msra.mxu0 0.0
    %183 = vmatprep.subr.mxu0 0.0
    %184 = vmatpush2.msra.mxu0 0.0
    %185 = vmatprep.subr.mxu0 0.0
    %186 = vmatpush2.msra.mxu0 0.0
    %187 = vmatprep.subr.mxu0 0.0
    %188 = vmatpush2.msra.mxu0 0.0
    %189 = vmatprep.subr.mxu0 0.0
    %190 = vmatpush2.msra.mxu0 0.0
    %191 = vmatprep.mubr.f32.mxu0 0.0
    %192 = vmatmul.mubr.f32.gmra.mxu0 %v125
    %v193 = vpop.f32.mrf.mxu0
    %v194 = vadd.f32 0.0, %v193
    %v195 = vpop.f32.mrf.mxu0
    %v196 = vadd.f32 0.0, %v195
    %197 = vdwg.mxu0
    %198 = vmatprep.subr.mxu0 %v121
    %199 = vmatpush1.msra.mxu0 %v120
    %200 = vmatprep.subr.mxu0 %v117
    %201 = vmatpush1.msra.mxu0 %v116
    %202 = vmatprep.subr.mxu0 %v113
    %203 = vmatpush1.msra.mxu0 %v112
    %204 = vmatprep.subr.mxu0 %v109
    %205 = vmatpush1.msra.mxu0 %v108
    %206 = vmatprep.subr.mxu0 %v105
    %207 = vmatpush1.msra.mxu0 %v104
    %208 = vmatprep.subr.mxu0 %v101
    %209 = vmatpush1.msra.mxu0 %v100
    %210 = vmatprep.subr.mxu0 %v97
    %211 = vmatpush1.msra.mxu0 %v96
    %212 = vmatprep.subr.mxu0 %v93
    %213 = vmatpush1.msra.mxu0 %v92
    %214 = vmatprep.subr.mxu0 %v89
    %215 = vmatpush1.msra.mxu0 %v88
    %216 = vmatprep.subr.mxu0 %v85
    %217 = vmatpush1.msra.mxu0 %v84
    %218 = vmatprep.subr.mxu0 %v81
    %219 = vmatpush1.msra.mxu0 %v80
    %220 = vmatprep.subr.mxu0 %v77
    %221 = vmatpush1.msra.mxu0 %v76
    %222 = vmatprep.subr.mxu0 %v73
    %223 = vmatpush1.msra.mxu0 %v72
    %224 = vmatprep.subr.mxu0 %v69
    %225 = vmatpush1.msra.mxu0 %v68
    %226 = vmatprep.subr.mxu0 %v65
    %227 = vmatpush1.msra.mxu0 %v64
    %228 = vmatprep.subr.mxu0 %v61
    %229 = vmatpush1.msra.mxu0 %v60
    %230 = vmatprep.subr.mxu0 0.0
    %231 = vmatpush2.msra.mxu0 0.0
    %232 = vmatprep.subr.mxu0 0.0
    %233 = vmatpush2.msra.mxu0 0.0
    %234 = vmatprep.subr.mxu0 0.0
    %235 = vmatpush2.msra.mxu0 0.0
    %236 = vmatprep.subr.mxu0 0.0
    %237 = vmatpush2.msra.mxu0 0.0
    %238 = vmatprep.subr.mxu0 0.0
    %239 = vmatpush2.msra.mxu0 0.0
    %240 = vmatprep.subr.mxu0 0.0
    %241 = vmatpush2.msra.mxu0 0.0
    %242 = vmatprep.subr.mxu0 0.0
    %243 = vmatpush2.msra.mxu0 0.0
    %244 = vmatprep.subr.mxu0 0.0
    %245 = vmatpush2.msra.mxu0 0.0
    %246 = vmatprep.subr.mxu0 0.0
    %247 = vmatpush2.msra.mxu0 0.0
    %248 = vmatprep.subr.mxu0 0.0
    %249 = vmatpush2.msra.mxu0 0.0
    %250 = vmatprep.subr.mxu0 0.0
    %251 = vmatpush2.msra.mxu0 0.0
    %252 = vmatprep.subr.mxu0 0.0
    %253 = vmatpush2.msra.mxu0 0.0
    %254 = vmatprep.subr.mxu0 0.0
    %255 = vmatpush2.msra.mxu0 0.0
    %256 = vmatprep.subr.mxu0 0.0
    %257 = vmatpush2.msra.mxu0 0.0
    %258 = vmatprep.subr.mxu0 0.0
    %259 = vmatpush2.msra.mxu0 0.0
    %260 = vmatprep.subr.mxu0 0.0
    %261 = vmatpush2.msra.mxu0 0.0
    %262 = vmatprep.mubr.f32.mxu0 0.0
    %263 = vmatmul.mubr.f32.gmra.mxu0 %v125
    %v264 = vpop.f32.mrf.mxu0
    %v265 = vadd.f32 0.0, %v264
    %v266 = vpop.f32.mrf.mxu0
    %v267 = vadd.f32 0.0, %v266
    %268 = vdwg.mxu0
    %v269 = vld [vmem:[%s2] sm:$0xf]
    %v271 = vlaneseq
    %v272 = vshrl.u32 %v271, 7
    %v273 = vsub.s32 0, %v272
    %v274 = vrot.slane %v269, %v273
    %v275 = vlaneseq
    %v276 = vshrl.u32 %v275, 7
    %v277 = vsub.s32 1, %v276
    %v278 = vrot.slane %v269, %v277
    %v279 = vlaneseq
    %v280 = vshrl.u32 %v279, 7
    %v281 = vsub.s32 2, %v280
    %v282 = vrot.slane %v269, %v281
    %v283 = vlaneseq
    %v284 = vshrl.u32 %v283, 7
    %v285 = vsub.s32 3, %v284
    %v286 = vrot.slane %v269, %v285
    %v291 = vmul.f32 %v194, %v274
    %v292 = vmul.f32 %v196, %v278
    %v293 = vmul.f32 %v265, %v282
    %v294 = vmul.f32 %v267, %v286
    %v295 = vld [vmem:[%s3] sm:$0xf]
    %v297 = vlaneseq
    %v298 = vshrl.u32 %v297, 7
    %v299 = vsub.s32 0, %v298
    %v300 = vrot.slane %v295, %v299
    %v301 = vlaneseq
    %v302 = vshrl.u32 %v301, 7
    %v303 = vsub.s32 1, %v302
    %v304 = vrot.slane %v295, %v303
    %v305 = vlaneseq
    %v306 = vshrl.u32 %v305, 7
    %v307 = vsub.s32 2, %v306
    %v308 = vrot.slane %v295, %v307
    %v309 = vlaneseq
    %v310 = vshrl.u32 %v309, 7
    %v311 = vsub.s32 3, %v310
    %v312 = vrot.slane %v295, %v311
    %v317 = vadd.f32 %v291, %v300
    %v318 = vadd.f32 %v292, %v304
    %v319 = vadd.f32 %v293, %v308
    %v320 = vadd.f32 %v294, %v312
    %v321 = vtanh.pop %v317
    %v322 = vtanh.pop %v318
    %v323 = vtanh.pop %v319
    %v324 = vtanh.pop %v320
    %v325 = vld [vmem:[%s4] sm:$0xff]
    %v326 = vld [vmem:[%s4 + $0x8] sm:$0xff]
    %v327 = vld [vmem:[%s4 + $0x10] sm:$0xff]
    %v328 = vld [vmem:[%s4 + $0x18] sm:$0xff]
    %v329 = vld [vmem:[%s4 + $0x20] sm:$0xff]
    %v330 = vld [vmem:[%s4 + $0x28] sm:$0xff]
    %v331 = vld [vmem:[%s4 + $0x30] sm:$0xff]
    %v332 = vld [vmem:[%s4 + $0x38] sm:$0xff]
    %v333 = vld [vmem:[%s4 + $0x40] sm:$0xff]
    %v334 = vld [vmem:[%s4 + $0x48] sm:$0xff]
    %v335 = vld [vmem:[%s4 + $0x50] sm:$0xff]
    %v336 = vld [vmem:[%s4 + $0x58] sm:$0xff]
    %v337 = vld [vmem:[%s4 + $0x60] sm:$0xff]
    %v338 = vld [vmem:[%s4 + $0x68] sm:$0xff]
    %v339 = vld [vmem:[%s4 + $0x70] sm:$0xff]
    %v340 = vld [vmem:[%s4 + $0x78] sm:$0xff]
    %v341 = vld [vmem:[%s4 + $0x80] sm:$0xff]
    %v342 = vld [vmem:[%s4 + $0x88] sm:$0xff]
    %v343 = vld [vmem:[%s4 + $0x90] sm:$0xff]
    %v344 = vld [vmem:[%s4 + $0x98] sm:$0xff]
    %v345 = vld [vmem:[%s4 + $0xa0] sm:$0xff]
    %v346 = vld [vmem:[%s4 + $0xa8] sm:$0xff]
    %v347 = vld [vmem:[%s4 + $0xb0] sm:$0xff]
    %v348 = vld [vmem:[%s4 + $0xb8] sm:$0xff]
    %v349 = vld [vmem:[%s4 + $0xc0] sm:$0xff]
    %v350 = vld [vmem:[%s4 + $0xc8] sm:$0xff]
    %v351 = vld [vmem:[%s4 + $0xd0] sm:$0xff]
    %v352 = vld [vmem:[%s4 + $0xd8] sm:$0xff]
    %v353 = vld [vmem:[%s4 + $0xe0] sm:$0xff]
    %v354 = vld [vmem:[%s4 + $0xe8] sm:$0xff]
    %v355 = vld [vmem:[%s4 + $0xf0] sm:$0xff]
    %v356 = vld [vmem:[%s4 + $0xf8] sm:$0xff]
    %v357 = vld [vmem:[%s4 + $0x100] sm:$0xff]
    %v358 = vld [vmem:[%s4 + $0x108] sm:$0xff]
    %v359 = vld [vmem:[%s4 + $0x110] sm:$0xff]
    %v360 = vld [vmem:[%s4 + $0x118] sm:$0xff]
    %v361 = vld [vmem:[%s4 + $0x120] sm:$0xff]
    %v362 = vld [vmem:[%s4 + $0x128] sm:$0xff]
    %v363 = vld [vmem:[%s4 + $0x130] sm:$0xff]
    %v364 = vld [vmem:[%s4 + $0x138] sm:$0xff]
    %v365 = vld [vmem:[%s4 + $0x140] sm:$0xff]
    %v366 = vld [vmem:[%s4 + $0x148] sm:$0xff]
    %v367 = vld [vmem:[%s4 + $0x150] sm:$0xff]
    %v368 = vld [vmem:[%s4 + $0x158] sm:$0xff]
    %v369 = vld [vmem:[%s4 + $0x160] sm:$0xff]
    %v370 = vld [vmem:[%s4 + $0x168] sm:$0xff]
    %v371 = vld [vmem:[%s4 + $0x170] sm:$0xff]
    %v372 = vld [vmem:[%s4 + $0x178] sm:$0xff]
    %v373 = vld [vmem:[%s4 + $0x180] sm:$0xff]
    %v374 = vld [vmem:[%s4 + $0x188] sm:$0xff]
    %v375 = vld [vmem:[%s4 + $0x190] sm:$0xff]
    %v376 = vld [vmem:[%s4 + $0x198] sm:$0xff]
    %v377 = vld [vmem:[%s4 + $0x1a0] sm:$0xff]
    %v378 = vld [vmem:[%s4 + $0x1a8] sm:$0xff]
    %v379 = vld [vmem:[%s4 + $0x1b0] sm:$0xff]
    %v380 = vld [vmem:[%s4 + $0x1b8] sm:$0xff]
    %v381 = vld [vmem:[%s4 + $0x1c0] sm:$0xff]
    %v382 = vld [vmem:[%s4 + $0x1c8] sm:$0xff]
    %v383 = vld [vmem:[%s4 + $0x1d0] sm:$0xff]
    %v384 = vld [vmem:[%s4 + $0x1d8] sm:$0xff]
    %v385 = vld [vmem:[%s4 + $0x1e0] sm:$0xff]
    %v386 = vld [vmem:[%s4 + $0x1e8] sm:$0xff]
    %v387 = vld [vmem:[%s4 + $0x1f0] sm:$0xff]
    %v388 = vld [vmem:[%s4 + $0x1f8] sm:$0xff]
    %v389 = vld [vmem:[%s5] sm:$0x1]
    %v391 = vlaneseq
    %v392 = vshrl.u32 %v391, 7
    %v393 = vsub.s32 0, %v392
    %v394 = vrot.slane %v389, %v393
    %396 = vmatprep.subr.mxu0 0.0
    %397 = vmatpush1.msra.mxu0 %v340
    %398 = vmatprep.subr.mxu0 0.0
    %399 = vmatpush1.msra.mxu0 %v339
    %400 = vmatprep.subr.mxu0 0.0
    %401 = vmatpush1.msra.mxu0 %v338
    %402 = vmatprep.subr.mxu0 0.0
    %403 = vmatpush1.msra.mxu0 %v337
    %404 = vmatprep.subr.mxu0 0.0
    %405 = vmatpush1.msra.mxu0 %v336
    %406 = vmatprep.subr.mxu0 0.0
    %407 = vmatpush1.msra.mxu0 %v335
    %408 = vmatprep.subr.mxu0 0.0
    %409 = vmatpush1.msra.mxu0 %v334
    %410 = vmatprep.subr.mxu0 0.0
    %411 = vmatpush1.msra.mxu0 %v333
    %412 = vmatprep.subr.mxu0 0.0
    %413 = vmatpush1.msra.mxu0 %v332
    %414 = vmatprep.subr.mxu0 0.0
    %415 = vmatpush1.msra.mxu0 %v331
    %416 = vmatprep.subr.mxu0 0.0
    %417 = vmatpush1.msra.mxu0 %v330
    %418 = vmatprep.subr.mxu0 0.0
    %419 = vmatpush1.msra.mxu0 %v329
    %420 = vmatprep.subr.mxu0 0.0
    %421 = vmatpush1.msra.mxu0 %v328
    %422 = vmatprep.subr.mxu0 0.0
    %423 = vmatpush1.msra.mxu0 %v327
    %424 = vmatprep.subr.mxu0 0.0
    %425 = vmatpush1.msra.mxu0 %v326
    %426 = vmatprep.subr.mxu0 0.0
    %427 = vmatpush1.msra.mxu0 %v325
    %428 = vmatprep.subr.mxu0 0.0
    %429 = vmatpush2.msra.mxu0 %v356
    %430 = vmatprep.subr.mxu0 0.0
    %431 = vmatpush2.msra.mxu0 %v355
    %432 = vmatprep.subr.mxu0 0.0
    %433 = vmatpush2.msra.mxu0 %v354
    %434 = vmatprep.subr.mxu0 0.0
    %435 = vmatpush2.msra.mxu0 %v353
    %436 = vmatprep.subr.mxu0 0.0
    %437 = vmatpush2.msra.mxu0 %v352
    %438 = vmatprep.subr.mxu0 0.0
    %439 = vmatpush2.msra.mxu0 %v351
    %440 = vmatprep.subr.mxu0 0.0
    %441 = vmatpush2.msra.mxu0 %v350
    %442 = vmatprep.subr.mxu0 0.0
    %443 = vmatpush2.msra.mxu0 %v349
    %444 = vmatprep.subr.mxu0 0.0
    %445 = vmatpush2.msra.mxu0 %v348
    %446 = vmatprep.subr.mxu0 0.0
    %447 = vmatpush2.msra.mxu0 %v347
    %448 = vmatprep.subr.mxu0 0.0
    %449 = vmatpush2.msra.mxu0 %v346
    %450 = vmatprep.subr.mxu0 0.0
    %451 = vmatpush2.msra.mxu0 %v345
    %452 = vmatprep.subr.mxu0 0.0
    %453 = vmatpush2.msra.mxu0 %v344
    %454 = vmatprep.subr.mxu0 0.0
    %455 = vmatpush2.msra.mxu0 %v343
    %456 = vmatprep.subr.mxu0 0.0
    %457 = vmatpush2.msra.mxu0 %v342
    %458 = vmatprep.subr.mxu0 0.0
    %459 = vmatpush2.msra.mxu0 %v341
    %460 = vmatprep.mubr.f32.mxu0 %v322
    %461 = vmatmul.mubr.f32.gmra.mxu0 %v321
    %v462 = vpop.f32.mrf.mxu0
    %v463 = vadd.f32 %v394, %v462
    %v464 = vpop.f32.mrf.mxu0
    %465 = vdwg.mxu0
    %466 = vmatprep.subr.mxu0 0.0
    %467 = vmatpush1.msra.mxu0 %v372
    %468 = vmatprep.subr.mxu0 0.0
    %469 = vmatpush1.msra.mxu0 %v371
    %470 = vmatprep.subr.mxu0 0.0
    %471 = vmatpush1.msra.mxu0 %v370
    %472 = vmatprep.subr.mxu0 0.0
    %473 = vmatpush1.msra.mxu0 %v369
    %474 = vmatprep.subr.mxu0 0.0
    %475 = vmatpush1.msra.mxu0 %v368
    %476 = vmatprep.subr.mxu0 0.0
    %477 = vmatpush1.msra.mxu0 %v367
    %478 = vmatprep.subr.mxu0 0.0
    %479 = vmatpush1.msra.mxu0 %v366
    %480 = vmatprep.subr.mxu0 0.0
    %481 = vmatpush1.msra.mxu0 %v365
    %482 = vmatprep.subr.mxu0 0.0
    %483 = vmatpush1.msra.mxu0 %v364
    %484 = vmatprep.subr.mxu0 0.0
    %485 = vmatpush1.msra.mxu0 %v363
    %486 = vmatprep.subr.mxu0 0.0
    %487 = vmatpush1.msra.mxu0 %v362
    %488 = vmatprep.subr.mxu0 0.0
    %489 = vmatpush1.msra.mxu0 %v361
    %490 = vmatprep.subr.mxu0 0.0
    %491 = vmatpush1.msra.mxu0 %v360
    %492 = vmatprep.subr.mxu0 0.0
    %493 = vmatpush1.msra.mxu0 %v359
    %494 = vmatprep.subr.mxu0 0.0
    %495 = vmatpush1.msra.mxu0 %v358
    %496 = vmatprep.subr.mxu0 0.0
    %497 = vmatpush1.msra.mxu0 %v357
    %498 = vmatprep.subr.mxu0 0.0
    %499 = vmatpush2.msra.mxu0 %v388
    %500 = vmatprep.subr.mxu0 0.0
    %501 = vmatpush2.msra.mxu0 %v387
    %502 = vmatprep.subr.mxu0 0.0
    %503 = vmatpush2.msra.mxu0 %v386
    %504 = vmatprep.subr.mxu0 0.0
    %505 = vmatpush2.msra.mxu0 %v385
    %506 = vmatprep.subr.mxu0 0.0
    %507 = vmatpush2.msra.mxu0 %v384
    %508 = vmatprep.subr.mxu0 0.0
    %509 = vmatpush2.msra.mxu0 %v383
    %510 = vmatprep.subr.mxu0 0.0
    %511 = vmatpush2.msra.mxu0 %v382
    %512 = vmatprep.subr.mxu0 0.0
    %513 = vmatpush2.msra.mxu0 %v381
    %514 = vmatprep.subr.mxu0 0.0
    %515 = vmatpush2.msra.mxu0 %v380
    %516 = vmatprep.subr.mxu0 0.0
    %517 = vmatpush2.msra.mxu0 %v379
    %518 = vmatprep.subr.mxu0 0.0
    %519 = vmatpush2.msra.mxu0 %v378
    %520 = vmatprep.subr.mxu0 0.0
    %521 = vmatpush2.msra.mxu0 %v377
    %522 = vmatprep.subr.mxu0 0.0
    %523 = vmatpush2.msra.mxu0 %v376
    %524 = vmatprep.subr.mxu0 0.0
    %525 = vmatpush2.msra.mxu0 %v375
    %526 = vmatprep.subr.mxu0 0.0
    %527 = vmatpush2.msra.mxu0 %v374
    %528 = vmatprep.subr.mxu0 0.0
    %529 = vmatpush2.msra.mxu0 %v373
    %530 = vmatprep.mubr.f32.mxu0 %v324
    %531 = vmatmul.mubr.f32.gmra.mxu0 %v323
    %v532 = vpop.f32.mrf.mxu0
    %v533 = vadd.f32 %v463, %v532
    %v534 = vpop.f32.mrf.mxu0
    %535 = vdwg.mxu0
    %536 = vst [vmem:[#allocation2] sm:$0x3] %v533
    // Predicated region
    $region26: #{getnet_forward.9} parent=1 // pred_check
      _
    $region27: #{getnet_forward.9} parent=1 // pred_check_branch
      %538 = sbr.rel (0) target = $region29
    $region28: #{getnet_forward.9} parent=1 // pred_region
      %s540 = ssub.s32 32, 32
      %541 = vsyncadd [#allocation3], %s540
      %s543 = sshll.u32 [#allocation2], 4
      %s544 = int_to_ptr.vmem [resolvable:$true] %s543
      %546 = dma.vmem_to_hbm [thread:$0]  %s544, 32, %s6, [#allocation3]
    $region29: #{getnet_forward.9} parent=1 // pred_fallthru
      _
    // Predicated region
    $region30: #{getnet_forward.9} parent=1 // pred_check
      _
    $region31: #{getnet_forward.9} parent=1 // pred_check_branch
      %548 = sbr.rel (0) target = $region33
    $region32: #{getnet_forward.9} parent=1 // pred_region
      %549 = dma.done [#allocation3], 32
    $region33: #{getnet_forward.9} parent=1 // pred_fallthru
      _
    %550 = vsyncpa [#allocation3], 1

</llo_original>
